<compile_context>
chip_gen: v5e
topology: v5e:2x2
jax: 0.10.0
libtpu: 0.0.40
codegen_flags: <defaults>
</compile_context>

<pallas_src>
import numpy as np
import jax
import jax.numpy as jnp
from jax import lax
from jax.experimental import pallas as pl
from jax.experimental.pallas import tpu as pltpu


# ---------------------------------------------------------------------------
# Fused whole-encoder Pallas kernel
# ---------------------------------------------------------------------------

def _build_encoder_kernel(n, h, w, num_channels, num_blocks, eps=1e-5):
    """Build a kernel running the entire encoder forward in one pallas_call."""
    assert h & (h - 1) == 0 and w & (w - 1) == 0, "spatial dims must be powers of two"

    def kernel(*refs):
        o_ref, buf_ref, pat_ref = refs[-3], refs[-2], refs[-1]
        it = iter(refs[:-3])
        nxt = lambda: next(it)[...]

        # Zero the shifted-window staging buffer once: its margin region is only
        # ever read through a zero mask, but must never contain NaNs.
        buf_ref[...] = jnp.zeros(buf_ref.shape, buf_ref.dtype)

        coord_cache = {}   # (H, W)         -> (yy, xx) int32 (1, n*H*W)
        mask_cache = {}    # (H, W, dy, dx) -> f32 mask (1, n*H*W) or None
        ds_cache = {}      # (H, W)         -> f32 stride-2 selection matrix

        def coords(H, W):
            key = (H, W)
            if key not in coord_cache:
                m = n * H * W
                p = lax.broadcasted_iota(jnp.int32, (1, m), 1)
                xx = jnp.bitwise_and(p, W - 1)
                yy = jnp.bitwise_and(jnp.right_shift(p, int(np.log2(W))), H - 1)
                coord_cache[key] = (yy, xx)
            return coord_cache[key]

        def tap_mask(H, W, dy, dx):
            """1.0 where the tap (y+dy, x+dx) lands inside the image, else 0."""
            key = (H, W, dy, dx)
            if key in mask_cache:
                return mask_cache[key]
            yy, xx = coords(H, W)
            conds = []
            if dy < 0:
                conds.append(yy >= -dy)
            if dy > 0:
                conds.append(yy < H - dy)
            if dx < 0:
                conds.append(xx >= -dx)
            if dx > 0:
                conds.append(xx < W - dx)
            if not conds:
                mask_cache[key] = None
            else:
                c = conds[0]
                for extra in conds[1:]:
                    c = jnp.logical_and(c, extra)
                mask_cache[key] = jnp.where(c, 1.0, 0.0).astype(jnp.float32)
            return mask_cache[key]

        def downsample_mat(H, W):
            """Exact 0/1 matrix selecting columns (n, 2y, 2x) of the flat
            (C, n*H*W) layout -> (C, n*(H/2)*(W/2)).  Stride-2 as a matmul."""
            key = (H, W)
            if key not in ds_cache:
                ho, wo = H // 2, W // 2
                m_in, m_out = n * H * W, n * ho * wo
                p_idx = lax.broadcasted_iota(jnp.int32, (m_in, m_out), 0)
                q_idx = lax.broadcasted_iota(jnp.int32, (m_in, m_out), 1)
                qx = jnp.bitwise_and(q_idx, wo - 1)
                qy = jnp.bitwise_and(jnp.right_shift(q_idx, int(np.log2(wo))), ho - 1)
                qn = jnp.right_shift(q_idx, int(np.log2(ho * wo)))
                tgt = qn * (H * W) + qy * (2 * W) + qx * 2
                ds_cache[key] = jnp.where(p_idx == tgt, 1.0, 0.0).astype(jnp.float32)
            return ds_cache[key]

        def conv(x, wm, k, H, W):
            """'Same'-padded (pad=1) stride-1 KxK conv in (Cin, n*H*W) layout:
            a single MXU matmul W(Cout, K*K*Cin) @ patches(K*K*Cin, n*H*W)."""
            cin, m = x.shape
            marg = 2 * W + 2                        # covers every tap of k<=4, pad=1
            buf_ref[0:cin, marg:marg + m] = x       # virtual zero padding (masks below)
            for ky in range(k):
                for kx in range(k):
                    dy, dx = ky - 1, kx - 1         # padding = 1
                    s = dy * W + dx
                    tap = buf_ref[0:cin, marg + s:marg + s + m]
                    mk = tap_mask(H, W, dy, dx)
                    if mk is not None:
                        tap = tap * mk
                    t = ky * k + kx
                    pat_ref[t * cin:(t + 1) * cin, 0:m] = tap
            patches = pat_ref[0:k * k * cin, 0:m]
            return jnp.dot(wm, patches, preferred_element_type=jnp.float32)

        def batch_norm(y, g, b):
            """Training-mode BatchNorm2d forward (biased batch stats)."""
            m = y.shape[1]
            mean = jnp.sum(y, axis=1, keepdims=True) * (1.0 / m)
            cen = y - mean
            var = jnp.sum(cen * cen, axis=1, keepdims=True) * (1.0 / m)
            return cen * (lax.rsqrt(var + eps) * g) + b

        def silu(y):
            return y * (1.0 / (1.0 + jnp.exp(-y)))

        # ---- stem: Conv3x3(s1,p1) + BN + SiLU -------------------------------
        x = nxt()                                    # (3, n*h*w) f32
        H, W = h, w
        wm, g, b = nxt(), nxt(), nxt()
        y = silu(batch_norm(conv(x, wm, 3, H, W), g, b))

        # ---- stages ---------------------------------------------------------
        for ch, nblk in zip(num_channels, num_blocks):
            # Conv4x4(s2,p1) + BN + SiLU: stride-1 conv at full resolution,
            # then exact subsampling via a selection matmul.
            wm, g, b = nxt(), nxt(), nxt()
            full = conv(y, wm, 4, H, W)
            y = jnp.dot(full, downsample_mat(H, W),
                        preferred_element_type=jnp.float32)
            H, W = H // 2, W // 2
            y = silu(batch_norm(y, g, b))
            # Residual blocks: conv-bn-silu-conv-bn, +residual, silu.
            for _ in range(nblk):
                w1, g1, b1 = nxt(), nxt(), nxt()
                w2, g2, b2 = nxt(), nxt(), nxt()
                res = y
                t1 = silu(batch_norm(conv(y, w1, 3, H, W), g1, b1))
                t2 = batch_norm(conv(t1, w2, 3, H, W), g2, b2)
                y = silu(t2 + res)

        o_ref[...] = y.astype(o_ref.dtype)

    return kernel


# ---------------------------------------------------------------------------
# Wrapper: lays out inputs/weights and issues ONE pallas_call
# ---------------------------------------------------------------------------

def encoder_forward_pallas(params, x_nchw, num_channels, num_blocks):
    n, cin, h, w = x_nchw.shape
    m = n * h * w

    def wmat(wt):                       # (Cout, Cin, KH, KW) -> (Cout, KH*KW*Cin)
        co, ci, kh, kw = wt.shape
        return jnp.transpose(wt, (0, 2, 3, 1)).reshape(co, kh * kw * ci).astype(jnp.float32)

    def col(v):                         # (C,) -> (C, 1)
        return v.reshape(-1, 1).astype(jnp.float32)

    # NCHW -> (C, N*H*W): channels on sublanes, batch*spatial on lanes.
    x_flat = jnp.transpose(x_nchw, (1, 0, 2, 3)).reshape(cin, m).astype(jnp.float32)

    inputs = [x_flat]
    p = params["stem"]
    inputs += [wmat(p["w"]), col(p["gamma"]), col(p["beta"])]
    k_max = 3 * 3 * cin
    c_max = max(cin, num_channels[0])
    last = num_channels[0]
    for stage, (ch, _nblk) in zip(params["stages"], zip(num_channels, num_blocks)):
        d = stage["down"]
        inputs += [wmat(d["w"]), col(d["gamma"]), col(d["beta"])]
        k_max = max(k_max, 4 * 4 * last)
        for blk in stage["blocks"]:
            inputs += [wmat(blk["w1"]), col(blk["g1"]), col(blk["b1"]),
                       wmat(blk["w2"]), col(blk["g2"]), col(blk["b2"])]
            k_max = max(k_max, 3 * 3 * ch)
        c_max = max(c_max, ch)
        last = ch

    n_down = len(num_channels)
    ho, wo = h >> n_down, w >> n_down
    c_out = num_channels[-1]
    marg = 2 * w + 2

    kernel = _build_encoder_kernel(n, h, w, num_channels, num_blocks)
    out = pl.pallas_call(
        kernel,
        out_shape=jax.ShapeDtypeStruct((c_out, n * ho * wo), jnp.float32),
        scratch_shapes=[
            # zero-margin staging buffer for shifted-window (virtual-pad) reads
            pltpu.VMEM((c_max, m + 2 * marg), jnp.float32),
            # im2col patch buffer: one big lane-dense matmul RHS per conv
            pltpu.VMEM((k_max, m), jnp.float32),
        ],
        compiler_params=pltpu.CompilerParams(vmem_limit_bytes=32 * 1024 * 1024),
    )(*inputs)

    out = out.reshape(c_out, n, ho, wo)
    return jnp.transpose(out, (1, 0, 2, 3)).astype(x_nchw.dtype)   # -> NCHW


# ---------------------------------------------------------------------------
# Parameter init (deterministic, mirrors module __init__ shapes)
# ---------------------------------------------------------------------------

def init_params(key, num_channels, num_blocks):
    def conv_w(k, cout, cin, ksz):
        scale = 1.0 / np.sqrt(cin * ksz * ksz)
        return scale * jax.random.normal(k, (cout, cin, ksz, ksz), jnp.float32)

    keys = iter(jax.random.split(key, 128))
    c0 = num_channels[0]
    params = {
        "stem": dict(w=conv_w(next(keys), c0, 3, 3),
                     gamma=jnp.ones((c0,), jnp.float32),
                     beta=jnp.zeros((c0,), jnp.float32)),
        "stages": [],
    }
    last = c0
    for ch, nblk in zip(num_channels, num_blocks):
        stage = {
            "down": dict(w=conv_w(next(keys), ch, last, 4),
                         gamma=jnp.ones((ch,), jnp.float32),
                         beta=jnp.zeros((ch,), jnp.float32)),
            "blocks": [],
        }
        for _ in range(nblk):
            stage["blocks"].append(dict(
                w1=conv_w(next(keys), ch, ch, 3),
                g1=jnp.ones((ch,), jnp.float32), b1=jnp.zeros((ch,), jnp.float32),
                w2=conv_w(next(keys), ch, ch, 3),
                g2=jnp.ones((ch,), jnp.float32), b2=jnp.zeros((ch,), jnp.float32)))
        params["stages"].append(stage)
        last = ch
    return params


# ---------------------------------------------------------------------------
# Pure-JAX reference (correctness check only)
# ---------------------------------------------------------------------------

def _conv_ref(x_nhwc, w_oihw, stride, padding):
    w_hwio = jnp.transpose(w_oihw, (2, 3, 1, 0))
    return lax.conv_general_dilated(
        x_nhwc, w_hwio, window_strides=(stride, stride),
        padding=((padding, padding), (padding, padding)),
        dimension_numbers=("NHWC", "HWIO", "NHWC"))


def _bn_silu_ref(x, gamma, beta, residual=None, eps=1e-5):
    mean = jnp.mean(x, axis=(0, 1, 2), keepdims=True)
    var = jnp.mean((x - mean) ** 2, axis=(0, 1, 2), keepdims=True)
    y = (x - mean) / jnp.sqrt(var + eps)
    y = y * gamma.reshape(1, 1, 1, -1) + beta.reshape(1, 1, 1, -1)
    if residual is not None:
        y = y + residual
    return y * jax.nn.sigmoid(y)


def encoder_forward_ref(params, x_nchw):
    x = jnp.transpose(x_nchw, (0, 2, 3, 1))
    p = params["stem"]
    x = _bn_silu_ref(_conv_ref(x, p["w"], 1, 1), p["gamma"], p["beta"])
    for stage in params["stages"]:
        d = stage["down"]
        x = _bn_silu_ref(_conv_ref(x, d["w"], 2, 1), d["gamma"], d["beta"])
        for blk in stage["blocks"]:
            res = x
            h = _bn_silu_ref(_conv_ref(x, blk["w1"], 1, 1), blk["g1"], blk["b1"])
            h = _conv_ref(h, blk["w2"], 1, 1)
            x = _bn_silu_ref(h, blk["g2"], blk["b2"], residual=res)
    return jnp.transpose(x, (0, 3, 1, 2))


# ---------------------------------------------------------------------------

if __name__ == "__main__":
    key = jax.random.PRNGKey(0)
    k_params, k_x = jax.random.split(key)

    num_channels = (8, 16)
    num_blocks = (1, 1)
    params = init_params(k_params, num_channels, num_blocks)

    # PyTorch-convention NCHW input: batch=2, 3 channels, 16x16 spatial.
    x = jax.random.normal(k_x, (2, 3, 16, 16), jnp.float32)

    fwd = jax.jit(lambda p, xx: encoder_forward_pallas(p, xx, num_channels, num_blocks))
    out = jax.block_until_ready(fwd(params, x))
    assert out.shape == (2, 16, 4, 4), out.shape

    ref = jax.block_until_ready(encoder_forward_ref(params, x))
    np.testing.assert_allclose(np.asarray(out), np.asarray(ref),
                               rtol=1e-2, atol=1e-2)
    print("KERNEL_OK")
</pallas_src>

<mosaic_0001>
module attributes {stable_mosaic.version = 11 : i64} {
  func.func @kernel(%arg0: memref<3x512xf32, #tpu.memory_space<vmem>>, %arg1: memref<8x27xf32, #tpu.memory_space<vmem>>, %arg2: memref<8x1xf32, #tpu.memory_space<vmem>>, %arg3: memref<8x1xf32, #tpu.memory_space<vmem>>, %arg4: memref<8x128xf32, #tpu.memory_space<vmem>>, %arg5: memref<8x1xf32, #tpu.memory_space<vmem>>, %arg6: memref<8x1xf32, #tpu.memory_space<vmem>>, %arg7: memref<8x72xf32, #tpu.memory_space<vmem>>, %arg8: memref<8x1xf32, #tpu.memory_space<vmem>>, %arg9: memref<8x1xf32, #tpu.memory_space<vmem>>, %arg10: memref<8x72xf32, #tpu.memory_space<vmem>>, %arg11: memref<8x1xf32, #tpu.memory_space<vmem>>, %arg12: memref<8x1xf32, #tpu.memory_space<vmem>>, %arg13: memref<16x128xf32, #tpu.memory_space<vmem>>, %arg14: memref<16x1xf32, #tpu.memory_space<vmem>>, %arg15: memref<16x1xf32, #tpu.memory_space<vmem>>, %arg16: memref<16x144xf32, #tpu.memory_space<vmem>>, %arg17: memref<16x1xf32, #tpu.memory_space<vmem>>, %arg18: memref<16x1xf32, #tpu.memory_space<vmem>>, %arg19: memref<16x144xf32, #tpu.memory_space<vmem>>, %arg20: memref<16x1xf32, #tpu.memory_space<vmem>>, %arg21: memref<16x1xf32, #tpu.memory_space<vmem>>, %arg22: memref<16x32xf32, #tpu.memory_space<vmem>>, %arg23: memref<16x580xf32, #tpu.memory_space<vmem>>, %arg24: memref<144x512xf32, #tpu.memory_space<vmem>>) attributes {dimension_semantics = [], scalar_prefetch = 0 : i64, scratch_operands = 2 : i64, tpu.core_type = #tpu.core_type<tc>} {
    %cst = arith.constant 0.000000e+00 : f32
    %0 = vector.broadcast %cst : f32 to vector<16x580xf32>
    %c0 = arith.constant 0 : index
    %c0_0 = arith.constant 0 : index
    %1 = vector.load %arg23[%c0, %c0_0] : memref<16x580xf32, #tpu.memory_space<vmem>>, vector<16x580xf32>
    tpu.vector_store %arg23[%c0, %c0_0], %0 {strides = array<i32>} : memref<16x580xf32, #tpu.memory_space<vmem>>, vector<16x580xf32>,
    %c0_1 = arith.constant 0 : index
    %c0_2 = arith.constant 0 : index
    %2 = vector.load %arg0[%c0_1, %c0_2] : memref<3x512xf32, #tpu.memory_space<vmem>>, vector<3x512xf32>
    %c0_3 = arith.constant 0 : index
    %c0_4 = arith.constant 0 : index
    %3 = vector.load %arg1[%c0_3, %c0_4] : memref<8x27xf32, #tpu.memory_space<vmem>>, vector<8x27xf32>
    %c0_5 = arith.constant 0 : index
    %c0_6 = arith.constant 0 : index
    %4 = vector.load %arg2[%c0_5, %c0_6] : memref<8x1xf32, #tpu.memory_space<vmem>>, vector<8x1xf32>
    %c0_7 = arith.constant 0 : index
    %c0_8 = arith.constant 0 : index
    %5 = vector.load %arg3[%c0_7, %c0_8] : memref<8x1xf32, #tpu.memory_space<vmem>>, vector<8x1xf32>
    %c0_9 = arith.constant 0 : index
    %c34 = arith.constant 34 : index
    %6 = vector.load %arg23[%c0_9, %c34] : memref<16x580xf32, #tpu.memory_space<vmem>>, vector<3x512xf32>
    tpu.vector_store %arg23[%c0_9, %c34], %2 {strides = array<i32>} : memref<16x580xf32, #tpu.memory_space<vmem>>, vector<3x512xf32>,
    %c0_10 = arith.constant 0 : index
    %c17 = arith.constant 17 : index
    %7 = vector.load %arg23[%c0_10, %c17] : memref<16x580xf32, #tpu.memory_space<vmem>>, vector<3x512xf32>
    %8 = tpu.iota {dimensions = array<i32: 1>} : vector<1x512xi32>
    %c15_i32 = arith.constant 15 : i32
    %9 = vector.broadcast %c15_i32 : i32 to vector<1x512xi32>
    %10 = arith.andi %8, %9 : vector<1x512xi32>
    %c4_i32 = arith.constant 4 : i32
    %11 = vector.broadcast %c4_i32 : i32 to vector<1x512xi32>
    %12 = arith.shrsi %8, %11 : vector<1x512xi32>
    %c15_i32_11 = arith.constant 15 : i32
    %13 = vector.broadcast %c15_i32_11 : i32 to vector<1x512xi32>
    %14 = arith.andi %12, %13 : vector<1x512xi32>
    %c1_i32 = arith.constant 1 : i32
    %15 = vector.broadcast %c1_i32 : i32 to vector<1x512xi32>
    %16 = arith.cmpi sge, %14, %15 : vector<1x512xi32>
    %c1_i32_12 = arith.constant 1 : i32
    %17 = vector.broadcast %c1_i32_12 : i32 to vector<1x512xi32>
    %18 = arith.cmpi sge, %10, %17 : vector<1x512xi32>
    %19 = arith.andi %16, %18 : vector<1x512xi1>
    %cst_13 = arith.constant 1.000000e+00 : f32
    %cst_14 = arith.constant 0.000000e+00 : f32
    %20 = vector.broadcast %cst_13 : f32 to vector<1x512xf32>
    %21 = vector.broadcast %cst_14 : f32 to vector<1x512xf32>
    %22 = arith.select %19, %20, %21 : vector<1x512xi1>, vector<1x512xf32>
    %23 = vector.broadcast %22 : vector<1x512xf32> to vector<3x512xf32>
    %24 = arith.mulf %7, %23 : vector<3x512xf32>
    %c0_15 = arith.constant 0 : index
    %c0_16 = arith.constant 0 : index
    %25 = vector.load %arg24[%c0_15, %c0_16] : memref<144x512xf32, #tpu.memory_space<vmem>>, vector<3x512xf32>
    tpu.vector_store %arg24[%c0_15, %c0_16], %24 {strides = array<i32>} : memref<144x512xf32, #tpu.memory_space<vmem>>, vector<3x512xf32>,
    %c0_17 = arith.constant 0 : index
    %c18 = arith.constant 18 : index
    %26 = vector.load %arg23[%c0_17, %c18] : memref<16x580xf32, #tpu.memory_space<vmem>>, vector<3x512xf32>
    %c1_i32_18 = arith.constant 1 : i32
    %27 = vector.broadcast %c1_i32_18 : i32 to vector<1x512xi32>
    %28 = arith.cmpi sge, %14, %27 : vector<1x512xi32>
    %cst_19 = arith.constant 1.000000e+00 : f32
    %cst_20 = arith.constant 0.000000e+00 : f32
    %29 = vector.broadcast %cst_19 : f32 to vector<1x512xf32>
    %30 = vector.broadcast %cst_20 : f32 to vector<1x512xf32>
    %31 = arith.select %28, %29, %30 : vector<1x512xi1>, vector<1x512xf32>
    %32 = vector.broadcast %31 : vector<1x512xf32> to vector<3x512xf32>
    %33 = arith.mulf %26, %32 : vector<3x512xf32>
    %c3 = arith.constant 3 : index
    %c0_21 = arith.constant 0 : index
    %34 = vector.load %arg24[%c3, %c0_21] : memref<144x512xf32, #tpu.memory_space<vmem>>, vector<3x512xf32>
    tpu.vector_store %arg24[%c3, %c0_21], %33 {strides = array<i32>} : memref<144x512xf32, #tpu.memory_space<vmem>>, vector<3x512xf32>,
    %c0_22 = arith.constant 0 : index
    %c19 = arith.constant 19 : index
    %35 = vector.load %arg23[%c0_22, %c19] : memref<16x580xf32, #tpu.memory_space<vmem>>, vector<3x512xf32>
    %c1_i32_23 = arith.constant 1 : i32
    %36 = vector.broadcast %c1_i32_23 : i32 to vector<1x512xi32>
    %37 = arith.cmpi sge, %14, %36 : vector<1x512xi32>
    %c15_i32_24 = arith.constant 15 : i32
    %38 = vector.broadcast %c15_i32_24 : i32 to vector<1x512xi32>
    %39 = arith.cmpi slt, %10, %38 : vector<1x512xi32>
    %40 = arith.andi %37, %39 : vector<1x512xi1>
    %cst_25 = arith.constant 1.000000e+00 : f32
    %cst_26 = arith.constant 0.000000e+00 : f32
    %41 = vector.broadcast %cst_25 : f32 to vector<1x512xf32>
    %42 = vector.broadcast %cst_26 : f32 to vector<1x512xf32>
    %43 = arith.select %40, %41, %42 : vector<1x512xi1>, vector<1x512xf32>
    %44 = vector.broadcast %43 : vector<1x512xf32> to vector<3x512xf32>
    %45 = arith.mulf %35, %44 : vector<3x512xf32>
    %c6 = arith.constant 6 : index
    %c0_27 = arith.constant 0 : index
    %46 = vector.load %arg24[%c6, %c0_27] : memref<144x512xf32, #tpu.memory_space<vmem>>, vector<3x512xf32>
    tpu.vector_store %arg24[%c6, %c0_27], %45 {strides = array<i32>} : memref<144x512xf32, #tpu.memory_space<vmem>>, vector<3x512xf32>,
    %c0_28 = arith.constant 0 : index
    %c33 = arith.constant 33 : index
    %47 = vector.load %arg23[%c0_28, %c33] : memref<16x580xf32, #tpu.memory_space<vmem>>, vector<3x512xf32>
    %c1_i32_29 = arith.constant 1 : i32
    %48 = vector.broadcast %c1_i32_29 : i32 to vector<1x512xi32>
    %49 = arith.cmpi sge, %10, %48 : vector<1x512xi32>
    %cst_30 = arith.constant 1.000000e+00 : f32
    %cst_31 = arith.constant 0.000000e+00 : f32
    %50 = vector.broadcast %cst_30 : f32 to vector<1x512xf32>
    %51 = vector.broadcast %cst_31 : f32 to vector<1x512xf32>
    %52 = arith.select %49, %50, %51 : vector<1x512xi1>, vector<1x512xf32>
    %53 = vector.broadcast %52 : vector<1x512xf32> to vector<3x512xf32>
    %54 = arith.mulf %47, %53 : vector<3x512xf32>
    %c9 = arith.constant 9 : index
    %c0_32 = arith.constant 0 : index
    %55 = vector.load %arg24[%c9, %c0_32] : memref<144x512xf32, #tpu.memory_space<vmem>>, vector<3x512xf32>
    tpu.vector_store %arg24[%c9, %c0_32], %54 {strides = array<i32>} : memref<144x512xf32, #tpu.memory_space<vmem>>, vector<3x512xf32>,
    %c0_33 = arith.constant 0 : index
    %c34_34 = arith.constant 34 : index
    %56 = vector.load %arg23[%c0_33, %c34_34] : memref<16x580xf32, #tpu.memory_space<vmem>>, vector<3x512xf32>
    %c12 = arith.constant 12 : index
    %c0_35 = arith.constant 0 : index
    %57 = vector.load %arg24[%c12, %c0_35] : memref<144x512xf32, #tpu.memory_space<vmem>>, vector<3x512xf32>
    tpu.vector_store %arg24[%c12, %c0_35], %56 {strides = array<i32>} : memref<144x512xf32, #tpu.memory_space<vmem>>, vector<3x512xf32>,
    %c0_36 = arith.constant 0 : index
    %c35 = arith.constant 35 : index
    %58 = vector.load %arg23[%c0_36, %c35] : memref<16x580xf32, #tpu.memory_space<vmem>>, vector<3x512xf32>
    %c15_i32_37 = arith.constant 15 : i32
    %59 = vector.broadcast %c15_i32_37 : i32 to vector<1x512xi32>
    %60 = arith.cmpi slt, %10, %59 : vector<1x512xi32>
    %cst_38 = arith.constant 1.000000e+00 : f32
    %cst_39 = arith.constant 0.000000e+00 : f32
    %61 = vector.broadcast %cst_38 : f32 to vector<1x512xf32>
    %62 = vector.broadcast %cst_39 : f32 to vector<1x512xf32>
    %63 = arith.select %60, %61, %62 : vector<1x512xi1>, vector<1x512xf32>
    %64 = vector.broadcast %63 : vector<1x512xf32> to vector<3x512xf32>
    %65 = arith.mulf %58, %64 : vector<3x512xf32>
    %c15 = arith.constant 15 : index
    %c0_40 = arith.constant 0 : index
    %66 = vector.load %arg24[%c15, %c0_40] : memref<144x512xf32, #tpu.memory_space<vmem>>, vector<3x512xf32>
    tpu.vector_store %arg24[%c15, %c0_40], %65 {strides = array<i32>} : memref<144x512xf32, #tpu.memory_space<vmem>>, vector<3x512xf32>,
    %c0_41 = arith.constant 0 : index
    %c49 = arith.constant 49 : index
    %67 = vector.load %arg23[%c0_41, %c49] : memref<16x580xf32, #tpu.memory_space<vmem>>, vector<3x512xf32>
    %c15_i32_42 = arith.constant 15 : i32
    %68 = vector.broadcast %c15_i32_42 : i32 to vector<1x512xi32>
    %69 = arith.cmpi slt, %14, %68 : vector<1x512xi32>
    %c1_i32_43 = arith.constant 1 : i32
    %70 = vector.broadcast %c1_i32_43 : i32 to vector<1x512xi32>
    %71 = arith.cmpi sge, %10, %70 : vector<1x512xi32>
    %72 = arith.andi %69, %71 : vector<1x512xi1>
    %cst_44 = arith.constant 1.000000e+00 : f32
    %cst_45 = arith.constant 0.000000e+00 : f32
    %73 = vector.broadcast %cst_44 : f32 to vector<1x512xf32>
    %74 = vector.broadcast %cst_45 : f32 to vector<1x512xf32>
    %75 = arith.select %72, %73, %74 : vector<1x512xi1>, vector<1x512xf32>
    %76 = vector.broadcast %75 : vector<1x512xf32> to vector<3x512xf32>
    %77 = arith.mulf %67, %76 : vector<3x512xf32>
    %c18_46 = arith.constant 18 : index
    %c0_47 = arith.constant 0 : index
    %78 = vector.load %arg24[%c18_46, %c0_47] : memref<144x512xf32, #tpu.memory_space<vmem>>, vector<3x512xf32>
    tpu.vector_store %arg24[%c18_46, %c0_47], %77 {strides = array<i32>} : memref<144x512xf32, #tpu.memory_space<vmem>>, vector<3x512xf32>,
    %c0_48 = arith.constant 0 : index
    %c50 = arith.constant 50 : index
    %79 = vector.load %arg23[%c0_48, %c50] : memref<16x580xf32, #tpu.memory_space<vmem>>, vector<3x512xf32>
    %c15_i32_49 = arith.constant 15 : i32
    %80 = vector.broadcast %c15_i32_49 : i32 to vector<1x512xi32>
    %81 = arith.cmpi slt, %14, %80 : vector<1x512xi32>
    %cst_50 = arith.constant 1.000000e+00 : f32
    %cst_51 = arith.constant 0.000000e+00 : f32
    %82 = vector.broadcast %cst_50 : f32 to vector<1x512xf32>
    %83 = vector.broadcast %cst_51 : f32 to vector<1x512xf32>
    %84 = arith.select %81, %82, %83 : vector<1x512xi1>, vector<1x512xf32>
    %85 = vector.broadcast %84 : vector<1x512xf32> to vector<3x512xf32>
    %86 = arith.mulf %79, %85 : vector<3x512xf32>
    %c21 = arith.constant 21 : index
    %c0_52 = arith.constant 0 : index
    %87 = vector.load %arg24[%c21, %c0_52] : memref<144x512xf32, #tpu.memory_space<vmem>>, vector<3x512xf32>
    tpu.vector_store %arg24[%c21, %c0_52], %86 {strides = array<i32>} : memref<144x512xf32, #tpu.memory_space<vmem>>, vector<3x512xf32>,
    %c0_53 = arith.constant 0 : index
    %c51 = arith.constant 51 : index
    %88 = vector.load %arg23[%c0_53, %c51] : memref<16x580xf32, #tpu.memory_space<vmem>>, vector<3x512xf32>
    %c15_i32_54 = arith.constant 15 : i32
    %89 = vector.broadcast %c15_i32_54 : i32 to vector<1x512xi32>
    %90 = arith.cmpi slt, %14, %89 : vector<1x512xi32>
    %c15_i32_55 = arith.constant 15 : i32
    %91 = vector.broadcast %c15_i32_55 : i32 to vector<1x512xi32>
    %92 = arith.cmpi slt, %10, %91 : vector<1x512xi32>
    %93 = arith.andi %90, %92 : vector<1x512xi1>
    %cst_56 = arith.constant 1.000000e+00 : f32
    %cst_57 = arith.constant 0.000000e+00 : f32
    %94 = vector.broadcast %cst_56 : f32 to vector<1x512xf32>
    %95 = vector.broadcast %cst_57 : f32 to vector<1x512xf32>
    %96 = arith.select %93, %94, %95 : vector<1x512xi1>, vector<1x512xf32>
    %97 = vector.broadcast %96 : vector<1x512xf32> to vector<3x512xf32>
    %98 = arith.mulf %88, %97 : vector<3x512xf32>
    %c24 = arith.constant 24 : index
    %c0_58 = arith.constant 0 : index
    %99 = vector.load %arg24[%c24, %c0_58] : memref<144x512xf32, #tpu.memory_space<vmem>>, vector<3x512xf32>
    tpu.vector_store %arg24[%c24, %c0_58], %98 {strides = array<i32>} : memref<144x512xf32, #tpu.memory_space<vmem>>, vector<3x512xf32>,
    %c0_59 = arith.constant 0 : index
    %c0_60 = arith.constant 0 : index
    %100 = vector.load %arg24[%c0_59, %c0_60] : memref<144x512xf32, #tpu.memory_space<vmem>>, vector<27x512xf32>
    %cst_61 = arith.constant dense<0.000000e+00> : vector<8x512xf32>
    %101 = tpu.matmul %3, %100, %cst_61 {dimension_numbers = #tpu.dot_dimension_numbers<[1], [0], [0], [1], [0, 0, 1, 1], [], []>} : vector<8x27xf32>, vector<27x512xf32>, vector<8x512xf32> -> vector<8x512xf32>
    %cst_62 = arith.constant dense<0.000000e+00> : vector<8xf32>
    %102 = vector.multi_reduction <add>, %101, %cst_62 [1] : vector<8x512xf32> to vector<8xf32>
    %103 = vector.shape_cast %102 : vector<8xf32> to vector<8x1xf32>
    %cst_63 = arith.constant 0.001953125 : f32
    %104 = vector.broadcast %cst_63 : f32 to vector<8x1xf32>
    %105 = arith.mulf %103, %104 : vector<8x1xf32>
    %106 = vector.broadcast %105 : vector<8x1xf32> to vector<8x512xf32>
    %107 = arith.subf %101, %106 : vector<8x512xf32>
    %108 = arith.mulf %107, %107 : vector<8x512xf32>
    %cst_64 = arith.constant dense<0.000000e+00> : vector<8xf32>
    %109 = vector.multi_reduction <add>, %108, %cst_64 [1] : vector<8x512xf32> to vector<8xf32>
    %110 = vector.shape_cast %109 : vector<8xf32> to vector<8x1xf32>
    %cst_65 = arith.constant 0.001953125 : f32
    %111 = vector.broadcast %cst_65 : f32 to vector<8x1xf32>
    %112 = arith.mulf %110, %111 : vector<8x1xf32>
    %cst_66 = arith.constant 9.99999974E-6 : f32
    %113 = vector.broadcast %cst_66 : f32 to vector<8x1xf32>
    %114 = arith.addf %112, %113 : vector<8x1xf32>
    %115 = math.rsqrt %114 : vector<8x1xf32>
    %116 = arith.mulf %115, %4 : vector<8x1xf32>
    %117 = vector.broadcast %116 : vector<8x1xf32> to vector<8x512xf32>
    %118 = arith.mulf %107, %117 : vector<8x512xf32>
    %119 = vector.broadcast %5 : vector<8x1xf32> to vector<8x512xf32>
    %120 = arith.addf %118, %119 : vector<8x512xf32>
    %cst_67 = arith.constant 0.000000e+00 : f32
    %121 = vector.broadcast %cst_67 : f32 to vector<8x512xf32>
    %122 = arith.subf %121, %120 : vector<8x512xf32>
    %123 = math.exp %122 : vector<8x512xf32>
    %cst_68 = arith.constant 1.000000e+00 : f32
    %124 = vector.broadcast %cst_68 : f32 to vector<8x512xf32>
    %125 = arith.addf %124, %123 : vector<8x512xf32>
    %cst_69 = arith.constant 1.000000e+00 : f32
    %126 = vector.broadcast %cst_69 : f32 to vector<8x512xf32>
    %127 = arith.divf %126, %125 : vector<8x512xf32>
    %128 = arith.mulf %120, %127 : vector<8x512xf32>
    %c0_70 = arith.constant 0 : index
    %c0_71 = arith.constant 0 : index
    %129 = vector.load %arg4[%c0_70, %c0_71] : memref<8x128xf32, #tpu.memory_space<vmem>>, vector<8x128xf32>
    %c0_72 = arith.constant 0 : index
    %c0_73 = arith.constant 0 : index
    %130 = vector.load %arg5[%c0_72, %c0_73] : memref<8x1xf32, #tpu.memory_space<vmem>>, vector<8x1xf32>
    %c0_74 = arith.constant 0 : index
    %c0_75 = arith.constant 0 : index
    %131 = vector.load %arg6[%c0_74, %c0_75] : memref<8x1xf32, #tpu.memory_space<vmem>>, vector<8x1xf32>
    %c0_76 = arith.constant 0 : index
    %c34_77 = arith.constant 34 : index
    %132 = vector.load %arg23[%c0_76, %c34_77] : memref<16x580xf32, #tpu.memory_space<vmem>>, vector<8x512xf32>
    tpu.vector_store %arg23[%c0_76, %c34_77], %128 {strides = array<i32>} : memref<16x580xf32, #tpu.memory_space<vmem>>, vector<8x512xf32>,
    %c0_78 = arith.constant 0 : index
    %c17_79 = arith.constant 17 : index
    %133 = vector.load %arg23[%c0_78, %c17_79] : memref<16x580xf32, #tpu.memory_space<vmem>>, vector<8x512xf32>
    %134 = vector.broadcast %22 : vector<1x512xf32> to vector<8x512xf32>
    %135 = arith.mulf %133, %134 : vector<8x512xf32>
    %c0_80 = arith.constant 0 : index
    %c0_81 = arith.constant 0 : index
    %136 = vector.load %arg24[%c0_80, %c0_81] : memref<144x512xf32, #tpu.memory_space<vmem>>, vector<8x512xf32>
    tpu.vector_store %arg24[%c0_80, %c0_81], %135 {strides = array<i32>} : memref<144x512xf32, #tpu.memory_space<vmem>>, vector<8x512xf32>,
    %c0_82 = arith.constant 0 : index
    %c18_83 = arith.constant 18 : index
    %137 = vector.load %arg23[%c0_82, %c18_83] : memref<16x580xf32, #tpu.memory_space<vmem>>, vector<8x512xf32>
    %138 = vector.broadcast %31 : vector<1x512xf32> to vector<8x512xf32>
    %139 = arith.mulf %137, %138 : vector<8x512xf32>
    %c8 = arith.constant 8 : index
    %c0_84 = arith.constant 0 : index
    %140 = vector.load %arg24[%c8, %c0_84] : memref<144x512xf32, #tpu.memory_space<vmem>>, vector<8x512xf32>
    tpu.vector_store %arg24[%c8, %c0_84], %139 {strides = array<i32>} : memref<144x512xf32, #tpu.memory_space<vmem>>, vector<8x512xf32>,
    %c0_85 = arith.constant 0 : index
    %c19_86 = arith.constant 19 : index
    %141 = vector.load %arg23[%c0_85, %c19_86] : memref<16x580xf32, #tpu.memory_space<vmem>>, vector<8x512xf32>
    %142 = vector.broadcast %43 : vector<1x512xf32> to vector<8x512xf32>
    %143 = arith.mulf %141, %142 : vector<8x512xf32>
    %c16 = arith.constant 16 : index
    %c0_87 = arith.constant 0 : index
    %144 = vector.load %arg24[%c16, %c0_87] : memref<144x512xf32, #tpu.memory_space<vmem>>, vector<8x512xf32>
    tpu.vector_store %arg24[%c16, %c0_87], %143 {strides = array<i32>} : memref<144x512xf32, #tpu.memory_space<vmem>>, vector<8x512xf32>,
    %c0_88 = arith.constant 0 : index
    %c20 = arith.constant 20 : index
    %145 = vector.load %arg23[%c0_88, %c20] : memref<16x580xf32, #tpu.memory_space<vmem>>, vector<8x512xf32>
    %c1_i32_89 = arith.constant 1 : i32
    %146 = vector.broadcast %c1_i32_89 : i32 to vector<1x512xi32>
    %147 = arith.cmpi sge, %14, %146 : vector<1x512xi32>
    %c14_i32 = arith.constant 14 : i32
    %148 = vector.broadcast %c14_i32 : i32 to vector<1x512xi32>
    %149 = arith.cmpi slt, %10, %148 : vector<1x512xi32>
    %150 = arith.andi %147, %149 : vector<1x512xi1>
    %cst_90 = arith.constant 1.000000e+00 : f32
    %cst_91 = arith.constant 0.000000e+00 : f32
    %151 = vector.broadcast %cst_90 : f32 to vector<1x512xf32>
    %152 = vector.broadcast %cst_91 : f32 to vector<1x512xf32>
    %153 = arith.select %150, %151, %152 : vector<1x512xi1>, vector<1x512xf32>
    %154 = vector.broadcast %153 : vector<1x512xf32> to vector<8x512xf32>
    %155 = arith.mulf %145, %154 : vector<8x512xf32>
    %c24_92 = arith.constant 24 : index
    %c0_93 = arith.constant 0 : index
    %156 = vector.load %arg24[%c24_92, %c0_93] : memref<144x512xf32, #tpu.memory_space<vmem>>, vector<8x512xf32>
    tpu.vector_store %arg24[%c24_92, %c0_93], %155 {strides = array<i32>} : memref<144x512xf32, #tpu.memory_space<vmem>>, vector<8x512xf32>,
    %c0_94 = arith.constant 0 : index
    %c33_95 = arith.constant 33 : index
    %157 = vector.load %arg23[%c0_94, %c33_95] : memref<16x580xf32, #tpu.memory_space<vmem>>, vector<8x512xf32>
    %158 = vector.broadcast %52 : vector<1x512xf32> to vector<8x512xf32>
    %159 = arith.mulf %157, %158 : vector<8x512xf32>
    %c32 = arith.constant 32 : index
    %c0_96 = arith.constant 0 : index
    %160 = vector.load %arg24[%c32, %c0_96] : memref<144x512xf32, #tpu.memory_space<vmem>>, vector<8x512xf32>
    tpu.vector_store %arg24[%c32, %c0_96], %159 {strides = array<i32>} : memref<144x512xf32, #tpu.memory_space<vmem>>, vector<8x512xf32>,
    %c0_97 = arith.constant 0 : index
    %c34_98 = arith.constant 34 : index
    %161 = vector.load %arg23[%c0_97, %c34_98] : memref<16x580xf32, #tpu.memory_space<vmem>>, vector<8x512xf32>
    %c40 = arith.constant 40 : index
    %c0_99 = arith.constant 0 : index
    %162 = vector.load %arg24[%c40, %c0_99] : memref<144x512xf32, #tpu.memory_space<vmem>>, vector<8x512xf32>
    tpu.vector_store %arg24[%c40, %c0_99], %161 {strides = array<i32>} : memref<144x512xf32, #tpu.memory_space<vmem>>, vector<8x512xf32>,
    %c0_100 = arith.constant 0 : index
    %c35_101 = arith.constant 35 : index
    %163 = vector.load %arg23[%c0_100, %c35_101] : memref<16x580xf32, #tpu.memory_space<vmem>>, vector<8x512xf32>
    %164 = vector.broadcast %63 : vector<1x512xf32> to vector<8x512xf32>
    %165 = arith.mulf %163, %164 : vector<8x512xf32>
    %c48 = arith.constant 48 : index
    %c0_102 = arith.constant 0 : index
    %166 = vector.load %arg24[%c48, %c0_102] : memref<144x512xf32, #tpu.memory_space<vmem>>, vector<8x512xf32>
    tpu.vector_store %arg24[%c48, %c0_102], %165 {strides = array<i32>} : memref<144x512xf32, #tpu.memory_space<vmem>>, vector<8x512xf32>,
    %c0_103 = arith.constant 0 : index
    %c36 = arith.constant 36 : index
    %167 = vector.load %arg23[%c0_103, %c36] : memref<16x580xf32, #tpu.memory_space<vmem>>, vector<8x512xf32>
    %c14_i32_104 = arith.constant 14 : i32
    %168 = vector.broadcast %c14_i32_104 : i32 to vector<1x512xi32>
    %169 = arith.cmpi slt, %10, %168 : vector<1x512xi32>
    %cst_105 = arith.constant 1.000000e+00 : f32
    %cst_106 = arith.constant 0.000000e+00 : f32
    %170 = vector.broadcast %cst_105 : f32 to vector<1x512xf32>
    %171 = vector.broadcast %cst_106 : f32 to vector<1x512xf32>
    %172 = arith.select %169, %170, %171 : vector<1x512xi1>, vector<1x512xf32>
    %173 = vector.broadcast %172 : vector<1x512xf32> to vector<8x512xf32>
    %174 = arith.mulf %167, %173 : vector<8x512xf32>
    %c56 = arith.constant 56 : index
    %c0_107 = arith.constant 0 : index
    %175 = vector.load %arg24[%c56, %c0_107] : memref<144x512xf32, #tpu.memory_space<vmem>>, vector<8x512xf32>
    tpu.vector_store %arg24[%c56, %c0_107], %174 {strides = array<i32>} : memref<144x512xf32, #tpu.memory_space<vmem>>, vector<8x512xf32>,
    %c0_108 = arith.constant 0 : index
    %c49_109 = arith.constant 49 : index
    %176 = vector.load %arg23[%c0_108, %c49_109] : memref<16x580xf32, #tpu.memory_space<vmem>>, vector<8x512xf32>
    %177 = vector.broadcast %75 : vector<1x512xf32> to vector<8x512xf32>
    %178 = arith.mulf %176, %177 : vector<8x512xf32>
    %c64 = arith.constant 64 : index
    %c0_110 = arith.constant 0 : index
    %179 = vector.load %arg24[%c64, %c0_110] : memref<144x512xf32, #tpu.memory_space<vmem>>, vector<8x512xf32>
    tpu.vector_store %arg24[%c64, %c0_110], %178 {strides = array<i32>} : memref<144x512xf32, #tpu.memory_space<vmem>>, vector<8x512xf32>,
    %c0_111 = arith.constant 0 : index
    %c50_112 = arith.constant 50 : index
    %180 = vector.load %arg23[%c0_111, %c50_112] : memref<16x580xf32, #tpu.memory_space<vmem>>, vector<8x512xf32>
    %181 = vector.broadcast %84 : vector<1x512xf32> to vector<8x512xf32>
    %182 = arith.mulf %180, %181 : vector<8x512xf32>
    %c72 = arith.constant 72 : index
    %c0_113 = arith.constant 0 : index
    %183 = vector.load %arg24[%c72, %c0_113] : memref<144x512xf32, #tpu.memory_space<vmem>>, vector<8x512xf32>
    tpu.vector_store %arg24[%c72, %c0_113], %182 {strides = array<i32>} : memref<144x512xf32, #tpu.memory_space<vmem>>, vector<8x512xf32>,
    %c0_114 = arith.constant 0 : index
    %c51_115 = arith.constant 51 : index
    %184 = vector.load %arg23[%c0_114, %c51_115] : memref<16x580xf32, #tpu.memory_space<vmem>>, vector<8x512xf32>
    %185 = vector.broadcast %96 : vector<1x512xf32> to vector<8x512xf32>
    %186 = arith.mulf %184, %185 : vector<8x512xf32>
    %c80 = arith.constant 80 : index
    %c0_116 = arith.constant 0 : index
    %187 = vector.load %arg24[%c80, %c0_116] : memref<144x512xf32, #tpu.memory_space<vmem>>, vector<8x512xf32>
    tpu.vector_store %arg24[%c80, %c0_116], %186 {strides = array<i32>} : memref<144x512xf32, #tpu.memory_space<vmem>>, vector<8x512xf32>,
    %c0_117 = arith.constant 0 : index
    %c52 = arith.constant 52 : index
    %188 = vector.load %arg23[%c0_117, %c52] : memref<16x580xf32, #tpu.memory_space<vmem>>, vector<8x512xf32>
    %c15_i32_118 = arith.constant 15 : i32
    %189 = vector.broadcast %c15_i32_118 : i32 to vector<1x512xi32>
    %190 = arith.cmpi slt, %14, %189 : vector<1x512xi32>
    %c14_i32_119 = arith.constant 14 : i32
    %191 = vector.broadcast %c14_i32_119 : i32 to vector<1x512xi32>
    %192 = arith.cmpi slt, %10, %191 : vector<1x512xi32>
    %193 = arith.andi %190, %192 : vector<1x512xi1>
    %cst_120 = arith.constant 1.000000e+00 : f32
    %cst_121 = arith.constant 0.000000e+00 : f32
    %194 = vector.broadcast %cst_120 : f32 to vector<1x512xf32>
    %195 = vector.broadcast %cst_121 : f32 to vector<1x512xf32>
    %196 = arith.select %193, %194, %195 : vector<1x512xi1>, vector<1x512xf32>
    %197 = vector.broadcast %196 : vector<1x512xf32> to vector<8x512xf32>
    %198 = arith.mulf %188, %197 : vector<8x512xf32>
    %c88 = arith.constant 88 : index
    %c0_122 = arith.constant 0 : index
    %199 = vector.load %arg24[%c88, %c0_122] : memref<144x512xf32, #tpu.memory_space<vmem>>, vector<8x512xf32>
    tpu.vector_store %arg24[%c88, %c0_122], %198 {strides = array<i32>} : memref<144x512xf32, #tpu.memory_space<vmem>>, vector<8x512xf32>,
    %c0_123 = arith.constant 0 : index
    %c65 = arith.constant 65 : index
    %200 = vector.load %arg23[%c0_123, %c65] : memref<16x580xf32, #tpu.memory_space<vmem>>, vector<8x512xf32>
    %c14_i32_124 = arith.constant 14 : i32
    %201 = vector.broadcast %c14_i32_124 : i32 to vector<1x512xi32>
    %202 = arith.cmpi slt, %14, %201 : vector<1x512xi32>
    %c1_i32_125 = arith.constant 1 : i32
    %203 = vector.broadcast %c1_i32_125 : i32 to vector<1x512xi32>
    %204 = arith.cmpi sge, %10, %203 : vector<1x512xi32>
    %205 = arith.andi %202, %204 : vector<1x512xi1>
    %cst_126 = arith.constant 1.000000e+00 : f32
    %cst_127 = arith.constant 0.000000e+00 : f32
    %206 = vector.broadcast %cst_126 : f32 to vector<1x512xf32>
    %207 = vector.broadcast %cst_127 : f32 to vector<1x512xf32>
    %208 = arith.select %205, %206, %207 : vector<1x512xi1>, vector<1x512xf32>
    %209 = vector.broadcast %208 : vector<1x512xf32> to vector<8x512xf32>
    %210 = arith.mulf %200, %209 : vector<8x512xf32>
    %c96 = arith.constant 96 : index
    %c0_128 = arith.constant 0 : index
    %211 = vector.load %arg24[%c96, %c0_128] : memref<144x512xf32, #tpu.memory_space<vmem>>, vector<8x512xf32>
    tpu.vector_store %arg24[%c96, %c0_128], %210 {strides = array<i32>} : memref<144x512xf32, #tpu.memory_space<vmem>>, vector<8x512xf32>,
    %c0_129 = arith.constant 0 : index
    %c66 = arith.constant 66 : index
    %212 = vector.load %arg23[%c0_129, %c66] : memref<16x580xf32, #tpu.memory_space<vmem>>, vector<8x512xf32>
    %c14_i32_130 = arith.constant 14 : i32
    %213 = vector.broadcast %c14_i32_130 : i32 to vector<1x512xi32>
    %214 = arith.cmpi slt, %14, %213 : vector<1x512xi32>
    %cst_131 = arith.constant 1.000000e+00 : f32
    %cst_132 = arith.constant 0.000000e+00 : f32
    %215 = vector.broadcast %cst_131 : f32 to vector<1x512xf32>
    %216 = vector.broadcast %cst_132 : f32 to vector<1x512xf32>
    %217 = arith.select %214, %215, %216 : vector<1x512xi1>, vector<1x512xf32>
    %218 = vector.broadcast %217 : vector<1x512xf32> to vector<8x512xf32>
    %219 = arith.mulf %212, %218 : vector<8x512xf32>
    %c104 = arith.constant 104 : index
    %c0_133 = arith.constant 0 : index
    %220 = vector.load %arg24[%c104, %c0_133] : memref<144x512xf32, #tpu.memory_space<vmem>>, vector<8x512xf32>
    tpu.vector_store %arg24[%c104, %c0_133], %219 {strides = array<i32>} : memref<144x512xf32, #tpu.memory_space<vmem>>, vector<8x512xf32>,
    %c0_134 = arith.constant 0 : index
    %c67 = arith.constant 67 : index
    %221 = vector.load %arg23[%c0_134, %c67] : memref<16x580xf32, #tpu.memory_space<vmem>>, vector<8x512xf32>
    %c14_i32_135 = arith.constant 14 : i32
    %222 = vector.broadcast %c14_i32_135 : i32 to vector<1x512xi32>
    %223 = arith.cmpi slt, %14, %222 : vector<1x512xi32>
    %c15_i32_136 = arith.constant 15 : i32
    %224 = vector.broadcast %c15_i32_136 : i32 to vector<1x512xi32>
    %225 = arith.cmpi slt, %10, %224 : vector<1x512xi32>
    %226 = arith.andi %223, %225 : vector<1x512xi1>
    %cst_137 = arith.constant 1.000000e+00 : f32
    %cst_138 = arith.constant 0.000000e+00 : f32
    %227 = vector.broadcast %cst_137 : f32 to vector<1x512xf32>
    %228 = vector.broadcast %cst_138 : f32 to vector<1x512xf32>
    %229 = arith.select %226, %227, %228 : vector<1x512xi1>, vector<1x512xf32>
    %230 = vector.broadcast %229 : vector<1x512xf32> to vector<8x512xf32>
    %231 = arith.mulf %221, %230 : vector<8x512xf32>
    %c112 = arith.constant 112 : index
    %c0_139 = arith.constant 0 : index
    %232 = vector.load %arg24[%c112, %c0_139] : memref<144x512xf32, #tpu.memory_space<vmem>>, vector<8x512xf32>
    tpu.vector_store %arg24[%c112, %c0_139], %231 {strides = array<i32>} : memref<144x512xf32, #tpu.memory_space<vmem>>, vector<8x512xf32>,
    %c0_140 = arith.constant 0 : index
    %c68 = arith.constant 68 : index
    %233 = vector.load %arg23[%c0_140, %c68] : memref<16x580xf32, #tpu.memory_space<vmem>>, vector<8x512xf32>
    %c14_i32_141 = arith.constant 14 : i32
    %234 = vector.broadcast %c14_i32_141 : i32 to vector<1x512xi32>
    %235 = arith.cmpi slt, %14, %234 : vector<1x512xi32>
    %c14_i32_142 = arith.constant 14 : i32
    %236 = vector.broadcast %c14_i32_142 : i32 to vector<1x512xi32>
    %237 = arith.cmpi slt, %10, %236 : vector<1x512xi32>
    %238 = arith.andi %235, %237 : vector<1x512xi1>
    %cst_143 = arith.constant 1.000000e+00 : f32
    %cst_144 = arith.constant 0.000000e+00 : f32
    %239 = vector.broadcast %cst_143 : f32 to vector<1x512xf32>
    %240 = vector.broadcast %cst_144 : f32 to vector<1x512xf32>
    %241 = arith.select %238, %239, %240 : vector<1x512xi1>, vector<1x512xf32>
    %242 = vector.broadcast %241 : vector<1x512xf32> to vector<8x512xf32>
    %243 = arith.mulf %233, %242 : vector<8x512xf32>
    %c120 = arith.constant 120 : index
    %c0_145 = arith.constant 0 : index
    %244 = vector.load %arg24[%c120, %c0_145] : memref<144x512xf32, #tpu.memory_space<vmem>>, vector<8x512xf32>
    tpu.vector_store %arg24[%c120, %c0_145], %243 {strides = array<i32>} : memref<144x512xf32, #tpu.memory_space<vmem>>, vector<8x512xf32>,
    %c0_146 = arith.constant 0 : index
    %c0_147 = arith.constant 0 : index
    %245 = vector.load %arg24[%c0_146, %c0_147] : memref<144x512xf32, #tpu.memory_space<vmem>>, vector<128x512xf32>
    %cst_148 = arith.constant dense<0.000000e+00> : vector<8x512xf32>
    %246 = tpu.matmul %129, %245, %cst_148 {dimension_numbers = #tpu.dot_dimension_numbers<[1], [0], [0], [1], [0, 0, 1, 1], [], []>} : vector<8x128xf32>, vector<128x512xf32>, vector<8x512xf32> -> vector<8x512xf32>
    %247 = tpu.iota {dimensions = array<i32: 0>} : vector<512x128xi32>
    %248 = tpu.iota {dimensions = array<i32: 1>} : vector<512x128xi32>
    %c7_i32 = arith.constant 7 : i32
    %249 = vector.broadcast %c7_i32 : i32 to vector<512x128xi32>
    %250 = arith.andi %248, %249 : vector<512x128xi32>
    %c3_i32 = arith.constant 3 : i32
    %251 = vector.broadcast %c3_i32 : i32 to vector<512x128xi32>
    %252 = arith.shrsi %248, %251 : vector<512x128xi32>
    %c7_i32_149 = arith.constant 7 : i32
    %253 = vector.broadcast %c7_i32_149 : i32 to vector<512x128xi32>
    %254 = arith.andi %252, %253 : vector<512x128xi32>
    %c6_i32 = arith.constant 6 : i32
    %255 = vector.broadcast %c6_i32 : i32 to vector<512x128xi32>
    %256 = arith.shrsi %248, %255 : vector<512x128xi32>
    %c256_i32 = arith.constant 256 : i32
    %257 = vector.broadcast %c256_i32 : i32 to vector<512x128xi32>
    %258 = arith.muli %256, %257 : vector<512x128xi32>
    %c32_i32 = arith.constant 32 : i32
    %259 = vector.broadcast %c32_i32 : i32 to vector<512x128xi32>
    %260 = arith.muli %254, %259 : vector<512x128xi32>
    %261 = arith.addi %258, %260 : vector<512x128xi32>
    %c2_i32 = arith.constant 2 : i32
    %262 = vector.broadcast %c2_i32 : i32 to vector<512x128xi32>
    %263 = arith.muli %250, %262 : vector<512x128xi32>
    %264 = arith.addi %261, %263 : vector<512x128xi32>
    %265 = arith.cmpi eq, %247, %264 : vector<512x128xi32>
    %cst_150 = arith.constant 1.000000e+00 : f32
    %cst_151 = arith.constant 0.000000e+00 : f32
    %266 = vector.broadcast %cst_150 : f32 to vector<512x128xf32>
    %267 = vector.broadcast %cst_151 : f32 to vector<512x128xf32>
    %268 = arith.select %265, %266, %267 : vector<512x128xi1>, vector<512x128xf32>
    %cst_152 = arith.constant dense<0.000000e+00> : vector<8x128xf32>
    %269 = tpu.matmul %246, %268, %cst_152 {dimension_numbers = #tpu.dot_dimension_numbers<[1], [0], [0], [1], [0, 0, 1, 1], [], []>} : vector<8x512xf32>, vector<512x128xf32>, vector<8x128xf32> -> vector<8x128xf32>
    %cst_153 = arith.constant dense<0.000000e+00> : vector<8xf32>
    %270 = vector.multi_reduction <add>, %269, %cst_153 [1] : vector<8x128xf32> to vector<8xf32>
    %271 = vector.shape_cast %270 : vector<8xf32> to vector<8x1xf32>
    %cst_154 = arith.constant 7.812500e-03 : f32
    %272 = vector.broadcast %cst_154 : f32 to vector<8x1xf32>
    %273 = arith.mulf %271, %272 : vector<8x1xf32>
    %274 = vector.broadcast %273 : vector<8x1xf32> to vector<8x128xf32>
    %275 = arith.subf %269, %274 : vector<8x128xf32>
    %276 = arith.mulf %275, %275 : vector<8x128xf32>
    %cst_155 = arith.constant dense<0.000000e+00> : vector<8xf32>
    %277 = vector.multi_reduction <add>, %276, %cst_155 [1] : vector<8x128xf32> to vector<8xf32>
    %278 = vector.shape_cast %277 : vector<8xf32> to vector<8x1xf32>
    %cst_156 = arith.constant 7.812500e-03 : f32
    %279 = vector.broadcast %cst_156 : f32 to vector<8x1xf32>
    %280 = arith.mulf %278, %279 : vector<8x1xf32>
    %cst_157 = arith.constant 9.99999974E-6 : f32
    %281 = vector.broadcast %cst_157 : f32 to vector<8x1xf32>
    %282 = arith.addf %280, %281 : vector<8x1xf32>
    %283 = math.rsqrt %282 : vector<8x1xf32>
    %284 = arith.mulf %283, %130 : vector<8x1xf32>
    %285 = vector.broadcast %284 : vector<8x1xf32> to vector<8x128xf32>
    %286 = arith.mulf %275, %285 : vector<8x128xf32>
    %287 = vector.broadcast %131 : vector<8x1xf32> to vector<8x128xf32>
    %288 = arith.addf %286, %287 : vector<8x128xf32>
    %cst_158 = arith.constant 0.000000e+00 : f32
    %289 = vector.broadcast %cst_158 : f32 to vector<8x128xf32>
    %290 = arith.subf %289, %288 : vector<8x128xf32>
    %291 = math.exp %290 : vector<8x128xf32>
    %cst_159 = arith.constant 1.000000e+00 : f32
    %292 = vector.broadcast %cst_159 : f32 to vector<8x128xf32>
    %293 = arith.addf %292, %291 : vector<8x128xf32>
    %cst_160 = arith.constant 1.000000e+00 : f32
    %294 = vector.broadcast %cst_160 : f32 to vector<8x128xf32>
    %295 = arith.divf %294, %293 : vector<8x128xf32>
    %296 = arith.mulf %288, %295 : vector<8x128xf32>
    %c0_161 = arith.constant 0 : index
    %c0_162 = arith.constant 0 : index
    %297 = vector.load %arg7[%c0_161, %c0_162] : memref<8x72xf32, #tpu.memory_space<vmem>>, vector<8x72xf32>
    %c0_163 = arith.constant 0 : index
    %c0_164 = arith.constant 0 : index
    %298 = vector.load %arg8[%c0_163, %c0_164] : memref<8x1xf32, #tpu.memory_space<vmem>>, vector<8x1xf32>
    %c0_165 = arith.constant 0 : index
    %c0_166 = arith.constant 0 : index
    %299 = vector.load %arg9[%c0_165, %c0_166] : memref<8x1xf32, #tpu.memory_space<vmem>>, vector<8x1xf32>
    %c0_167 = arith.constant 0 : index
    %c0_168 = arith.constant 0 : index
    %300 = vector.load %arg10[%c0_167, %c0_168] : memref<8x72xf32, #tpu.memory_space<vmem>>, vector<8x72xf32>
    %c0_169 = arith.constant 0 : index
    %c0_170 = arith.constant 0 : index
    %301 = vector.load %arg11[%c0_169, %c0_170] : memref<8x1xf32, #tpu.memory_space<vmem>>, vector<8x1xf32>
    %c0_171 = arith.constant 0 : index
    %c0_172 = arith.constant 0 : index
    %302 = vector.load %arg12[%c0_171, %c0_172] : memref<8x1xf32, #tpu.memory_space<vmem>>, vector<8x1xf32>
    %c0_173 = arith.constant 0 : index
    %c18_174 = arith.constant 18 : index
    %303 = vector.load %arg23[%c0_173, %c18_174] : memref<16x580xf32, #tpu.memory_space<vmem>>, vector<8x128xf32>
    tpu.vector_store %arg23[%c0_173, %c18_174], %296 {strides = array<i32>} : memref<16x580xf32, #tpu.memory_space<vmem>>, vector<8x128xf32>,
    %c0_175 = arith.constant 0 : index
    %c9_176 = arith.constant 9 : index
    %304 = vector.load %arg23[%c0_175, %c9_176] : memref<16x580xf32, #tpu.memory_space<vmem>>, vector<8x128xf32>
    %305 = tpu.iota {dimensions = array<i32: 1>} : vector<1x128xi32>
    %c7_i32_177 = arith.constant 7 : i32
    %306 = vector.broadcast %c7_i32_177 : i32 to vector<1x128xi32>
    %307 = arith.andi %305, %306 : vector<1x128xi32>
    %c3_i32_178 = arith.constant 3 : i32
    %308 = vector.broadcast %c3_i32_178 : i32 to vector<1x128xi32>
    %309 = arith.shrsi %305, %308 : vector<1x128xi32>
    %c7_i32_179 = arith.constant 7 : i32
    %310 = vector.broadcast %c7_i32_179 : i32 to vector<1x128xi32>
    %311 = arith.andi %309, %310 : vector<1x128xi32>
    %c1_i32_180 = arith.constant 1 : i32
    %312 = vector.broadcast %c1_i32_180 : i32 to vector<1x128xi32>
    %313 = arith.cmpi sge, %311, %312 : vector<1x128xi32>
    %c1_i32_181 = arith.constant 1 : i32
    %314 = vector.broadcast %c1_i32_181 : i32 to vector<1x128xi32>
    %315 = arith.cmpi sge, %307, %314 : vector<1x128xi32>
    %316 = arith.andi %313, %315 : vector<1x128xi1>
    %cst_182 = arith.constant 1.000000e+00 : f32
    %cst_183 = arith.constant 0.000000e+00 : f32
    %317 = vector.broadcast %cst_182 : f32 to vector<1x128xf32>
    %318 = vector.broadcast %cst_183 : f32 to vector<1x128xf32>
    %319 = arith.select %316, %317, %318 : vector<1x128xi1>, vector<1x128xf32>
    %320 = vector.broadcast %319 : vector<1x128xf32> to vector<8x128xf32>
    %321 = arith.mulf %304, %320 : vector<8x128xf32>
    %c0_184 = arith.constant 0 : index
    %c0_185 = arith.constant 0 : index
    %322 = vector.load %arg24[%c0_184, %c0_185] : memref<144x512xf32, #tpu.memory_space<vmem>>, vector<8x128xf32>
    tpu.vector_store %arg24[%c0_184, %c0_185], %321 {strides = array<i32>} : memref<144x512xf32, #tpu.memory_space<vmem>>, vector<8x128xf32>,
    %c0_186 = arith.constant 0 : index
    %c10 = arith.constant 10 : index
    %323 = vector.load %arg23[%c0_186, %c10] : memref<16x580xf32, #tpu.memory_space<vmem>>, vector<8x128xf32>
    %c1_i32_187 = arith.constant 1 : i32
    %324 = vector.broadcast %c1_i32_187 : i32 to vector<1x128xi32>
    %325 = arith.cmpi sge, %311, %324 : vector<1x128xi32>
    %cst_188 = arith.constant 1.000000e+00 : f32
    %cst_189 = arith.constant 0.000000e+00 : f32
    %326 = vector.broadcast %cst_188 : f32 to vector<1x128xf32>
    %327 = vector.broadcast %cst_189 : f32 to vector<1x128xf32>
    %328 = arith.select %325, %326, %327 : vector<1x128xi1>, vector<1x128xf32>
    %329 = vector.broadcast %328 : vector<1x128xf32> to vector<8x128xf32>
    %330 = arith.mulf %323, %329 : vector<8x128xf32>
    %c8_190 = arith.constant 8 : index
    %c0_191 = arith.constant 0 : index
    %331 = vector.load %arg24[%c8_190, %c0_191] : memref<144x512xf32, #tpu.memory_space<vmem>>, vector<8x128xf32>
    tpu.vector_store %arg24[%c8_190, %c0_191], %330 {strides = array<i32>} : memref<144x512xf32, #tpu.memory_space<vmem>>, vector<8x128xf32>,
    %c0_192 = arith.constant 0 : index
    %c11 = arith.constant 11 : index
    %332 = vector.load %arg23[%c0_192, %c11] : memref<16x580xf32, #tpu.memory_space<vmem>>, vector<8x128xf32>
    %c1_i32_193 = arith.constant 1 : i32
    %333 = vector.broadcast %c1_i32_193 : i32 to vector<1x128xi32>
    %334 = arith.cmpi sge, %311, %333 : vector<1x128xi32>
    %c7_i32_194 = arith.constant 7 : i32
    %335 = vector.broadcast %c7_i32_194 : i32 to vector<1x128xi32>
    %336 = arith.cmpi slt, %307, %335 : vector<1x128xi32>
    %337 = arith.andi %334, %336 : vector<1x128xi1>
    %cst_195 = arith.constant 1.000000e+00 : f32
    %cst_196 = arith.constant 0.000000e+00 : f32
    %338 = vector.broadcast %cst_195 : f32 to vector<1x128xf32>
    %339 = vector.broadcast %cst_196 : f32 to vector<1x128xf32>
    %340 = arith.select %337, %338, %339 : vector<1x128xi1>, vector<1x128xf32>
    %341 = vector.broadcast %340 : vector<1x128xf32> to vector<8x128xf32>
    %342 = arith.mulf %332, %341 : vector<8x128xf32>
    %c16_197 = arith.constant 16 : index
    %c0_198 = arith.constant 0 : index
    %343 = vector.load %arg24[%c16_197, %c0_198] : memref<144x512xf32, #tpu.memory_space<vmem>>, vector<8x128xf32>
    tpu.vector_store %arg24[%c16_197, %c0_198], %342 {strides = array<i32>} : memref<144x512xf32, #tpu.memory_space<vmem>>, vector<8x128xf32>,
    %c0_199 = arith.constant 0 : index
    %c17_200 = arith.constant 17 : index
    %344 = vector.load %arg23[%c0_199, %c17_200] : memref<16x580xf32, #tpu.memory_space<vmem>>, vector<8x128xf32>
    %c1_i32_201 = arith.constant 1 : i32
    %345 = vector.broadcast %c1_i32_201 : i32 to vector<1x128xi32>
    %346 = arith.cmpi sge, %307, %345 : vector<1x128xi32>
    %cst_202 = arith.constant 1.000000e+00 : f32
    %cst_203 = arith.constant 0.000000e+00 : f32
    %347 = vector.broadcast %cst_202 : f32 to vector<1x128xf32>
    %348 = vector.broadcast %cst_203 : f32 to vector<1x128xf32>
    %349 = arith.select %346, %347, %348 : vector<1x128xi1>, vector<1x128xf32>
    %350 = vector.broadcast %349 : vector<1x128xf32> to vector<8x128xf32>
    %351 = arith.mulf %344, %350 : vector<8x128xf32>
    %c24_204 = arith.constant 24 : index
    %c0_205 = arith.constant 0 : index
    %352 = vector.load %arg24[%c24_204, %c0_205] : memref<144x512xf32, #tpu.memory_space<vmem>>, vector<8x128xf32>
    tpu.vector_store %arg24[%c24_204, %c0_205], %351 {strides = array<i32>} : memref<144x512xf32, #tpu.memory_space<vmem>>, vector<8x128xf32>,
    %c0_206 = arith.constant 0 : index
    %c18_207 = arith.constant 18 : index
    %353 = vector.load %arg23[%c0_206, %c18_207] : memref<16x580xf32, #tpu.memory_space<vmem>>, vector<8x128xf32>
    %c32_208 = arith.constant 32 : index
    %c0_209 = arith.constant 0 : index
    %354 = vector.load %arg24[%c32_208, %c0_209] : memref<144x512xf32, #tpu.memory_space<vmem>>, vector<8x128xf32>
    tpu.vector_store %arg24[%c32_208, %c0_209], %353 {strides = array<i32>} : memref<144x512xf32, #tpu.memory_space<vmem>>, vector<8x128xf32>,
    %c0_210 = arith.constant 0 : index
    %c19_211 = arith.constant 19 : index
    %355 = vector.load %arg23[%c0_210, %c19_211] : memref<16x580xf32, #tpu.memory_space<vmem>>, vector<8x128xf32>
    %c7_i32_212 = arith.constant 7 : i32
    %356 = vector.broadcast %c7_i32_212 : i32 to vector<1x128xi32>
    %357 = arith.cmpi slt, %307, %356 : vector<1x128xi32>
    %cst_213 = arith.constant 1.000000e+00 : f32
    %cst_214 = arith.constant 0.000000e+00 : f32
    %358 = vector.broadcast %cst_213 : f32 to vector<1x128xf32>
    %359 = vector.broadcast %cst_214 : f32 to vector<1x128xf32>
    %360 = arith.select %357, %358, %359 : vector<1x128xi1>, vector<1x128xf32>
    %361 = vector.broadcast %360 : vector<1x128xf32> to vector<8x128xf32>
    %362 = arith.mulf %355, %361 : vector<8x128xf32>
    %c40_215 = arith.constant 40 : index
    %c0_216 = arith.constant 0 : index
    %363 = vector.load %arg24[%c40_215, %c0_216] : memref<144x512xf32, #tpu.memory_space<vmem>>, vector<8x128xf32>
    tpu.vector_store %arg24[%c40_215, %c0_216], %362 {strides = array<i32>} : memref<144x512xf32, #tpu.memory_space<vmem>>, vector<8x128xf32>,
    %c0_217 = arith.constant 0 : index
    %c25 = arith.constant 25 : index
    %364 = vector.load %arg23[%c0_217, %c25] : memref<16x580xf32, #tpu.memory_space<vmem>>, vector<8x128xf32>
    %c7_i32_218 = arith.constant 7 : i32
    %365 = vector.broadcast %c7_i32_218 : i32 to vector<1x128xi32>
    %366 = arith.cmpi slt, %311, %365 : vector<1x128xi32>
    %c1_i32_219 = arith.constant 1 : i32
    %367 = vector.broadcast %c1_i32_219 : i32 to vector<1x128xi32>
    %368 = arith.cmpi sge, %307, %367 : vector<1x128xi32>
    %369 = arith.andi %366, %368 : vector<1x128xi1>
    %cst_220 = arith.constant 1.000000e+00 : f32
    %cst_221 = arith.constant 0.000000e+00 : f32
    %370 = vector.broadcast %cst_220 : f32 to vector<1x128xf32>
    %371 = vector.broadcast %cst_221 : f32 to vector<1x128xf32>
    %372 = arith.select %369, %370, %371 : vector<1x128xi1>, vector<1x128xf32>
    %373 = vector.broadcast %372 : vector<1x128xf32> to vector<8x128xf32>
    %374 = arith.mulf %364, %373 : vector<8x128xf32>
    %c48_222 = arith.constant 48 : index
    %c0_223 = arith.constant 0 : index
    %375 = vector.load %arg24[%c48_222, %c0_223] : memref<144x512xf32, #tpu.memory_space<vmem>>, vector<8x128xf32>
    tpu.vector_store %arg24[%c48_222, %c0_223], %374 {strides = array<i32>} : memref<144x512xf32, #tpu.memory_space<vmem>>, vector<8x128xf32>,
    %c0_224 = arith.constant 0 : index
    %c26 = arith.constant 26 : index
    %376 = vector.load %arg23[%c0_224, %c26] : memref<16x580xf32, #tpu.memory_space<vmem>>, vector<8x128xf32>
    %c7_i32_225 = arith.constant 7 : i32
    %377 = vector.broadcast %c7_i32_225 : i32 to vector<1x128xi32>
    %378 = arith.cmpi slt, %311, %377 : vector<1x128xi32>
    %cst_226 = arith.constant 1.000000e+00 : f32
    %cst_227 = arith.constant 0.000000e+00 : f32
    %379 = vector.broadcast %cst_226 : f32 to vector<1x128xf32>
    %380 = vector.broadcast %cst_227 : f32 to vector<1x128xf32>
    %381 = arith.select %378, %379, %380 : vector<1x128xi1>, vector<1x128xf32>
    %382 = vector.broadcast %381 : vector<1x128xf32> to vector<8x128xf32>
    %383 = arith.mulf %376, %382 : vector<8x128xf32>
    %c56_228 = arith.constant 56 : index
    %c0_229 = arith.constant 0 : index
    %384 = vector.load %arg24[%c56_228, %c0_229] : memref<144x512xf32, #tpu.memory_space<vmem>>, vector<8x128xf32>
    tpu.vector_store %arg24[%c56_228, %c0_229], %383 {strides = array<i32>} : memref<144x512xf32, #tpu.memory_space<vmem>>, vector<8x128xf32>,
    %c0_230 = arith.constant 0 : index
    %c27 = arith.constant 27 : index
    %385 = vector.load %arg23[%c0_230, %c27] : memref<16x580xf32, #tpu.memory_space<vmem>>, vector<8x128xf32>
    %c7_i32_231 = arith.constant 7 : i32
    %386 = vector.broadcast %c7_i32_231 : i32 to vector<1x128xi32>
    %387 = arith.cmpi slt, %311, %386 : vector<1x128xi32>
    %c7_i32_232 = arith.constant 7 : i32
    %388 = vector.broadcast %c7_i32_232 : i32 to vector<1x128xi32>
    %389 = arith.cmpi slt, %307, %388 : vector<1x128xi32>
    %390 = arith.andi %387, %389 : vector<1x128xi1>
    %cst_233 = arith.constant 1.000000e+00 : f32
    %cst_234 = arith.constant 0.000000e+00 : f32
    %391 = vector.broadcast %cst_233 : f32 to vector<1x128xf32>
    %392 = vector.broadcast %cst_234 : f32 to vector<1x128xf32>
    %393 = arith.select %390, %391, %392 : vector<1x128xi1>, vector<1x128xf32>
    %394 = vector.broadcast %393 : vector<1x128xf32> to vector<8x128xf32>
    %395 = arith.mulf %385, %394 : vector<8x128xf32>
    %c64_235 = arith.constant 64 : index
    %c0_236 = arith.constant 0 : index
    %396 = vector.load %arg24[%c64_235, %c0_236] : memref<144x512xf32, #tpu.memory_space<vmem>>, vector<8x128xf32>
    tpu.vector_store %arg24[%c64_235, %c0_236], %395 {strides = array<i32>} : memref<144x512xf32, #tpu.memory_space<vmem>>, vector<8x128xf32>,
    %c0_237 = arith.constant 0 : index
    %c0_238 = arith.constant 0 : index
    %397 = vector.load %arg24[%c0_237, %c0_238] : memref<144x512xf32, #tpu.memory_space<vmem>>, vector<72x128xf32>
    %cst_239 = arith.constant dense<0.000000e+00> : vector<8x128xf32>
    %398 = tpu.matmul %297, %397, %cst_239 {dimension_numbers = #tpu.dot_dimension_numbers<[1], [0], [0], [1], [0, 0, 1, 1], [], []>} : vector<8x72xf32>, vector<72x128xf32>, vector<8x128xf32> -> vector<8x128xf32>
    %cst_240 = arith.constant dense<0.000000e+00> : vector<8xf32>
    %399 = vector.multi_reduction <add>, %398, %cst_240 [1] : vector<8x128xf32> to vector<8xf32>
    %400 = vector.shape_cast %399 : vector<8xf32> to vector<8x1xf32>
    %cst_241 = arith.constant 7.812500e-03 : f32
    %401 = vector.broadcast %cst_241 : f32 to vector<8x1xf32>
    %402 = arith.mulf %400, %401 : vector<8x1xf32>
    %403 = vector.broadcast %402 : vector<8x1xf32> to vector<8x128xf32>
    %404 = arith.subf %398, %403 : vector<8x128xf32>
    %405 = arith.mulf %404, %404 : vector<8x128xf32>
    %cst_242 = arith.constant dense<0.000000e+00> : vector<8xf32>
    %406 = vector.multi_reduction <add>, %405, %cst_242 [1] : vector<8x128xf32> to vector<8xf32>
    %407 = vector.shape_cast %406 : vector<8xf32> to vector<8x1xf32>
    %cst_243 = arith.constant 7.812500e-03 : f32
    %408 = vector.broadcast %cst_243 : f32 to vector<8x1xf32>
    %409 = arith.mulf %407, %408 : vector<8x1xf32>
    %cst_244 = arith.constant 9.99999974E-6 : f32
    %410 = vector.broadcast %cst_244 : f32 to vector<8x1xf32>
    %411 = arith.addf %409, %410 : vector<8x1xf32>
    %412 = math.rsqrt %411 : vector<8x1xf32>
    %413 = arith.mulf %412, %298 : vector<8x1xf32>
    %414 = vector.broadcast %413 : vector<8x1xf32> to vector<8x128xf32>
    %415 = arith.mulf %404, %414 : vector<8x128xf32>
    %416 = vector.broadcast %299 : vector<8x1xf32> to vector<8x128xf32>
    %417 = arith.addf %415, %416 : vector<8x128xf32>
    %cst_245 = arith.constant 0.000000e+00 : f32
    %418 = vector.broadcast %cst_245 : f32 to vector<8x128xf32>
    %419 = arith.subf %418, %417 : vector<8x128xf32>
    %420 = math.exp %419 : vector<8x128xf32>
    %cst_246 = arith.constant 1.000000e+00 : f32
    %421 = vector.broadcast %cst_246 : f32 to vector<8x128xf32>
    %422 = arith.addf %421, %420 : vector<8x128xf32>
    %cst_247 = arith.constant 1.000000e+00 : f32
    %423 = vector.broadcast %cst_247 : f32 to vector<8x128xf32>
    %424 = arith.divf %423, %422 : vector<8x128xf32>
    %425 = arith.mulf %417, %424 : vector<8x128xf32>
    %c0_248 = arith.constant 0 : index
    %c18_249 = arith.constant 18 : index
    %426 = vector.load %arg23[%c0_248, %c18_249] : memref<16x580xf32, #tpu.memory_space<vmem>>, vector<8x128xf32>
    tpu.vector_store %arg23[%c0_248, %c18_249], %425 {strides = array<i32>} : memref<16x580xf32, #tpu.memory_space<vmem>>, vector<8x128xf32>,
    %c0_250 = arith.constant 0 : index
    %c9_251 = arith.constant 9 : index
    %427 = vector.load %arg23[%c0_250, %c9_251] : memref<16x580xf32, #tpu.memory_space<vmem>>, vector<8x128xf32>
    %428 = vector.broadcast %319 : vector<1x128xf32> to vector<8x128xf32>
    %429 = arith.mulf %427, %428 : vector<8x128xf32>
    %c0_252 = arith.constant 0 : index
    %c0_253 = arith.constant 0 : index
    %430 = vector.load %arg24[%c0_252, %c0_253] : memref<144x512xf32, #tpu.memory_space<vmem>>, vector<8x128xf32>
    tpu.vector_store %arg24[%c0_252, %c0_253], %429 {strides = array<i32>} : memref<144x512xf32, #tpu.memory_space<vmem>>, vector<8x128xf32>,
    %c0_254 = arith.constant 0 : index
    %c10_255 = arith.constant 10 : index
    %431 = vector.load %arg23[%c0_254, %c10_255] : memref<16x580xf32, #tpu.memory_space<vmem>>, vector<8x128xf32>
    %432 = vector.broadcast %328 : vector<1x128xf32> to vector<8x128xf32>
    %433 = arith.mulf %431, %432 : vector<8x128xf32>
    %c8_256 = arith.constant 8 : index
    %c0_257 = arith.constant 0 : index
    %434 = vector.load %arg24[%c8_256, %c0_257] : memref<144x512xf32, #tpu.memory_space<vmem>>, vector<8x128xf32>
    tpu.vector_store %arg24[%c8_256, %c0_257], %433 {strides = array<i32>} : memref<144x512xf32, #tpu.memory_space<vmem>>, vector<8x128xf32>,
    %c0_258 = arith.constant 0 : index
    %c11_259 = arith.constant 11 : index
    %435 = vector.load %arg23[%c0_258, %c11_259] : memref<16x580xf32, #tpu.memory_space<vmem>>, vector<8x128xf32>
    %436 = vector.broadcast %340 : vector<1x128xf32> to vector<8x128xf32>
    %437 = arith.mulf %435, %436 : vector<8x128xf32>
    %c16_260 = arith.constant 16 : index
    %c0_261 = arith.constant 0 : index
    %438 = vector.load %arg24[%c16_260, %c0_261] : memref<144x512xf32, #tpu.memory_space<vmem>>, vector<8x128xf32>
    tpu.vector_store %arg24[%c16_260, %c0_261], %437 {strides = array<i32>} : memref<144x512xf32, #tpu.memory_space<vmem>>, vector<8x128xf32>,
    %c0_262 = arith.constant 0 : index
    %c17_263 = arith.constant 17 : index
    %439 = vector.load %arg23[%c0_262, %c17_263] : memref<16x580xf32, #tpu.memory_space<vmem>>, vector<8x128xf32>
    %440 = vector.broadcast %349 : vector<1x128xf32> to vector<8x128xf32>
    %441 = arith.mulf %439, %440 : vector<8x128xf32>
    %c24_264 = arith.constant 24 : index
    %c0_265 = arith.constant 0 : index
    %442 = vector.load %arg24[%c24_264, %c0_265] : memref<144x512xf32, #tpu.memory_space<vmem>>, vector<8x128xf32>
    tpu.vector_store %arg24[%c24_264, %c0_265], %441 {strides = array<i32>} : memref<144x512xf32, #tpu.memory_space<vmem>>, vector<8x128xf32>,
    %c0_266 = arith.constant 0 : index
    %c18_267 = arith.constant 18 : index
    %443 = vector.load %arg23[%c0_266, %c18_267] : memref<16x580xf32, #tpu.memory_space<vmem>>, vector<8x128xf32>
    %c32_268 = arith.constant 32 : index
    %c0_269 = arith.constant 0 : index
    %444 = vector.load %arg24[%c32_268, %c0_269] : memref<144x512xf32, #tpu.memory_space<vmem>>, vector<8x128xf32>
    tpu.vector_store %arg24[%c32_268, %c0_269], %443 {strides = array<i32>} : memref<144x512xf32, #tpu.memory_space<vmem>>, vector<8x128xf32>,
    %c0_270 = arith.constant 0 : index
    %c19_271 = arith.constant 19 : index
    %445 = vector.load %arg23[%c0_270, %c19_271] : memref<16x580xf32, #tpu.memory_space<vmem>>, vector<8x128xf32>
    %446 = vector.broadcast %360 : vector<1x128xf32> to vector<8x128xf32>
    %447 = arith.mulf %445, %446 : vector<8x128xf32>
    %c40_272 = arith.constant 40 : index
    %c0_273 = arith.constant 0 : index
    %448 = vector.load %arg24[%c40_272, %c0_273] : memref<144x512xf32, #tpu.memory_space<vmem>>, vector<8x128xf32>
    tpu.vector_store %arg24[%c40_272, %c0_273], %447 {strides = array<i32>} : memref<144x512xf32, #tpu.memory_space<vmem>>, vector<8x128xf32>,
    %c0_274 = arith.constant 0 : index
    %c25_275 = arith.constant 25 : index
    %449 = vector.load %arg23[%c0_274, %c25_275] : memref<16x580xf32, #tpu.memory_space<vmem>>, vector<8x128xf32>
    %450 = vector.broadcast %372 : vector<1x128xf32> to vector<8x128xf32>
    %451 = arith.mulf %449, %450 : vector<8x128xf32>
    %c48_276 = arith.constant 48 : index
    %c0_277 = arith.constant 0 : index
    %452 = vector.load %arg24[%c48_276, %c0_277] : memref<144x512xf32, #tpu.memory_space<vmem>>, vector<8x128xf32>
    tpu.vector_store %arg24[%c48_276, %c0_277], %451 {strides = array<i32>} : memref<144x512xf32, #tpu.memory_space<vmem>>, vector<8x128xf32>,
    %c0_278 = arith.constant 0 : index
    %c26_279 = arith.constant 26 : index
    %453 = vector.load %arg23[%c0_278, %c26_279] : memref<16x580xf32, #tpu.memory_space<vmem>>, vector<8x128xf32>
    %454 = vector.broadcast %381 : vector<1x128xf32> to vector<8x128xf32>
    %455 = arith.mulf %453, %454 : vector<8x128xf32>
    %c56_280 = arith.constant 56 : index
    %c0_281 = arith.constant 0 : index
    %456 = vector.load %arg24[%c56_280, %c0_281] : memref<144x512xf32, #tpu.memory_space<vmem>>, vector<8x128xf32>
    tpu.vector_store %arg24[%c56_280, %c0_281], %455 {strides = array<i32>} : memref<144x512xf32, #tpu.memory_space<vmem>>, vector<8x128xf32>,
    %c0_282 = arith.constant 0 : index
    %c27_283 = arith.constant 27 : index
    %457 = vector.load %arg23[%c0_282, %c27_283] : memref<16x580xf32, #tpu.memory_space<vmem>>, vector<8x128xf32>
    %458 = vector.broadcast %393 : vector<1x128xf32> to vector<8x128xf32>
    %459 = arith.mulf %457, %458 : vector<8x128xf32>
    %c64_284 = arith.constant 64 : index
    %c0_285 = arith.constant 0 : index
    %460 = vector.load %arg24[%c64_284, %c0_285] : memref<144x512xf32, #tpu.memory_space<vmem>>, vector<8x128xf32>
    tpu.vector_store %arg24[%c64_284, %c0_285], %459 {strides = array<i32>} : memref<144x512xf32, #tpu.memory_space<vmem>>, vector<8x128xf32>,
    %c0_286 = arith.constant 0 : index
    %c0_287 = arith.constant 0 : index
    %461 = vector.load %arg24[%c0_286, %c0_287] : memref<144x512xf32, #tpu.memory_space<vmem>>, vector<72x128xf32>
    %cst_288 = arith.constant dense<0.000000e+00> : vector<8x128xf32>
    %462 = tpu.matmul %300, %461, %cst_288 {dimension_numbers = #tpu.dot_dimension_numbers<[1], [0], [0], [1], [0, 0, 1, 1], [], []>} : vector<8x72xf32>, vector<72x128xf32>, vector<8x128xf32> -> vector<8x128xf32>
    %cst_289 = arith.constant dense<0.000000e+00> : vector<8xf32>
    %463 = vector.multi_reduction <add>, %462, %cst_289 [1] : vector<8x128xf32> to vector<8xf32>
    %464 = vector.shape_cast %463 : vector<8xf32> to vector<8x1xf32>
    %cst_290 = arith.constant 7.812500e-03 : f32
    %465 = vector.broadcast %cst_290 : f32 to vector<8x1xf32>
    %466 = arith.mulf %464, %465 : vector<8x1xf32>
    %467 = vector.broadcast %466 : vector<8x1xf32> to vector<8x128xf32>
    %468 = arith.subf %462, %467 : vector<8x128xf32>
    %469 = arith.mulf %468, %468 : vector<8x128xf32>
    %cst_291 = arith.constant dense<0.000000e+00> : vector<8xf32>
    %470 = vector.multi_reduction <add>, %469, %cst_291 [1] : vector<8x128xf32> to vector<8xf32>
    %471 = vector.shape_cast %470 : vector<8xf32> to vector<8x1xf32>
    %cst_292 = arith.constant 7.812500e-03 : f32
    %472 = vector.broadcast %cst_292 : f32 to vector<8x1xf32>
    %473 = arith.mulf %471, %472 : vector<8x1xf32>
    %cst_293 = arith.constant 9.99999974E-6 : f32
    %474 = vector.broadcast %cst_293 : f32 to vector<8x1xf32>
    %475 = arith.addf %473, %474 : vector<8x1xf32>
    %476 = math.rsqrt %475 : vector<8x1xf32>
    %477 = arith.mulf %476, %301 : vector<8x1xf32>
    %478 = vector.broadcast %477 : vector<8x1xf32> to vector<8x128xf32>
    %479 = arith.mulf %468, %478 : vector<8x128xf32>
    %480 = vector.broadcast %302 : vector<8x1xf32> to vector<8x128xf32>
    %481 = arith.addf %479, %480 : vector<8x128xf32>
    %482 = arith.addf %481, %296 : vector<8x128xf32>
    %cst_294 = arith.constant 0.000000e+00 : f32
    %483 = vector.broadcast %cst_294 : f32 to vector<8x128xf32>
    %484 = arith.subf %483, %482 : vector<8x128xf32>
    %485 = math.exp %484 : vector<8x128xf32>
    %cst_295 = arith.constant 1.000000e+00 : f32
    %486 = vector.broadcast %cst_295 : f32 to vector<8x128xf32>
    %487 = arith.addf %486, %485 : vector<8x128xf32>
    %cst_296 = arith.constant 1.000000e+00 : f32
    %488 = vector.broadcast %cst_296 : f32 to vector<8x128xf32>
    %489 = arith.divf %488, %487 : vector<8x128xf32>
    %490 = arith.mulf %482, %489 : vector<8x128xf32>
    %c0_297 = arith.constant 0 : index
    %c0_298 = arith.constant 0 : index
    %491 = vector.load %arg13[%c0_297, %c0_298] : memref<16x128xf32, #tpu.memory_space<vmem>>, vector<16x128xf32>
    %c0_299 = arith.constant 0 : index
    %c0_300 = arith.constant 0 : index
    %492 = vector.load %arg14[%c0_299, %c0_300] : memref<16x1xf32, #tpu.memory_space<vmem>>, vector<16x1xf32>
    %c0_301 = arith.constant 0 : index
    %c0_302 = arith.constant 0 : index
    %493 = vector.load %arg15[%c0_301, %c0_302] : memref<16x1xf32, #tpu.memory_space<vmem>>, vector<16x1xf32>
    %c0_303 = arith.constant 0 : index
    %c18_304 = arith.constant 18 : index
    %494 = vector.load %arg23[%c0_303, %c18_304] : memref<16x580xf32, #tpu.memory_space<vmem>>, vector<8x128xf32>
    tpu.vector_store %arg23[%c0_303, %c18_304], %490 {strides = array<i32>} : memref<16x580xf32, #tpu.memory_space<vmem>>, vector<8x128xf32>,
    %c0_305 = arith.constant 0 : index
    %c9_306 = arith.constant 9 : index
    %495 = vector.load %arg23[%c0_305, %c9_306] : memref<16x580xf32, #tpu.memory_space<vmem>>, vector<8x128xf32>
    %496 = vector.broadcast %319 : vector<1x128xf32> to vector<8x128xf32>
    %497 = arith.mulf %495, %496 : vector<8x128xf32>
    %c0_307 = arith.constant 0 : index
    %c0_308 = arith.constant 0 : index
    %498 = vector.load %arg24[%c0_307, %c0_308] : memref<144x512xf32, #tpu.memory_space<vmem>>, vector<8x128xf32>
    tpu.vector_store %arg24[%c0_307, %c0_308], %497 {strides = array<i32>} : memref<144x512xf32, #tpu.memory_space<vmem>>, vector<8x128xf32>,
    %c0_309 = arith.constant 0 : index
    %c10_310 = arith.constant 10 : index
    %499 = vector.load %arg23[%c0_309, %c10_310] : memref<16x580xf32, #tpu.memory_space<vmem>>, vector<8x128xf32>
    %500 = vector.broadcast %328 : vector<1x128xf32> to vector<8x128xf32>
    %501 = arith.mulf %499, %500 : vector<8x128xf32>
    %c8_311 = arith.constant 8 : index
    %c0_312 = arith.constant 0 : index
    %502 = vector.load %arg24[%c8_311, %c0_312] : memref<144x512xf32, #tpu.memory_space<vmem>>, vector<8x128xf32>
    tpu.vector_store %arg24[%c8_311, %c0_312], %501 {strides = array<i32>} : memref<144x512xf32, #tpu.memory_space<vmem>>, vector<8x128xf32>,
    %c0_313 = arith.constant 0 : index
    %c11_314 = arith.constant 11 : index
    %503 = vector.load %arg23[%c0_313, %c11_314] : memref<16x580xf32, #tpu.memory_space<vmem>>, vector<8x128xf32>
    %504 = vector.broadcast %340 : vector<1x128xf32> to vector<8x128xf32>
    %505 = arith.mulf %503, %504 : vector<8x128xf32>
    %c16_315 = arith.constant 16 : index
    %c0_316 = arith.constant 0 : index
    %506 = vector.load %arg24[%c16_315, %c0_316] : memref<144x512xf32, #tpu.memory_space<vmem>>, vector<8x128xf32>
    tpu.vector_store %arg24[%c16_315, %c0_316], %505 {strides = array<i32>} : memref<144x512xf32, #tpu.memory_space<vmem>>, vector<8x128xf32>,
    %c0_317 = arith.constant 0 : index
    %c12_318 = arith.constant 12 : index
    %507 = vector.load %arg23[%c0_317, %c12_318] : memref<16x580xf32, #tpu.memory_space<vmem>>, vector<8x128xf32>
    %c1_i32_319 = arith.constant 1 : i32
    %508 = vector.broadcast %c1_i32_319 : i32 to vector<1x128xi32>
    %509 = arith.cmpi sge, %311, %508 : vector<1x128xi32>
    %c6_i32_320 = arith.constant 6 : i32
    %510 = vector.broadcast %c6_i32_320 : i32 to vector<1x128xi32>
    %511 = arith.cmpi slt, %307, %510 : vector<1x128xi32>
    %512 = arith.andi %509, %511 : vector<1x128xi1>
    %cst_321 = arith.constant 1.000000e+00 : f32
    %cst_322 = arith.constant 0.000000e+00 : f32
    %513 = vector.broadcast %cst_321 : f32 to vector<1x128xf32>
    %514 = vector.broadcast %cst_322 : f32 to vector<1x128xf32>
    %515 = arith.select %512, %513, %514 : vector<1x128xi1>, vector<1x128xf32>
    %516 = vector.broadcast %515 : vector<1x128xf32> to vector<8x128xf32>
    %517 = arith.mulf %507, %516 : vector<8x128xf32>
    %c24_323 = arith.constant 24 : index
    %c0_324 = arith.constant 0 : index
    %518 = vector.load %arg24[%c24_323, %c0_324] : memref<144x512xf32, #tpu.memory_space<vmem>>, vector<8x128xf32>
    tpu.vector_store %arg24[%c24_323, %c0_324], %517 {strides = array<i32>} : memref<144x512xf32, #tpu.memory_space<vmem>>, vector<8x128xf32>,
    %c0_325 = arith.constant 0 : index
    %c17_326 = arith.constant 17 : index
    %519 = vector.load %arg23[%c0_325, %c17_326] : memref<16x580xf32, #tpu.memory_space<vmem>>, vector<8x128xf32>
    %520 = vector.broadcast %349 : vector<1x128xf32> to vector<8x128xf32>
    %521 = arith.mulf %519, %520 : vector<8x128xf32>
    %c32_327 = arith.constant 32 : index
    %c0_328 = arith.constant 0 : index
    %522 = vector.load %arg24[%c32_327, %c0_328] : memref<144x512xf32, #tpu.memory_space<vmem>>, vector<8x128xf32>
    tpu.vector_store %arg24[%c32_327, %c0_328], %521 {strides = array<i32>} : memref<144x512xf32, #tpu.memory_space<vmem>>, vector<8x128xf32>,
    %c0_329 = arith.constant 0 : index
    %c18_330 = arith.constant 18 : index
    %523 = vector.load %arg23[%c0_329, %c18_330] : memref<16x580xf32, #tpu.memory_space<vmem>>, vector<8x128xf32>
    %c40_331 = arith.constant 40 : index
    %c0_332 = arith.constant 0 : index
    %524 = vector.load %arg24[%c40_331, %c0_332] : memref<144x512xf32, #tpu.memory_space<vmem>>, vector<8x128xf32>
    tpu.vector_store %arg24[%c40_331, %c0_332], %523 {strides = array<i32>} : memref<144x512xf32, #tpu.memory_space<vmem>>, vector<8x128xf32>,
    %c0_333 = arith.constant 0 : index
    %c19_334 = arith.constant 19 : index
    %525 = vector.load %arg23[%c0_333, %c19_334] : memref<16x580xf32, #tpu.memory_space<vmem>>, vector<8x128xf32>
    %526 = vector.broadcast %360 : vector<1x128xf32> to vector<8x128xf32>
    %527 = arith.mulf %525, %526 : vector<8x128xf32>
    %c48_335 = arith.constant 48 : index
    %c0_336 = arith.constant 0 : index
    %528 = vector.load %arg24[%c48_335, %c0_336] : memref<144x512xf32, #tpu.memory_space<vmem>>, vector<8x128xf32>
    tpu.vector_store %arg24[%c48_335, %c0_336], %527 {strides = array<i32>} : memref<144x512xf32, #tpu.memory_space<vmem>>, vector<8x128xf32>,
    %c0_337 = arith.constant 0 : index
    %c20_338 = arith.constant 20 : index
    %529 = vector.load %arg23[%c0_337, %c20_338] : memref<16x580xf32, #tpu.memory_space<vmem>>, vector<8x128xf32>
    %c6_i32_339 = arith.constant 6 : i32
    %530 = vector.broadcast %c6_i32_339 : i32 to vector<1x128xi32>
    %531 = arith.cmpi slt, %307, %530 : vector<1x128xi32>
    %cst_340 = arith.constant 1.000000e+00 : f32
    %cst_341 = arith.constant 0.000000e+00 : f32
    %532 = vector.broadcast %cst_340 : f32 to vector<1x128xf32>
    %533 = vector.broadcast %cst_341 : f32 to vector<1x128xf32>
    %534 = arith.select %531, %532, %533 : vector<1x128xi1>, vector<1x128xf32>
    %535 = vector.broadcast %534 : vector<1x128xf32> to vector<8x128xf32>
    %536 = arith.mulf %529, %535 : vector<8x128xf32>
    %c56_342 = arith.constant 56 : index
    %c0_343 = arith.constant 0 : index
    %537 = vector.load %arg24[%c56_342, %c0_343] : memref<144x512xf32, #tpu.memory_space<vmem>>, vector<8x128xf32>
    tpu.vector_store %arg24[%c56_342, %c0_343], %536 {strides = array<i32>} : memref<144x512xf32, #tpu.memory_space<vmem>>, vector<8x128xf32>,
    %c0_344 = arith.constant 0 : index
    %c25_345 = arith.constant 25 : index
    %538 = vector.load %arg23[%c0_344, %c25_345] : memref<16x580xf32, #tpu.memory_space<vmem>>, vector<8x128xf32>
    %539 = vector.broadcast %372 : vector<1x128xf32> to vector<8x128xf32>
    %540 = arith.mulf %538, %539 : vector<8x128xf32>
    %c64_346 = arith.constant 64 : index
    %c0_347 = arith.constant 0 : index
    %541 = vector.load %arg24[%c64_346, %c0_347] : memref<144x512xf32, #tpu.memory_space<vmem>>, vector<8x128xf32>
    tpu.vector_store %arg24[%c64_346, %c0_347], %540 {strides = array<i32>} : memref<144x512xf32, #tpu.memory_space<vmem>>, vector<8x128xf32>,
    %c0_348 = arith.constant 0 : index
    %c26_349 = arith.constant 26 : index
    %542 = vector.load %arg23[%c0_348, %c26_349] : memref<16x580xf32, #tpu.memory_space<vmem>>, vector<8x128xf32>
    %543 = vector.broadcast %381 : vector<1x128xf32> to vector<8x128xf32>
    %544 = arith.mulf %542, %543 : vector<8x128xf32>
    %c72_350 = arith.constant 72 : index
    %c0_351 = arith.constant 0 : index
    %545 = vector.load %arg24[%c72_350, %c0_351] : memref<144x512xf32, #tpu.memory_space<vmem>>, vector<8x128xf32>
    tpu.vector_store %arg24[%c72_350, %c0_351], %544 {strides = array<i32>} : memref<144x512xf32, #tpu.memory_space<vmem>>, vector<8x128xf32>,
    %c0_352 = arith.constant 0 : index
    %c27_353 = arith.constant 27 : index
    %546 = vector.load %arg23[%c0_352, %c27_353] : memref<16x580xf32, #tpu.memory_space<vmem>>, vector<8x128xf32>
    %547 = vector.broadcast %393 : vector<1x128xf32> to vector<8x128xf32>
    %548 = arith.mulf %546, %547 : vector<8x128xf32>
    %c80_354 = arith.constant 80 : index
    %c0_355 = arith.constant 0 : index
    %549 = vector.load %arg24[%c80_354, %c0_355] : memref<144x512xf32, #tpu.memory_space<vmem>>, vector<8x128xf32>
    tpu.vector_store %arg24[%c80_354, %c0_355], %548 {strides = array<i32>} : memref<144x512xf32, #tpu.memory_space<vmem>>, vector<8x128xf32>,
    %c0_356 = arith.constant 0 : index
    %c28 = arith.constant 28 : index
    %550 = vector.load %arg23[%c0_356, %c28] : memref<16x580xf32, #tpu.memory_space<vmem>>, vector<8x128xf32>
    %c7_i32_357 = arith.constant 7 : i32
    %551 = vector.broadcast %c7_i32_357 : i32 to vector<1x128xi32>
    %552 = arith.cmpi slt, %311, %551 : vector<1x128xi32>
    %c6_i32_358 = arith.constant 6 : i32
    %553 = vector.broadcast %c6_i32_358 : i32 to vector<1x128xi32>
    %554 = arith.cmpi slt, %307, %553 : vector<1x128xi32>
    %555 = arith.andi %552, %554 : vector<1x128xi1>
    %cst_359 = arith.constant 1.000000e+00 : f32
    %cst_360 = arith.constant 0.000000e+00 : f32
    %556 = vector.broadcast %cst_359 : f32 to vector<1x128xf32>
    %557 = vector.broadcast %cst_360 : f32 to vector<1x128xf32>
    %558 = arith.select %555, %556, %557 : vector<1x128xi1>, vector<1x128xf32>
    %559 = vector.broadcast %558 : vector<1x128xf32> to vector<8x128xf32>
    %560 = arith.mulf %550, %559 : vector<8x128xf32>
    %c88_361 = arith.constant 88 : index
    %c0_362 = arith.constant 0 : index
    %561 = vector.load %arg24[%c88_361, %c0_362] : memref<144x512xf32, #tpu.memory_space<vmem>>, vector<8x128xf32>
    tpu.vector_store %arg24[%c88_361, %c0_362], %560 {strides = array<i32>} : memref<144x512xf32, #tpu.memory_space<vmem>>, vector<8x128xf32>,
    %c0_363 = arith.constant 0 : index
    %c33_364 = arith.constant 33 : index
    %562 = vector.load %arg23[%c0_363, %c33_364] : memref<16x580xf32, #tpu.memory_space<vmem>>, vector<8x128xf32>
    %c6_i32_365 = arith.constant 6 : i32
    %563 = vector.broadcast %c6_i32_365 : i32 to vector<1x128xi32>
    %564 = arith.cmpi slt, %311, %563 : vector<1x128xi32>
    %c1_i32_366 = arith.constant 1 : i32
    %565 = vector.broadcast %c1_i32_366 : i32 to vector<1x128xi32>
    %566 = arith.cmpi sge, %307, %565 : vector<1x128xi32>
    %567 = arith.andi %564, %566 : vector<1x128xi1>
    %cst_367 = arith.constant 1.000000e+00 : f32
    %cst_368 = arith.constant 0.000000e+00 : f32
    %568 = vector.broadcast %cst_367 : f32 to vector<1x128xf32>
    %569 = vector.broadcast %cst_368 : f32 to vector<1x128xf32>
    %570 = arith.select %567, %568, %569 : vector<1x128xi1>, vector<1x128xf32>
    %571 = vector.broadcast %570 : vector<1x128xf32> to vector<8x128xf32>
    %572 = arith.mulf %562, %571 : vector<8x128xf32>
    %c96_369 = arith.constant 96 : index
    %c0_370 = arith.constant 0 : index
    %573 = vector.load %arg24[%c96_369, %c0_370] : memref<144x512xf32, #tpu.memory_space<vmem>>, vector<8x128xf32>
    tpu.vector_store %arg24[%c96_369, %c0_370], %572 {strides = array<i32>} : memref<144x512xf32, #tpu.memory_space<vmem>>, vector<8x128xf32>,
    %c0_371 = arith.constant 0 : index
    %c34_372 = arith.constant 34 : index
    %574 = vector.load %arg23[%c0_371, %c34_372] : memref<16x580xf32, #tpu.memory_space<vmem>>, vector<8x128xf32>
    %c6_i32_373 = arith.constant 6 : i32
    %575 = vector.broadcast %c6_i32_373 : i32 to vector<1x128xi32>
    %576 = arith.cmpi slt, %311, %575 : vector<1x128xi32>
    %cst_374 = arith.constant 1.000000e+00 : f32
    %cst_375 = arith.constant 0.000000e+00 : f32
    %577 = vector.broadcast %cst_374 : f32 to vector<1x128xf32>
    %578 = vector.broadcast %cst_375 : f32 to vector<1x128xf32>
    %579 = arith.select %576, %577, %578 : vector<1x128xi1>, vector<1x128xf32>
    %580 = vector.broadcast %579 : vector<1x128xf32> to vector<8x128xf32>
    %581 = arith.mulf %574, %580 : vector<8x128xf32>
    %c104_376 = arith.constant 104 : index
    %c0_377 = arith.constant 0 : index
    %582 = vector.load %arg24[%c104_376, %c0_377] : memref<144x512xf32, #tpu.memory_space<vmem>>, vector<8x128xf32>
    tpu.vector_store %arg24[%c104_376, %c0_377], %581 {strides = array<i32>} : memref<144x512xf32, #tpu.memory_space<vmem>>, vector<8x128xf32>,
    %c0_378 = arith.constant 0 : index
    %c35_379 = arith.constant 35 : index
    %583 = vector.load %arg23[%c0_378, %c35_379] : memref<16x580xf32, #tpu.memory_space<vmem>>, vector<8x128xf32>
    %c6_i32_380 = arith.constant 6 : i32
    %584 = vector.broadcast %c6_i32_380 : i32 to vector<1x128xi32>
    %585 = arith.cmpi slt, %311, %584 : vector<1x128xi32>
    %c7_i32_381 = arith.constant 7 : i32
    %586 = vector.broadcast %c7_i32_381 : i32 to vector<1x128xi32>
    %587 = arith.cmpi slt, %307, %586 : vector<1x128xi32>
    %588 = arith.andi %585, %587 : vector<1x128xi1>
    %cst_382 = arith.constant 1.000000e+00 : f32
    %cst_383 = arith.constant 0.000000e+00 : f32
    %589 = vector.broadcast %cst_382 : f32 to vector<1x128xf32>
    %590 = vector.broadcast %cst_383 : f32 to vector<1x128xf32>
    %591 = arith.select %588, %589, %590 : vector<1x128xi1>, vector<1x128xf32>
    %592 = vector.broadcast %591 : vector<1x128xf32> to vector<8x128xf32>
    %593 = arith.mulf %583, %592 : vector<8x128xf32>
    %c112_384 = arith.constant 112 : index
    %c0_385 = arith.constant 0 : index
    %594 = vector.load %arg24[%c112_384, %c0_385] : memref<144x512xf32, #tpu.memory_space<vmem>>, vector<8x128xf32>
    tpu.vector_store %arg24[%c112_384, %c0_385], %593 {strides = array<i32>} : memref<144x512xf32, #tpu.memory_space<vmem>>, vector<8x128xf32>,
    %c0_386 = arith.constant 0 : index
    %c36_387 = arith.constant 36 : index
    %595 = vector.load %arg23[%c0_386, %c36_387] : memref<16x580xf32, #tpu.memory_space<vmem>>, vector<8x128xf32>
    %c6_i32_388 = arith.constant 6 : i32
    %596 = vector.broadcast %c6_i32_388 : i32 to vector<1x128xi32>
    %597 = arith.cmpi slt, %311, %596 : vector<1x128xi32>
    %c6_i32_389 = arith.constant 6 : i32
    %598 = vector.broadcast %c6_i32_389 : i32 to vector<1x128xi32>
    %599 = arith.cmpi slt, %307, %598 : vector<1x128xi32>
    %600 = arith.andi %597, %599 : vector<1x128xi1>
    %cst_390 = arith.constant 1.000000e+00 : f32
    %cst_391 = arith.constant 0.000000e+00 : f32
    %601 = vector.broadcast %cst_390 : f32 to vector<1x128xf32>
    %602 = vector.broadcast %cst_391 : f32 to vector<1x128xf32>
    %603 = arith.select %600, %601, %602 : vector<1x128xi1>, vector<1x128xf32>
    %604 = vector.broadcast %603 : vector<1x128xf32> to vector<8x128xf32>
    %605 = arith.mulf %595, %604 : vector<8x128xf32>
    %c120_392 = arith.constant 120 : index
    %c0_393 = arith.constant 0 : index
    %606 = vector.load %arg24[%c120_392, %c0_393] : memref<144x512xf32, #tpu.memory_space<vmem>>, vector<8x128xf32>
    tpu.vector_store %arg24[%c120_392, %c0_393], %605 {strides = array<i32>} : memref<144x512xf32, #tpu.memory_space<vmem>>, vector<8x128xf32>,
    %c0_394 = arith.constant 0 : index
    %c0_395 = arith.constant 0 : index
    %607 = vector.load %arg24[%c0_394, %c0_395] : memref<144x512xf32, #tpu.memory_space<vmem>>, vector<128x128xf32>
    %cst_396 = arith.constant dense<0.000000e+00> : vector<16x128xf32>
    %608 = tpu.matmul %491, %607, %cst_396 {dimension_numbers = #tpu.dot_dimension_numbers<[1], [0], [0], [1], [0, 0, 1, 1], [], []>} : vector<16x128xf32>, vector<128x128xf32>, vector<16x128xf32> -> vector<16x128xf32>
    %609 = tpu.iota {dimensions = array<i32: 0>} : vector<128x32xi32>
    %610 = tpu.iota {dimensions = array<i32: 1>} : vector<128x32xi32>
    %c3_i32_397 = arith.constant 3 : i32
    %611 = vector.broadcast %c3_i32_397 : i32 to vector<128x32xi32>
    %612 = arith.andi %610, %611 : vector<128x32xi32>
    %c2_i32_398 = arith.constant 2 : i32
    %613 = vector.broadcast %c2_i32_398 : i32 to vector<128x32xi32>
    %614 = arith.shrsi %610, %613 : vector<128x32xi32>
    %c3_i32_399 = arith.constant 3 : i32
    %615 = vector.broadcast %c3_i32_399 : i32 to vector<128x32xi32>
    %616 = arith.andi %614, %615 : vector<128x32xi32>
    %c4_i32_400 = arith.constant 4 : i32
    %617 = vector.broadcast %c4_i32_400 : i32 to vector<128x32xi32>
    %618 = arith.shrsi %610, %617 : vector<128x32xi32>
    %c64_i32 = arith.constant 64 : i32
    %619 = vector.broadcast %c64_i32 : i32 to vector<128x32xi32>
    %620 = arith.muli %618, %619 : vector<128x32xi32>
    %c16_i32 = arith.constant 16 : i32
    %621 = vector.broadcast %c16_i32 : i32 to vector<128x32xi32>
    %622 = arith.muli %616, %621 : vector<128x32xi32>
    %623 = arith.addi %620, %622 : vector<128x32xi32>
    %c2_i32_401 = arith.constant 2 : i32
    %624 = vector.broadcast %c2_i32_401 : i32 to vector<128x32xi32>
    %625 = arith.muli %612, %624 : vector<128x32xi32>
    %626 = arith.addi %623, %625 : vector<128x32xi32>
    %627 = arith.cmpi eq, %609, %626 : vector<128x32xi32>
    %cst_402 = arith.constant 1.000000e+00 : f32
    %cst_403 = arith.constant 0.000000e+00 : f32
    %628 = vector.broadcast %cst_402 : f32 to vector<128x32xf32>
    %629 = vector.broadcast %cst_403 : f32 to vector<128x32xf32>
    %630 = arith.select %627, %628, %629 : vector<128x32xi1>, vector<128x32xf32>
    %cst_404 = arith.constant dense<0.000000e+00> : vector<16x32xf32>
    %631 = tpu.matmul %608, %630, %cst_404 {dimension_numbers = #tpu.dot_dimension_numbers<[1], [0], [0], [1], [0, 0, 1, 1], [], []>} : vector<16x128xf32>, vector<128x32xf32>, vector<16x32xf32> -> vector<16x32xf32>
    %cst_405 = arith.constant dense<0.000000e+00> : vector<16xf32>
    %632 = vector.multi_reduction <add>, %631, %cst_405 [1] : vector<16x32xf32> to vector<16xf32>
    %633 = vector.shape_cast %632 : vector<16xf32> to vector<16x1xf32>
    %cst_406 = arith.constant 3.125000e-02 : f32
    %634 = vector.broadcast %cst_406 : f32 to vector<16x1xf32>
    %635 = arith.mulf %633, %634 : vector<16x1xf32>
    %636 = vector.broadcast %635 : vector<16x1xf32> to vector<16x32xf32>
    %637 = arith.subf %631, %636 : vector<16x32xf32>
    %638 = arith.mulf %637, %637 : vector<16x32xf32>
    %cst_407 = arith.constant dense<0.000000e+00> : vector<16xf32>
    %639 = vector.multi_reduction <add>, %638, %cst_407 [1] : vector<16x32xf32> to vector<16xf32>
    %640 = vector.shape_cast %639 : vector<16xf32> to vector<16x1xf32>
    %cst_408 = arith.constant 3.125000e-02 : f32
    %641 = vector.broadcast %cst_408 : f32 to vector<16x1xf32>
    %642 = arith.mulf %640, %641 : vector<16x1xf32>
    %cst_409 = arith.constant 9.99999974E-6 : f32
    %643 = vector.broadcast %cst_409 : f32 to vector<16x1xf32>
    %644 = arith.addf %642, %643 : vector<16x1xf32>
    %645 = math.rsqrt %644 : vector<16x1xf32>
    %646 = arith.mulf %645, %492 : vector<16x1xf32>
    %647 = vector.broadcast %646 : vector<16x1xf32> to vector<16x32xf32>
    %648 = arith.mulf %637, %647 : vector<16x32xf32>
    %649 = vector.broadcast %493 : vector<16x1xf32> to vector<16x32xf32>
    %650 = arith.addf %648, %649 : vector<16x32xf32>
    %cst_410 = arith.constant 0.000000e+00 : f32
    %651 = vector.broadcast %cst_410 : f32 to vector<16x32xf32>
    %652 = arith.subf %651, %650 : vector<16x32xf32>
    %653 = math.exp %652 : vector<16x32xf32>
    %cst_411 = arith.constant 1.000000e+00 : f32
    %654 = vector.broadcast %cst_411 : f32 to vector<16x32xf32>
    %655 = arith.addf %654, %653 : vector<16x32xf32>
    %cst_412 = arith.constant 1.000000e+00 : f32
    %656 = vector.broadcast %cst_412 : f32 to vector<16x32xf32>
    %657 = arith.divf %656, %655 : vector<16x32xf32>
    %658 = arith.mulf %650, %657 : vector<16x32xf32>
    %c0_413 = arith.constant 0 : index
    %c0_414 = arith.constant 0 : index
    %659 = vector.load %arg16[%c0_413, %c0_414] : memref<16x144xf32, #tpu.memory_space<vmem>>, vector<16x144xf32>
    %c0_415 = arith.constant 0 : index
    %c0_416 = arith.constant 0 : index
    %660 = vector.load %arg17[%c0_415, %c0_416] : memref<16x1xf32, #tpu.memory_space<vmem>>, vector<16x1xf32>
    %c0_417 = arith.constant 0 : index
    %c0_418 = arith.constant 0 : index
    %661 = vector.load %arg18[%c0_417, %c0_418] : memref<16x1xf32, #tpu.memory_space<vmem>>, vector<16x1xf32>
    %c0_419 = arith.constant 0 : index
    %c0_420 = arith.constant 0 : index
    %662 = vector.load %arg19[%c0_419, %c0_420] : memref<16x144xf32, #tpu.memory_space<vmem>>, vector<16x144xf32>
    %c0_421 = arith.constant 0 : index
    %c0_422 = arith.constant 0 : index
    %663 = vector.load %arg20[%c0_421, %c0_422] : memref<16x1xf32, #tpu.memory_space<vmem>>, vector<16x1xf32>
    %c0_423 = arith.constant 0 : index
    %c0_424 = arith.constant 0 : index
    %664 = vector.load %arg21[%c0_423, %c0_424] : memref<16x1xf32, #tpu.memory_space<vmem>>, vector<16x1xf32>
    %c0_425 = arith.constant 0 : index
    %c10_426 = arith.constant 10 : index
    %665 = vector.load %arg23[%c0_425, %c10_426] : memref<16x580xf32, #tpu.memory_space<vmem>>, vector<16x32xf32>
    tpu.vector_store %arg23[%c0_425, %c10_426], %658 {strides = array<i32>} : memref<16x580xf32, #tpu.memory_space<vmem>>, vector<16x32xf32>,
    %c0_427 = arith.constant 0 : index
    %c5 = arith.constant 5 : index
    %666 = vector.load %arg23[%c0_427, %c5] : memref<16x580xf32, #tpu.memory_space<vmem>>, vector<16x32xf32>
    %667 = tpu.iota {dimensions = array<i32: 1>} : vector<1x32xi32>
    %c3_i32_428 = arith.constant 3 : i32
    %668 = vector.broadcast %c3_i32_428 : i32 to vector<1x32xi32>
    %669 = arith.andi %667, %668 : vector<1x32xi32>
    %c2_i32_429 = arith.constant 2 : i32
    %670 = vector.broadcast %c2_i32_429 : i32 to vector<1x32xi32>
    %671 = arith.shrsi %667, %670 : vector<1x32xi32>
    %c3_i32_430 = arith.constant 3 : i32
    %672 = vector.broadcast %c3_i32_430 : i32 to vector<1x32xi32>
    %673 = arith.andi %671, %672 : vector<1x32xi32>
    %c1_i32_431 = arith.constant 1 : i32
    %674 = vector.broadcast %c1_i32_431 : i32 to vector<1x32xi32>
    %675 = arith.cmpi sge, %673, %674 : vector<1x32xi32>
    %c1_i32_432 = arith.constant 1 : i32
    %676 = vector.broadcast %c1_i32_432 : i32 to vector<1x32xi32>
    %677 = arith.cmpi sge, %669, %676 : vector<1x32xi32>
    %678 = arith.andi %675, %677 : vector<1x32xi1>
    %cst_433 = arith.constant 1.000000e+00 : f32
    %cst_434 = arith.constant 0.000000e+00 : f32
    %679 = vector.broadcast %cst_433 : f32 to vector<1x32xf32>
    %680 = vector.broadcast %cst_434 : f32 to vector<1x32xf32>
    %681 = arith.select %678, %679, %680 : vector<1x32xi1>, vector<1x32xf32>
    %682 = vector.broadcast %681 : vector<1x32xf32> to vector<16x32xf32>
    %683 = arith.mulf %666, %682 : vector<16x32xf32>
    %c0_435 = arith.constant 0 : index
    %c0_436 = arith.constant 0 : index
    %684 = vector.load %arg24[%c0_435, %c0_436] : memref<144x512xf32, #tpu.memory_space<vmem>>, vector<16x32xf32>
    tpu.vector_store %arg24[%c0_435, %c0_436], %683 {strides = array<i32>} : memref<144x512xf32, #tpu.memory_space<vmem>>, vector<16x32xf32>,
    %c0_437 = arith.constant 0 : index
    %c6_438 = arith.constant 6 : index
    %685 = vector.load %arg23[%c0_437, %c6_438] : memref<16x580xf32, #tpu.memory_space<vmem>>, vector<16x32xf32>
    %c1_i32_439 = arith.constant 1 : i32
    %686 = vector.broadcast %c1_i32_439 : i32 to vector<1x32xi32>
    %687 = arith.cmpi sge, %673, %686 : vector<1x32xi32>
    %cst_440 = arith.constant 1.000000e+00 : f32
    %cst_441 = arith.constant 0.000000e+00 : f32
    %688 = vector.broadcast %cst_440 : f32 to vector<1x32xf32>
    %689 = vector.broadcast %cst_441 : f32 to vector<1x32xf32>
    %690 = arith.select %687, %688, %689 : vector<1x32xi1>, vector<1x32xf32>
    %691 = vector.broadcast %690 : vector<1x32xf32> to vector<16x32xf32>
    %692 = arith.mulf %685, %691 : vector<16x32xf32>
    %c16_442 = arith.constant 16 : index
    %c0_443 = arith.constant 0 : index
    %693 = vector.load %arg24[%c16_442, %c0_443] : memref<144x512xf32, #tpu.memory_space<vmem>>, vector<16x32xf32>
    tpu.vector_store %arg24[%c16_442, %c0_443], %692 {strides = array<i32>} : memref<144x512xf32, #tpu.memory_space<vmem>>, vector<16x32xf32>,
    %c0_444 = arith.constant 0 : index
    %c7 = arith.constant 7 : index
    %694 = vector.load %arg23[%c0_444, %c7] : memref<16x580xf32, #tpu.memory_space<vmem>>, vector<16x32xf32>
    %c1_i32_445 = arith.constant 1 : i32
    %695 = vector.broadcast %c1_i32_445 : i32 to vector<1x32xi32>
    %696 = arith.cmpi sge, %673, %695 : vector<1x32xi32>
    %c3_i32_446 = arith.constant 3 : i32
    %697 = vector.broadcast %c3_i32_446 : i32 to vector<1x32xi32>
    %698 = arith.cmpi slt, %669, %697 : vector<1x32xi32>
    %699 = arith.andi %696, %698 : vector<1x32xi1>
    %cst_447 = arith.constant 1.000000e+00 : f32
    %cst_448 = arith.constant 0.000000e+00 : f32
    %700 = vector.broadcast %cst_447 : f32 to vector<1x32xf32>
    %701 = vector.broadcast %cst_448 : f32 to vector<1x32xf32>
    %702 = arith.select %699, %700, %701 : vector<1x32xi1>, vector<1x32xf32>
    %703 = vector.broadcast %702 : vector<1x32xf32> to vector<16x32xf32>
    %704 = arith.mulf %694, %703 : vector<16x32xf32>
    %c32_449 = arith.constant 32 : index
    %c0_450 = arith.constant 0 : index
    %705 = vector.load %arg24[%c32_449, %c0_450] : memref<144x512xf32, #tpu.memory_space<vmem>>, vector<16x32xf32>
    tpu.vector_store %arg24[%c32_449, %c0_450], %704 {strides = array<i32>} : memref<144x512xf32, #tpu.memory_space<vmem>>, vector<16x32xf32>,
    %c0_451 = arith.constant 0 : index
    %c9_452 = arith.constant 9 : index
    %706 = vector.load %arg23[%c0_451, %c9_452] : memref<16x580xf32, #tpu.memory_space<vmem>>, vector<16x32xf32>
    %c1_i32_453 = arith.constant 1 : i32
    %707 = vector.broadcast %c1_i32_453 : i32 to vector<1x32xi32>
    %708 = arith.cmpi sge, %669, %707 : vector<1x32xi32>
    %cst_454 = arith.constant 1.000000e+00 : f32
    %cst_455 = arith.constant 0.000000e+00 : f32
    %709 = vector.broadcast %cst_454 : f32 to vector<1x32xf32>
    %710 = vector.broadcast %cst_455 : f32 to vector<1x32xf32>
    %711 = arith.select %708, %709, %710 : vector<1x32xi1>, vector<1x32xf32>
    %712 = vector.broadcast %711 : vector<1x32xf32> to vector<16x32xf32>
    %713 = arith.mulf %706, %712 : vector<16x32xf32>
    %c48_456 = arith.constant 48 : index
    %c0_457 = arith.constant 0 : index
    %714 = vector.load %arg24[%c48_456, %c0_457] : memref<144x512xf32, #tpu.memory_space<vmem>>, vector<16x32xf32>
    tpu.vector_store %arg24[%c48_456, %c0_457], %713 {strides = array<i32>} : memref<144x512xf32, #tpu.memory_space<vmem>>, vector<16x32xf32>,
    %c0_458 = arith.constant 0 : index
    %c10_459 = arith.constant 10 : index
    %715 = vector.load %arg23[%c0_458, %c10_459] : memref<16x580xf32, #tpu.memory_space<vmem>>, vector<16x32xf32>
    %c64_460 = arith.constant 64 : index
    %c0_461 = arith.constant 0 : index
    %716 = vector.load %arg24[%c64_460, %c0_461] : memref<144x512xf32, #tpu.memory_space<vmem>>, vector<16x32xf32>
    tpu.vector_store %arg24[%c64_460, %c0_461], %715 {strides = array<i32>} : memref<144x512xf32, #tpu.memory_space<vmem>>, vector<16x32xf32>,
    %c0_462 = arith.constant 0 : index
    %c11_463 = arith.constant 11 : index
    %717 = vector.load %arg23[%c0_462, %c11_463] : memref<16x580xf32, #tpu.memory_space<vmem>>, vector<16x32xf32>
    %c3_i32_464 = arith.constant 3 : i32
    %718 = vector.broadcast %c3_i32_464 : i32 to vector<1x32xi32>
    %719 = arith.cmpi slt, %669, %718 : vector<1x32xi32>
    %cst_465 = arith.constant 1.000000e+00 : f32
    %cst_466 = arith.constant 0.000000e+00 : f32
    %720 = vector.broadcast %cst_465 : f32 to vector<1x32xf32>
    %721 = vector.broadcast %cst_466 : f32 to vector<1x32xf32>
    %722 = arith.select %719, %720, %721 : vector<1x32xi1>, vector<1x32xf32>
    %723 = vector.broadcast %722 : vector<1x32xf32> to vector<16x32xf32>
    %724 = arith.mulf %717, %723 : vector<16x32xf32>
    %c80_467 = arith.constant 80 : index
    %c0_468 = arith.constant 0 : index
    %725 = vector.load %arg24[%c80_467, %c0_468] : memref<144x512xf32, #tpu.memory_space<vmem>>, vector<16x32xf32>
    tpu.vector_store %arg24[%c80_467, %c0_468], %724 {strides = array<i32>} : memref<144x512xf32, #tpu.memory_space<vmem>>, vector<16x32xf32>,
    %c0_469 = arith.constant 0 : index
    %c13 = arith.constant 13 : index
    %726 = vector.load %arg23[%c0_469, %c13] : memref<16x580xf32, #tpu.memory_space<vmem>>, vector<16x32xf32>
    %c3_i32_470 = arith.constant 3 : i32
    %727 = vector.broadcast %c3_i32_470 : i32 to vector<1x32xi32>
    %728 = arith.cmpi slt, %673, %727 : vector<1x32xi32>
    %c1_i32_471 = arith.constant 1 : i32
    %729 = vector.broadcast %c1_i32_471 : i32 to vector<1x32xi32>
    %730 = arith.cmpi sge, %669, %729 : vector<1x32xi32>
    %731 = arith.andi %728, %730 : vector<1x32xi1>
    %cst_472 = arith.constant 1.000000e+00 : f32
    %cst_473 = arith.constant 0.000000e+00 : f32
    %732 = vector.broadcast %cst_472 : f32 to vector<1x32xf32>
    %733 = vector.broadcast %cst_473 : f32 to vector<1x32xf32>
    %734 = arith.select %731, %732, %733 : vector<1x32xi1>, vector<1x32xf32>
    %735 = vector.broadcast %734 : vector<1x32xf32> to vector<16x32xf32>
    %736 = arith.mulf %726, %735 : vector<16x32xf32>
    %c96_474 = arith.constant 96 : index
    %c0_475 = arith.constant 0 : index
    %737 = vector.load %arg24[%c96_474, %c0_475] : memref<144x512xf32, #tpu.memory_space<vmem>>, vector<16x32xf32>
    tpu.vector_store %arg24[%c96_474, %c0_475], %736 {strides = array<i32>} : memref<144x512xf32, #tpu.memory_space<vmem>>, vector<16x32xf32>,
    %c0_476 = arith.constant 0 : index
    %c14 = arith.constant 14 : index
    %738 = vector.load %arg23[%c0_476, %c14] : memref<16x580xf32, #tpu.memory_space<vmem>>, vector<16x32xf32>
    %c3_i32_477 = arith.constant 3 : i32
    %739 = vector.broadcast %c3_i32_477 : i32 to vector<1x32xi32>
    %740 = arith.cmpi slt, %673, %739 : vector<1x32xi32>
    %cst_478 = arith.constant 1.000000e+00 : f32
    %cst_479 = arith.constant 0.000000e+00 : f32
    %741 = vector.broadcast %cst_478 : f32 to vector<1x32xf32>
    %742 = vector.broadcast %cst_479 : f32 to vector<1x32xf32>
    %743 = arith.select %740, %741, %742 : vector<1x32xi1>, vector<1x32xf32>
    %744 = vector.broadcast %743 : vector<1x32xf32> to vector<16x32xf32>
    %745 = arith.mulf %738, %744 : vector<16x32xf32>
    %c112_480 = arith.constant 112 : index
    %c0_481 = arith.constant 0 : index
    %746 = vector.load %arg24[%c112_480, %c0_481] : memref<144x512xf32, #tpu.memory_space<vmem>>, vector<16x32xf32>
    tpu.vector_store %arg24[%c112_480, %c0_481], %745 {strides = array<i32>} : memref<144x512xf32, #tpu.memory_space<vmem>>, vector<16x32xf32>,
    %c0_482 = arith.constant 0 : index
    %c15_483 = arith.constant 15 : index
    %747 = vector.load %arg23[%c0_482, %c15_483] : memref<16x580xf32, #tpu.memory_space<vmem>>, vector<16x32xf32>
    %c3_i32_484 = arith.constant 3 : i32
    %748 = vector.broadcast %c3_i32_484 : i32 to vector<1x32xi32>
    %749 = arith.cmpi slt, %673, %748 : vector<1x32xi32>
    %c3_i32_485 = arith.constant 3 : i32
    %750 = vector.broadcast %c3_i32_485 : i32 to vector<1x32xi32>
    %751 = arith.cmpi slt, %669, %750 : vector<1x32xi32>
    %752 = arith.andi %749, %751 : vector<1x32xi1>
    %cst_486 = arith.constant 1.000000e+00 : f32
    %cst_487 = arith.constant 0.000000e+00 : f32
    %753 = vector.broadcast %cst_486 : f32 to vector<1x32xf32>
    %754 = vector.broadcast %cst_487 : f32 to vector<1x32xf32>
    %755 = arith.select %752, %753, %754 : vector<1x32xi1>, vector<1x32xf32>
    %756 = vector.broadcast %755 : vector<1x32xf32> to vector<16x32xf32>
    %757 = arith.mulf %747, %756 : vector<16x32xf32>
    %c128 = arith.constant 128 : index
    %c0_488 = arith.constant 0 : index
    %758 = vector.load %arg24[%c128, %c0_488] : memref<144x512xf32, #tpu.memory_space<vmem>>, vector<16x32xf32>
    tpu.vector_store %arg24[%c128, %c0_488], %757 {strides = array<i32>} : memref<144x512xf32, #tpu.memory_space<vmem>>, vector<16x32xf32>,
    %c0_489 = arith.constant 0 : index
    %c0_490 = arith.constant 0 : index
    %759 = vector.load %arg24[%c0_489, %c0_490] : memref<144x512xf32, #tpu.memory_space<vmem>>, vector<144x32xf32>
    %cst_491 = arith.constant dense<0.000000e+00> : vector<16x32xf32>
    %760 = tpu.matmul %659, %759, %cst_491 {dimension_numbers = #tpu.dot_dimension_numbers<[1], [0], [0], [1], [0, 0, 1, 1], [], []>} : vector<16x144xf32>, vector<144x32xf32>, vector<16x32xf32> -> vector<16x32xf32>
    %cst_492 = arith.constant dense<0.000000e+00> : vector<16xf32>
    %761 = vector.multi_reduction <add>, %760, %cst_492 [1] : vector<16x32xf32> to vector<16xf32>
    %762 = vector.shape_cast %761 : vector<16xf32> to vector<16x1xf32>
    %cst_493 = arith.constant 3.125000e-02 : f32
    %763 = vector.broadcast %cst_493 : f32 to vector<16x1xf32>
    %764 = arith.mulf %762, %763 : vector<16x1xf32>
    %765 = vector.broadcast %764 : vector<16x1xf32> to vector<16x32xf32>
    %766 = arith.subf %760, %765 : vector<16x32xf32>
    %767 = arith.mulf %766, %766 : vector<16x32xf32>
    %cst_494 = arith.constant dense<0.000000e+00> : vector<16xf32>
    %768 = vector.multi_reduction <add>, %767, %cst_494 [1] : vector<16x32xf32> to vector<16xf32>
    %769 = vector.shape_cast %768 : vector<16xf32> to vector<16x1xf32>
    %cst_495 = arith.constant 3.125000e-02 : f32
    %770 = vector.broadcast %cst_495 : f32 to vector<16x1xf32>
    %771 = arith.mulf %769, %770 : vector<16x1xf32>
    %cst_496 = arith.constant 9.99999974E-6 : f32
    %772 = vector.broadcast %cst_496 : f32 to vector<16x1xf32>
    %773 = arith.addf %771, %772 : vector<16x1xf32>
    %774 = math.rsqrt %773 : vector<16x1xf32>
    %775 = arith.mulf %774, %660 : vector<16x1xf32>
    %776 = vector.broadcast %775 : vector<16x1xf32> to vector<16x32xf32>
    %777 = arith.mulf %766, %776 : vector<16x32xf32>
    %778 = vector.broadcast %661 : vector<16x1xf32> to vector<16x32xf32>
    %779 = arith.addf %777, %778 : vector<16x32xf32>
    %cst_497 = arith.constant 0.000000e+00 : f32
    %780 = vector.broadcast %cst_497 : f32 to vector<16x32xf32>
    %781 = arith.subf %780, %779 : vector<16x32xf32>
    %782 = math.exp %781 : vector<16x32xf32>
    %cst_498 = arith.constant 1.000000e+00 : f32
    %783 = vector.broadcast %cst_498 : f32 to vector<16x32xf32>
    %784 = arith.addf %783, %782 : vector<16x32xf32>
    %cst_499 = arith.constant 1.000000e+00 : f32
    %785 = vector.broadcast %cst_499 : f32 to vector<16x32xf32>
    %786 = arith.divf %785, %784 : vector<16x32xf32>
    %787 = arith.mulf %779, %786 : vector<16x32xf32>
    %c0_500 = arith.constant 0 : index
    %c10_501 = arith.constant 10 : index
    %788 = vector.load %arg23[%c0_500, %c10_501] : memref<16x580xf32, #tpu.memory_space<vmem>>, vector<16x32xf32>
    tpu.vector_store %arg23[%c0_500, %c10_501], %787 {strides = array<i32>} : memref<16x580xf32, #tpu.memory_space<vmem>>, vector<16x32xf32>,
    %c0_502 = arith.constant 0 : index
    %c5_503 = arith.constant 5 : index
    %789 = vector.load %arg23[%c0_502, %c5_503] : memref<16x580xf32, #tpu.memory_space<vmem>>, vector<16x32xf32>
    %790 = vector.broadcast %681 : vector<1x32xf32> to vector<16x32xf32>
    %791 = arith.mulf %789, %790 : vector<16x32xf32>
    %c0_504 = arith.constant 0 : index
    %c0_505 = arith.constant 0 : index
    %792 = vector.load %arg24[%c0_504, %c0_505] : memref<144x512xf32, #tpu.memory_space<vmem>>, vector<16x32xf32>
    tpu.vector_store %arg24[%c0_504, %c0_505], %791 {strides = array<i32>} : memref<144x512xf32, #tpu.memory_space<vmem>>, vector<16x32xf32>,
    %c0_506 = arith.constant 0 : index
    %c6_507 = arith.constant 6 : index
    %793 = vector.load %arg23[%c0_506, %c6_507] : memref<16x580xf32, #tpu.memory_space<vmem>>, vector<16x32xf32>
    %794 = vector.broadcast %690 : vector<1x32xf32> to vector<16x32xf32>
    %795 = arith.mulf %793, %794 : vector<16x32xf32>
    %c16_508 = arith.constant 16 : index
    %c0_509 = arith.constant 0 : index
    %796 = vector.load %arg24[%c16_508, %c0_509] : memref<144x512xf32, #tpu.memory_space<vmem>>, vector<16x32xf32>
    tpu.vector_store %arg24[%c16_508, %c0_509], %795 {strides = array<i32>} : memref<144x512xf32, #tpu.memory_space<vmem>>, vector<16x32xf32>,
    %c0_510 = arith.constant 0 : index
    %c7_511 = arith.constant 7 : index
    %797 = vector.load %arg23[%c0_510, %c7_511] : memref<16x580xf32, #tpu.memory_space<vmem>>, vector<16x32xf32>
    %798 = vector.broadcast %702 : vector<1x32xf32> to vector<16x32xf32>
    %799 = arith.mulf %797, %798 : vector<16x32xf32>
    %c32_512 = arith.constant 32 : index
    %c0_513 = arith.constant 0 : index
    %800 = vector.load %arg24[%c32_512, %c0_513] : memref<144x512xf32, #tpu.memory_space<vmem>>, vector<16x32xf32>
    tpu.vector_store %arg24[%c32_512, %c0_513], %799 {strides = array<i32>} : memref<144x512xf32, #tpu.memory_space<vmem>>, vector<16x32xf32>,
    %c0_514 = arith.constant 0 : index
    %c9_515 = arith.constant 9 : index
    %801 = vector.load %arg23[%c0_514, %c9_515] : memref<16x580xf32, #tpu.memory_space<vmem>>, vector<16x32xf32>
    %802 = vector.broadcast %711 : vector<1x32xf32> to vector<16x32xf32>
    %803 = arith.mulf %801, %802 : vector<16x32xf32>
    %c48_516 = arith.constant 48 : index
    %c0_517 = arith.constant 0 : index
    %804 = vector.load %arg24[%c48_516, %c0_517] : memref<144x512xf32, #tpu.memory_space<vmem>>, vector<16x32xf32>
    tpu.vector_store %arg24[%c48_516, %c0_517], %803 {strides = array<i32>} : memref<144x512xf32, #tpu.memory_space<vmem>>, vector<16x32xf32>,
    %c0_518 = arith.constant 0 : index
    %c10_519 = arith.constant 10 : index
    %805 = vector.load %arg23[%c0_518, %c10_519] : memref<16x580xf32, #tpu.memory_space<vmem>>, vector<16x32xf32>
    %c64_520 = arith.constant 64 : index
    %c0_521 = arith.constant 0 : index
    %806 = vector.load %arg24[%c64_520, %c0_521] : memref<144x512xf32, #tpu.memory_space<vmem>>, vector<16x32xf32>
    tpu.vector_store %arg24[%c64_520, %c0_521], %805 {strides = array<i32>} : memref<144x512xf32, #tpu.memory_space<vmem>>, vector<16x32xf32>,
    %c0_522 = arith.constant 0 : index
    %c11_523 = arith.constant 11 : index
    %807 = vector.load %arg23[%c0_522, %c11_523] : memref<16x580xf32, #tpu.memory_space<vmem>>, vector<16x32xf32>
    %808 = vector.broadcast %722 : vector<1x32xf32> to vector<16x32xf32>
    %809 = arith.mulf %807, %808 : vector<16x32xf32>
    %c80_524 = arith.constant 80 : index
    %c0_525 = arith.constant 0 : index
    %810 = vector.load %arg24[%c80_524, %c0_525] : memref<144x512xf32, #tpu.memory_space<vmem>>, vector<16x32xf32>
    tpu.vector_store %arg24[%c80_524, %c0_525], %809 {strides = array<i32>} : memref<144x512xf32, #tpu.memory_space<vmem>>, vector<16x32xf32>,
    %c0_526 = arith.constant 0 : index
    %c13_527 = arith.constant 13 : index
    %811 = vector.load %arg23[%c0_526, %c13_527] : memref<16x580xf32, #tpu.memory_space<vmem>>, vector<16x32xf32>
    %812 = vector.broadcast %734 : vector<1x32xf32> to vector<16x32xf32>
    %813 = arith.mulf %811, %812 : vector<16x32xf32>
    %c96_528 = arith.constant 96 : index
    %c0_529 = arith.constant 0 : index
    %814 = vector.load %arg24[%c96_528, %c0_529] : memref<144x512xf32, #tpu.memory_space<vmem>>, vector<16x32xf32>
    tpu.vector_store %arg24[%c96_528, %c0_529], %813 {strides = array<i32>} : memref<144x512xf32, #tpu.memory_space<vmem>>, vector<16x32xf32>,
    %c0_530 = arith.constant 0 : index
    %c14_531 = arith.constant 14 : index
    %815 = vector.load %arg23[%c0_530, %c14_531] : memref<16x580xf32, #tpu.memory_space<vmem>>, vector<16x32xf32>
    %816 = vector.broadcast %743 : vector<1x32xf32> to vector<16x32xf32>
    %817 = arith.mulf %815, %816 : vector<16x32xf32>
    %c112_532 = arith.constant 112 : index
    %c0_533 = arith.constant 0 : index
    %818 = vector.load %arg24[%c112_532, %c0_533] : memref<144x512xf32, #tpu.memory_space<vmem>>, vector<16x32xf32>
    tpu.vector_store %arg24[%c112_532, %c0_533], %817 {strides = array<i32>} : memref<144x512xf32, #tpu.memory_space<vmem>>, vector<16x32xf32>,
    %c0_534 = arith.constant 0 : index
    %c15_535 = arith.constant 15 : index
    %819 = vector.load %arg23[%c0_534, %c15_535] : memref<16x580xf32, #tpu.memory_space<vmem>>, vector<16x32xf32>
    %820 = vector.broadcast %755 : vector<1x32xf32> to vector<16x32xf32>
    %821 = arith.mulf %819, %820 : vector<16x32xf32>
    %c128_536 = arith.constant 128 : index
    %c0_537 = arith.constant 0 : index
    %822 = vector.load %arg24[%c128_536, %c0_537] : memref<144x512xf32, #tpu.memory_space<vmem>>, vector<16x32xf32>
    tpu.vector_store %arg24[%c128_536, %c0_537], %821 {strides = array<i32>} : memref<144x512xf32, #tpu.memory_space<vmem>>, vector<16x32xf32>,
    %c0_538 = arith.constant 0 : index
    %c0_539 = arith.constant 0 : index
    %823 = vector.load %arg24[%c0_538, %c0_539] : memref<144x512xf32, #tpu.memory_space<vmem>>, vector<144x32xf32>
    %cst_540 = arith.constant dense<0.000000e+00> : vector<16x32xf32>
    %824 = tpu.matmul %662, %823, %cst_540 {dimension_numbers = #tpu.dot_dimension_numbers<[1], [0], [0], [1], [0, 0, 1, 1], [], []>} : vector<16x144xf32>, vector<144x32xf32>, vector<16x32xf32> -> vector<16x32xf32>
    %cst_541 = arith.constant dense<0.000000e+00> : vector<16xf32>
    %825 = vector.multi_reduction <add>, %824, %cst_541 [1] : vector<16x32xf32> to vector<16xf32>
    %826 = vector.shape_cast %825 : vector<16xf32> to vector<16x1xf32>
    %cst_542 = arith.constant 3.125000e-02 : f32
    %827 = vector.broadcast %cst_542 : f32 to vector<16x1xf32>
    %828 = arith.mulf %826, %827 : vector<16x1xf32>
    %829 = vector.broadcast %828 : vector<16x1xf32> to vector<16x32xf32>
    %830 = arith.subf %824, %829 : vector<16x32xf32>
    %831 = arith.mulf %830, %830 : vector<16x32xf32>
    %cst_543 = arith.constant dense<0.000000e+00> : vector<16xf32>
    %832 = vector.multi_reduction <add>, %831, %cst_543 [1] : vector<16x32xf32> to vector<16xf32>
    %833 = vector.shape_cast %832 : vector<16xf32> to vector<16x1xf32>
    %cst_544 = arith.constant 3.125000e-02 : f32
    %834 = vector.broadcast %cst_544 : f32 to vector<16x1xf32>
    %835 = arith.mulf %833, %834 : vector<16x1xf32>
    %cst_545 = arith.constant 9.99999974E-6 : f32
    %836 = vector.broadcast %cst_545 : f32 to vector<16x1xf32>
    %837 = arith.addf %835, %836 : vector<16x1xf32>
    %838 = math.rsqrt %837 : vector<16x1xf32>
    %839 = arith.mulf %838, %663 : vector<16x1xf32>
    %840 = vector.broadcast %839 : vector<16x1xf32> to vector<16x32xf32>
    %841 = arith.mulf %830, %840 : vector<16x32xf32>
    %842 = vector.broadcast %664 : vector<16x1xf32> to vector<16x32xf32>
    %843 = arith.addf %841, %842 : vector<16x32xf32>
    %844 = arith.addf %843, %658 : vector<16x32xf32>
    %cst_546 = arith.constant 0.000000e+00 : f32
    %845 = vector.broadcast %cst_546 : f32 to vector<16x32xf32>
    %846 = arith.subf %845, %844 : vector<16x32xf32>
    %847 = math.exp %846 : vector<16x32xf32>
    %cst_547 = arith.constant 1.000000e+00 : f32
    %848 = vector.broadcast %cst_547 : f32 to vector<16x32xf32>
    %849 = arith.addf %848, %847 : vector<16x32xf32>
    %cst_548 = arith.constant 1.000000e+00 : f32
    %850 = vector.broadcast %cst_548 : f32 to vector<16x32xf32>
    %851 = arith.divf %850, %849 : vector<16x32xf32>
    %852 = arith.mulf %844, %851 : vector<16x32xf32>
    %c0_549 = arith.constant 0 : index
    %c0_550 = arith.constant 0 : index
    %853 = vector.load %arg22[%c0_549, %c0_550] : memref<16x32xf32, #tpu.memory_space<vmem>>, vector<16x32xf32>
    tpu.vector_store %arg22[%c0_549, %c0_550], %852 {strides = array<i32>} : memref<16x32xf32, #tpu.memory_space<vmem>>, vector<16x32xf32>,
    return
  }
}

</mosaic_0001>

<llo_original>
// kernel: _lambda_.1
$region0: #{_lambda_.1}
  #allocation0 [shape = 'u32[]', space=smem, size = 0x4, offset = 0x4, fixed_abs, tag = 'smem constant byte address 0x4 - core index']
  #allocation1 [shape = 'u32[72,128]{1,0:T(1,128)}', space=vmem, size = 0x9000, scoped, tag = 'internal scratch']
  #allocation2 [shape = 'f32[16,580]{1,0:T(8,128)}', space=vmem, size = 0xa000, scoped, tag = 'scratch operand']
  #allocation3 [shape = 'f32[144,512]{1,0:T(8,128)}', space=vmem, size = 0x48000, scoped, tag = 'scratch operand']
  %s0 = inlined_call_operand.vmem [shape: f32[3,512], index: 0, kind: input, shape index: {}]
  %s1 = inlined_call_operand.vmem [shape: f32[8,27], index: 1, kind: input, shape index: {}]
  %s2 = inlined_call_operand.vmem [shape: f32[8,1], index: 2, kind: input, shape index: {}]
  %s3 = inlined_call_operand.vmem [shape: f32[8,1], index: 3, kind: input, shape index: {}]
  %s4 = inlined_call_operand.vmem [shape: f32[8,128], index: 4, kind: input, shape index: {}]
  %s5 = inlined_call_operand.vmem [shape: f32[8,1], index: 5, kind: input, shape index: {}]
  %s6 = inlined_call_operand.vmem [shape: f32[8,1], index: 6, kind: input, shape index: {}]
  %s7 = inlined_call_operand.vmem [shape: f32[8,72], index: 7, kind: input, shape index: {}]
  %s8 = inlined_call_operand.vmem [shape: f32[8,1], index: 8, kind: input, shape index: {}]
  %s9 = inlined_call_operand.vmem [shape: f32[8,1], index: 9, kind: input, shape index: {}]
  %s10 = inlined_call_operand.vmem [shape: f32[8,72], index: 10, kind: input, shape index: {}]
  %s11 = inlined_call_operand.vmem [shape: f32[8,1], index: 11, kind: input, shape index: {}]
  %s12 = inlined_call_operand.vmem [shape: f32[8,1], index: 12, kind: input, shape index: {}]
  %s13 = inlined_call_operand.vmem [shape: f32[16,128], index: 13, kind: input, shape index: {}]
  %s14 = inlined_call_operand.vmem [shape: f32[16,1], index: 14, kind: input, shape index: {}]
  %s15 = inlined_call_operand.vmem [shape: f32[16,1], index: 15, kind: input, shape index: {}]
  %s16 = inlined_call_operand.vmem [shape: f32[16,144], index: 16, kind: input, shape index: {}]
  %s17 = inlined_call_operand.vmem [shape: f32[16,1], index: 17, kind: input, shape index: {}]
  %s18 = inlined_call_operand.vmem [shape: f32[16,1], index: 18, kind: input, shape index: {}]
  %s19 = inlined_call_operand.vmem [shape: f32[16,144], index: 19, kind: input, shape index: {}]
  %s20 = inlined_call_operand.vmem [shape: f32[16,1], index: 20, kind: input, shape index: {}]
  %s21 = inlined_call_operand.vmem [shape: f32[16,1], index: 21, kind: input, shape index: {}]
  %s22 = inlined_call_operand.vmem [shape: f32[16,32], index: 22, kind: output, shape index: {}]
  %s23 = sld [smem:[#allocation0]]
  $region98: #{_lambda_.1} parent=0
    _
  %s25 = ssub.s32 1, %s23
  %s26 = scalar_select 0, %s25, %s23
  // Predicated region
  $region2: #{_lambda_.1} parent=0 // pred_check
    _
  $region3: #{_lambda_.1} parent=0 // pred_check_branch
    %28 = sbr.rel (0) target = $region5
  $region4: #{_lambda_.1} parent=0 // pred_region
    _
  $region5: #{_lambda_.1} parent=0 // pred_fallthru
    _
  // Predicated region
  $region6: #{_lambda_.1} parent=0 // pred_check
    _
  $region7: #{_lambda_.1} parent=0 // pred_check_branch
    %30 = sbr.rel (0) target = $region9
  $region8: #{_lambda_.1} parent=0 // pred_region
    _
  $region9: #{_lambda_.1} parent=0 // pred_fallthru
    _
  // Predicated region
  $region10: #{_lambda_.1} parent=0 // pred_check
    _
  $region11: #{_lambda_.1} parent=0 // pred_check_branch
    %32 = sbr.rel (0) target = $region13
  $region12: #{_lambda_.1} parent=0 // pred_region
    _
  $region13: #{_lambda_.1} parent=0 // pred_fallthru
    _
  // Predicated region
  $region14: #{_lambda_.1} parent=0 // pred_check
    _
  $region15: #{_lambda_.1} parent=0 // pred_check_branch
    %34 = sbr.rel (0) target = $region17
  $region16: #{_lambda_.1} parent=0 // pred_region
    _
  $region17: #{_lambda_.1} parent=0 // pred_fallthru
    _
  // Predicated region
  $region18: #{_lambda_.1} parent=0 // pred_check
    _
  $region19: #{_lambda_.1} parent=0 // pred_check_branch
    %36 = sbr.rel (0) target = $region21
  $region20: #{_lambda_.1} parent=0 // pred_region
    _
  $region21: #{_lambda_.1} parent=0 // pred_fallthru
    _
  // Predicated region
  $region22: #{_lambda_.1} parent=0 // pred_check
    _
  $region23: #{_lambda_.1} parent=0 // pred_check_branch
    %38 = sbr.rel (0) target = $region25
  $region24: #{_lambda_.1} parent=0 // pred_region
    _
  $region25: #{_lambda_.1} parent=0 // pred_fallthru
    _
  // Predicated region
  $region26: #{_lambda_.1} parent=0 // pred_check
    _
  $region27: #{_lambda_.1} parent=0 // pred_check_branch
    %40 = sbr.rel (0) target = $region29
  $region28: #{_lambda_.1} parent=0 // pred_region
    _
  $region29: #{_lambda_.1} parent=0 // pred_fallthru
    _
  // Predicated region
  $region30: #{_lambda_.1} parent=0 // pred_check
    _
  $region31: #{_lambda_.1} parent=0 // pred_check_branch
    %42 = sbr.rel (0) target = $region33
  $region32: #{_lambda_.1} parent=0 // pred_region
    _
  $region33: #{_lambda_.1} parent=0 // pred_fallthru
    _
  // Predicated region
  $region34: #{_lambda_.1} parent=0 // pred_check
    _
  $region35: #{_lambda_.1} parent=0 // pred_check_branch
    %44 = sbr.rel (0) target = $region37
  $region36: #{_lambda_.1} parent=0 // pred_region
    _
  $region37: #{_lambda_.1} parent=0 // pred_fallthru
    _
  // Predicated region
  $region38: #{_lambda_.1} parent=0 // pred_check
    _
  $region39: #{_lambda_.1} parent=0 // pred_check_branch
    %46 = sbr.rel (0) target = $region41
  $region40: #{_lambda_.1} parent=0 // pred_region
    _
  $region41: #{_lambda_.1} parent=0 // pred_fallthru
    _
  // Predicated region
  $region42: #{_lambda_.1} parent=0 // pred_check
    _
  $region43: #{_lambda_.1} parent=0 // pred_check_branch
    %48 = sbr.rel (0) target = $region45
  $region44: #{_lambda_.1} parent=0 // pred_region
    _
  $region45: #{_lambda_.1} parent=0 // pred_fallthru
    _
  // Predicated region
  $region46: #{_lambda_.1} parent=0 // pred_check
    _
  $region47: #{_lambda_.1} parent=0 // pred_check_branch
    %50 = sbr.rel (0) target = $region49
  $region48: #{_lambda_.1} parent=0 // pred_region
    _
  $region49: #{_lambda_.1} parent=0 // pred_fallthru
    _
  // Predicated region
  $region50: #{_lambda_.1} parent=0 // pred_check
    _
  $region51: #{_lambda_.1} parent=0 // pred_check_branch
    %52 = sbr.rel (0) target = $region53
  $region52: #{_lambda_.1} parent=0 // pred_region
    _
  $region53: #{_lambda_.1} parent=0 // pred_fallthru
    _
  // Predicated region
  $region54: #{_lambda_.1} parent=0 // pred_check
    _
  $region55: #{_lambda_.1} parent=0 // pred_check_branch
    %54 = sbr.rel (0) target = $region57
  $region56: #{_lambda_.1} parent=0 // pred_region
    _
  $region57: #{_lambda_.1} parent=0 // pred_fallthru
    _
  // Predicated region
  $region58: #{_lambda_.1} parent=0 // pred_check
    _
  $region59: #{_lambda_.1} parent=0 // pred_check_branch
    %56 = sbr.rel (0) target = $region61
  $region60: #{_lambda_.1} parent=0 // pred_region
    _
  $region61: #{_lambda_.1} parent=0 // pred_fallthru
    _
  // Predicated region
  $region62: #{_lambda_.1} parent=0 // pred_check
    _
  $region63: #{_lambda_.1} parent=0 // pred_check_branch
    %58 = sbr.rel (0) target = $region65
  $region64: #{_lambda_.1} parent=0 // pred_region
    _
  $region65: #{_lambda_.1} parent=0 // pred_fallthru
    _
  // Predicated region
  $region66: #{_lambda_.1} parent=0 // pred_check
    _
  $region67: #{_lambda_.1} parent=0 // pred_check_branch
    %60 = sbr.rel (0) target = $region69
  $region68: #{_lambda_.1} parent=0 // pred_region
    _
  $region69: #{_lambda_.1} parent=0 // pred_fallthru
    _
  // Predicated region
  $region70: #{_lambda_.1} parent=0 // pred_check
    _
  $region71: #{_lambda_.1} parent=0 // pred_check_branch
    %62 = sbr.rel (0) target = $region73
  $region72: #{_lambda_.1} parent=0 // pred_region
    _
  $region73: #{_lambda_.1} parent=0 // pred_fallthru
    _
  // Predicated region
  $region74: #{_lambda_.1} parent=0 // pred_check
    _
  $region75: #{_lambda_.1} parent=0 // pred_check_branch
    %64 = sbr.rel (0) target = $region77
  $region76: #{_lambda_.1} parent=0 // pred_region
    _
  $region77: #{_lambda_.1} parent=0 // pred_fallthru
    _
  // Predicated region
  $region78: #{_lambda_.1} parent=0 // pred_check
    _
  $region79: #{_lambda_.1} parent=0 // pred_check_branch
    %66 = sbr.rel (0) target = $region81
  $region80: #{_lambda_.1} parent=0 // pred_region
    _
  $region81: #{_lambda_.1} parent=0 // pred_fallthru
    _
  // Predicated region
  $region82: #{_lambda_.1} parent=0 // pred_check
    _
  $region83: #{_lambda_.1} parent=0 // pred_check_branch
    %68 = sbr.rel (0) target = $region85
  $region84: #{_lambda_.1} parent=0 // pred_region
    _
  $region85: #{_lambda_.1} parent=0 // pred_fallthru
    _
  // Predicated region
  $region86: #{_lambda_.1} parent=0 // pred_check
    _
  $region87: #{_lambda_.1} parent=0 // pred_check_branch
    %70 = sbr.rel (0) target = $region89
  $region88: #{_lambda_.1} parent=0 // pred_region
    _
  $region89: #{_lambda_.1} parent=0 // pred_fallthru
    _
  %71 = vst [vmem:[#allocation2] sm:$0xff] 0.0
  %72 = vst [vmem:[#allocation2 + $0x8] sm:$0xff] 0.0
  %73 = vst [vmem:[#allocation2 + $0x10] sm:$0xff] 0.0
  %74 = vst [vmem:[#allocation2 + $0x18] sm:$0xff] 0.0
  %vm75 = vcmask 556032
  %76 = vst.msk [vmem:[#allocation2 + $0x20] sm:$0xff] %vm75, 0.0
  %77 = vst [vmem:[#allocation2 + $0x28] sm:$0xff] 0.0
  %78 = vst [vmem:[#allocation2 + $0x30] sm:$0xff] 0.0
  %79 = vst [vmem:[#allocation2 + $0x38] sm:$0xff] 0.0
  %80 = vst [vmem:[#allocation2 + $0x40] sm:$0xff] 0.0
  %81 = vst.msk [vmem:[#allocation2 + $0x48] sm:$0xff] %vm75, 0.0
  %v82 = vld [vmem:[%s0] sm:$0x77]
  %v83 = vld [vmem:[%s0 + $0x8] sm:$0x77]
  %v84 = vld [vmem:[%s1] sm:$0xff]
  %v85 = vld [vmem:[%s2] sm:$0xff]
  %v86 = vld [vmem:[%s3] sm:$0xff]
  %89 = vst [vmem:[#allocation1] ss:$2 sm:$0xff] %v82
  %s90 = scalar_lea.vmem [#allocation1], 16
  %91 = vst [vmem:[%s90] ss:$2 sm:$0xff] %v83
  %v92 = vld.sshfl [vmem:[#allocation1] sm:$0xff pattern:$0x75316420]
  %v93 = vld.sshfl [vmem:[#allocation1 + $0x8] sm:$0xff pattern:$0x75316420]
  %v94 = vld.sshfl [vmem:[#allocation1 + $0x10] sm:$0xff pattern:$0x75316420]
  %v95 = vld.sshfl [vmem:[#allocation1 + $0x18] sm:$0xff pattern:$0x75316420]
  %96 = vrot.lane.b32.xlu0 %v92, 34
  %v97 = vpop.permute.xlu0 %96
  %98 = vrot.lane.b32.xlu0 %v93, 34
  %v99 = vpop.permute.xlu0 %98
  %100 = vrot.lane.b32.xlu0 %v94, 34
  %v101 = vpop.permute.xlu0 %100
  %102 = vrot.lane.b32.xlu0 %v95, 34
  %v103 = vpop.permute.xlu0 %102
  %vm104 = vcmask 277504
  %v105 = vsel %vm104, %v97, %v99
  %v106 = vsel %vm104, %v99, %v101
  %v107 = vsel %vm104, %v101, %v103
  %vm113 = vcmask 1042704
  %114 = vst.msk [vmem:[#allocation2] sm:$0x7] %vm113, %v97
  %115 = vst [vmem:[#allocation2 + $0x8] sm:$0x7] %v105
  %116 = vst [vmem:[#allocation2 + $0x10] sm:$0x7] %v106
  %117 = vst [vmem:[#allocation2 + $0x18] sm:$0x7] %v107
  %vm118 = vcmask 272384
  %119 = vst.msk [vmem:[#allocation2 + $0x20] sm:$0x7] %vm118, %v103
  %v120 = vld [vmem:[#allocation2] sm:$0x7]
  %v121 = vld [vmem:[#allocation2 + $0x8] sm:$0x7]
  %v122 = vld [vmem:[#allocation2 + $0x10] sm:$0x7]
  %v123 = vld [vmem:[#allocation2 + $0x18] sm:$0x7]
  %v124 = vld [vmem:[#allocation2 + $0x20] sm:$0x7]
  %v125 = vlaneseq
  %v126 = vand.u32 %v125, 127
  %v127 = vadd.s32 %v126, 128
  %v128 = vadd.s32 %v126, 256
  %v129 = vadd.s32 %v126, 384
  %v130 = vand.u32 %v126, 15
  %v131 = vand.u32 %v127, 15
  %v132 = vand.u32 %v128, 15
  %v133 = vand.u32 %v129, 15
  %v134 = vshra.s32 %v126, 4
  %v135 = vshra.s32 %v127, 4
  %v136 = vshra.s32 %v128, 4
  %v137 = vshra.s32 %v129, 4
  %v138 = vand.u32 %v134, 15
  %v139 = vand.u32 %v135, 15
  %v140 = vand.u32 %v136, 15
  %v141 = vand.u32 %v137, 15
  %vm142 = vcmp.ge.s32.totalorder %v138, 1
  %vm143 = vcmp.ge.s32.totalorder %v139, 1
  %vm144 = vcmp.ge.s32.totalorder %v140, 1
  %vm145 = vcmp.ge.s32.totalorder %v141, 1
  %vm146 = vcmp.ge.s32.totalorder %v130, 1
  %vm147 = vcmp.ge.s32.totalorder %v131, 1
  %vm148 = vcmp.ge.s32.totalorder %v132, 1
  %vm149 = vcmp.ge.s32.totalorder %v133, 1
  %vm150 = vmand %vm142, %vm146
  %vm151 = vmand %vm143, %vm147
  %vm152 = vmand %vm144, %vm148
  %vm153 = vmand %vm145, %vm149
  %v154 = vsel %vm150, 1.0, 0.0
  %v155 = vsel %vm151, 1.0, 0.0
  %v156 = vsel %vm152, 1.0, 0.0
  %v157 = vsel %vm153, 1.0, 0.0
  %162 = vrot.lane.b32.xlu0 %v154, 17
  %v163 = vpop.permute.xlu0 %162
  %164 = vrot.lane.b32.xlu0 %v155, 17
  %v165 = vpop.permute.xlu0 %164
  %166 = vrot.lane.b32.xlu0 %v156, 17
  %v167 = vpop.permute.xlu0 %166
  %168 = vrot.lane.b32.xlu0 %v157, 17
  %v169 = vpop.permute.xlu0 %168
  %vm170 = vcmask 138240
  %v171 = vsel %vm170, %v163, %v165
  %v172 = vsel %vm170, %v165, %v167
  %v173 = vsel %vm170, %v167, %v169
  %v179 = vmul.f32 %v120, %v163
  %v180 = vmul.f32 %v121, %v171
  %v181 = vmul.f32 %v122, %v172
  %v182 = vmul.f32 %v123, %v173
  %v183 = vmul.f32 %v124, %v169
  %189 = vrot.lane.b32.xlu0 %v179, 111
  %v190 = vpop.permute.xlu0 %189
  %191 = vrot.lane.b32.xlu0 %v180, 111
  %v192 = vpop.permute.xlu0 %191
  %193 = vrot.lane.b32.xlu0 %v181, 111
  %v194 = vpop.permute.xlu0 %193
  %195 = vrot.lane.b32.xlu0 %v182, 111
  %v196 = vpop.permute.xlu0 %195
  %197 = vrot.lane.b32.xlu0 %v183, 111
  %v198 = vpop.permute.xlu0 %197
  %vm199 = vcmask 908288
  %v200 = vsel %vm199, %v190, %v192
  %v201 = vsel %vm199, %v192, %v194
  %v202 = vsel %vm199, %v194, %v196
  %v203 = vsel %vm199, %v196, %v198
  %208 = vst [vmem:[#allocation3] sm:$0x7] %v200
  %209 = vst [vmem:[#allocation3 + $0x8] sm:$0x7] %v201
  %210 = vst [vmem:[#allocation3 + $0x10] sm:$0x7] %v202
  %211 = vst [vmem:[#allocation3 + $0x18] sm:$0x7] %v203
  %v212 = vld [vmem:[#allocation2] sm:$0x7]
  %v213 = vld [vmem:[#allocation2 + $0x8] sm:$0x7]
  %v214 = vld [vmem:[#allocation2 + $0x10] sm:$0x7]
  %v215 = vld [vmem:[#allocation2 + $0x18] sm:$0x7]
  %v216 = vld [vmem:[#allocation2 + $0x20] sm:$0x7]
  %v217 = vsel %vm142, 1.0, 0.0
  %v218 = vsel %vm143, 1.0, 0.0
  %v219 = vsel %vm144, 1.0, 0.0
  %v220 = vsel %vm145, 1.0, 0.0
  %225 = vrot.lane.b32.xlu0 %v217, 18
  %v226 = vpop.permute.xlu0 %225
  %227 = vrot.lane.b32.xlu0 %v218, 18
  %v228 = vpop.permute.xlu0 %227
  %229 = vrot.lane.b32.xlu0 %v219, 18
  %v230 = vpop.permute.xlu0 %229
  %231 = vrot.lane.b32.xlu0 %v220, 18
  %v232 = vpop.permute.xlu0 %231
  %vm233 = vcmask 146432
  %v234 = vsel %vm233, %v226, %v228
  %v235 = vsel %vm233, %v228, %v230
  %v236 = vsel %vm233, %v230, %v232
  %v242 = vmul.f32 %v212, %v226
  %v243 = vmul.f32 %v213, %v234
  %v244 = vmul.f32 %v214, %v235
  %v245 = vmul.f32 %v215, %v236
  %v246 = vmul.f32 %v216, %v232
  %v252 = vrot.slane %v242, 5
  %v253 = vrot.slane %v243, 5
  %v254 = vrot.slane %v244, 5
  %v255 = vrot.slane %v245, 5
  %v256 = vrot.slane %v246, 5
  %257 = vrot.lane.b32.xlu0 %v252, 110
  %v258 = vpop.permute.xlu0 %257
  %259 = vrot.lane.b32.xlu0 %v253, 110
  %v260 = vpop.permute.xlu0 %259
  %261 = vrot.lane.b32.xlu0 %v254, 110
  %v262 = vpop.permute.xlu0 %261
  %263 = vrot.lane.b32.xlu0 %v255, 110
  %v264 = vpop.permute.xlu0 %263
  %265 = vrot.lane.b32.xlu0 %v256, 110
  %v266 = vpop.permute.xlu0 %265
  %vm267 = vcmask 900096
  %v268 = vsel %vm267, %v258, %v260
  %v269 = vsel %vm267, %v260, %v262
  %v270 = vsel %vm267, %v262, %v264
  %v271 = vsel %vm267, %v264, %v266
  %276 = vst [vmem:[#allocation3] sm:$0x38] %v268
  %277 = vst [vmem:[#allocation3 + $0x8] sm:$0x38] %v269
  %278 = vst [vmem:[#allocation3 + $0x10] sm:$0x38] %v270
  %279 = vst [vmem:[#allocation3 + $0x18] sm:$0x38] %v271
  %v280 = vld [vmem:[#allocation2] sm:$0x7]
  %v281 = vld [vmem:[#allocation2 + $0x8] sm:$0x7]
  %v282 = vld [vmem:[#allocation2 + $0x10] sm:$0x7]
  %v283 = vld [vmem:[#allocation2 + $0x18] sm:$0x7]
  %v284 = vld [vmem:[#allocation2 + $0x20] sm:$0x7]
  %vm285 = vcmp.lt.s32.totalorder %v130, 15
  %vm286 = vcmp.lt.s32.totalorder %v131, 15
  %vm287 = vcmp.lt.s32.totalorder %v132, 15
  %vm288 = vcmp.lt.s32.totalorder %v133, 15
  %vm289 = vmand %vm142, %vm285
  %vm290 = vmand %vm143, %vm286
  %vm291 = vmand %vm144, %vm287
  %vm292 = vmand %vm145, %vm288
  %v293 = vsel %vm289, 1.0, 0.0
  %v294 = vsel %vm290, 1.0, 0.0
  %v295 = vsel %vm291, 1.0, 0.0
  %v296 = vsel %vm292, 1.0, 0.0
  %301 = vrot.lane.b32.xlu0 %v293, 19
  %v302 = vpop.permute.xlu0 %301
  %303 = vrot.lane.b32.xlu0 %v294, 19
  %v304 = vpop.permute.xlu0 %303
  %305 = vrot.lane.b32.xlu0 %v295, 19
  %v306 = vpop.permute.xlu0 %305
  %307 = vrot.lane.b32.xlu0 %v296, 19
  %v308 = vpop.permute.xlu0 %307
  %vm309 = vcmask 154624
  %v310 = vsel %vm309, %v302, %v304
  %v311 = vsel %vm309, %v304, %v306
  %v312 = vsel %vm309, %v306, %v308
  %v318 = vmul.f32 %v280, %v302
  %v319 = vmul.f32 %v281, %v310
  %v320 = vmul.f32 %v282, %v311
  %v321 = vmul.f32 %v283, %v312
  %v322 = vmul.f32 %v284, %v308
  %v328 = vrot.slane %v318, 2
  %v329 = vrot.slane %v319, 2
  %v330 = vrot.slane %v320, 2
  %v331 = vrot.slane %v321, 2
  %v332 = vrot.slane %v322, 2
  %333 = vrot.lane.b32.xlu0 %v328, 109
  %v334 = vpop.permute.xlu0 %333
  %335 = vrot.lane.b32.xlu0 %v329, 109
  %v336 = vpop.permute.xlu0 %335
  %337 = vrot.lane.b32.xlu0 %v330, 109
  %v338 = vpop.permute.xlu0 %337
  %339 = vrot.lane.b32.xlu0 %v331, 109
  %v340 = vpop.permute.xlu0 %339
  %341 = vrot.lane.b32.xlu0 %v332, 109
  %v342 = vpop.permute.xlu0 %341
  %vm343 = vcmask 891904
  %v344 = vsel %vm343, %v334, %v336
  %v345 = vsel %vm343, %v336, %v338
  %v346 = vsel %vm343, %v338, %v340
  %v347 = vsel %vm343, %v340, %v342
  %352 = vst [vmem:[#allocation3] sm:$0xc0] %v344
  %353 = vst [vmem:[#allocation3 + $0x8] sm:$0xc0] %v345
  %354 = vst [vmem:[#allocation3 + $0x10] sm:$0xc0] %v346
  %355 = vst [vmem:[#allocation3 + $0x18] sm:$0xc0] %v347
  %356 = vst [vmem:[#allocation3 + $0x20] sm:$0x1] %v344
  %357 = vst [vmem:[#allocation3 + $0x28] sm:$0x1] %v345
  %358 = vst [vmem:[#allocation3 + $0x30] sm:$0x1] %v346
  %359 = vst [vmem:[#allocation3 + $0x38] sm:$0x1] %v347
  %v360 = vld [vmem:[#allocation2] sm:$0x7]
  %v361 = vld [vmem:[#allocation2 + $0x8] sm:$0x7]
  %v362 = vld [vmem:[#allocation2 + $0x10] sm:$0x7]
  %v363 = vld [vmem:[#allocation2 + $0x18] sm:$0x7]
  %v364 = vld [vmem:[#allocation2 + $0x20] sm:$0x7]
  %v365 = vsel %vm146, 1.0, 0.0
  %v366 = vsel %vm147, 1.0, 0.0
  %v367 = vsel %vm148, 1.0, 0.0
  %v368 = vsel %vm149, 1.0, 0.0
  %373 = vrot.lane.b32.xlu0 %v365, 33
  %v374 = vpop.permute.xlu0 %373
  %375 = vrot.lane.b32.xlu0 %v366, 33
  %v376 = vpop.permute.xlu0 %375
  %377 = vrot.lane.b32.xlu0 %v367, 33
  %v378 = vpop.permute.xlu0 %377
  %379 = vrot.lane.b32.xlu0 %v368, 33
  %v380 = vpop.permute.xlu0 %379
  %vm381 = vcmask 269312
  %v382 = vsel %vm381, %v374, %v376
  %v383 = vsel %vm381, %v376, %v378
  %v384 = vsel %vm381, %v378, %v380
  %v390 = vmul.f32 %v360, %v374
  %v391 = vmul.f32 %v361, %v382
  %v392 = vmul.f32 %v362, %v383
  %v393 = vmul.f32 %v363, %v384
  %v394 = vmul.f32 %v364, %v380
  %v400 = vrot.slane %v390, 7
  %v401 = vrot.slane %v391, 7
  %v402 = vrot.slane %v392, 7
  %v403 = vrot.slane %v393, 7
  %v404 = vrot.slane %v394, 7
  %405 = vrot.lane.b32.xlu0 %v400, 95
  %v406 = vpop.permute.xlu0 %405
  %407 = vrot.lane.b32.xlu0 %v401, 95
  %v408 = vpop.permute.xlu0 %407
  %409 = vrot.lane.b32.xlu0 %v402, 95
  %v410 = vpop.permute.xlu0 %409
  %411 = vrot.lane.b32.xlu0 %v403, 95
  %v412 = vpop.permute.xlu0 %411
  %413 = vrot.lane.b32.xlu0 %v404, 95
  %v414 = vpop.permute.xlu0 %413
  %vm415 = vcmask 777216
  %v416 = vsel %vm415, %v406, %v408
  %v417 = vsel %vm415, %v408, %v410
  %v418 = vsel %vm415, %v410, %v412
  %v419 = vsel %vm415, %v412, %v414
  %424 = vst [vmem:[#allocation3 + $0x20] sm:$0xe] %v416
  %425 = vst [vmem:[#allocation3 + $0x28] sm:$0xe] %v417
  %426 = vst [vmem:[#allocation3 + $0x30] sm:$0xe] %v418
  %427 = vst [vmem:[#allocation3 + $0x38] sm:$0xe] %v419
  %v428 = vld [vmem:[#allocation2] sm:$0x7]
  %v429 = vld [vmem:[#allocation2 + $0x8] sm:$0x7]
  %v430 = vld [vmem:[#allocation2 + $0x10] sm:$0x7]
  %v431 = vld [vmem:[#allocation2 + $0x18] sm:$0x7]
  %v432 = vld [vmem:[#allocation2 + $0x20] sm:$0x7]
  %v438 = vrot.slane %v428, 4
  %v439 = vrot.slane %v429, 4
  %v440 = vrot.slane %v430, 4
  %v441 = vrot.slane %v431, 4
  %v442 = vrot.slane %v432, 4
  %443 = vrot.lane.b32.xlu0 %v438, 94
  %v444 = vpop.permute.xlu0 %443
  %445 = vrot.lane.b32.xlu0 %v439, 94
  %v446 = vpop.permute.xlu0 %445
  %447 = vrot.lane.b32.xlu0 %v440, 94
  %v448 = vpop.permute.xlu0 %447
  %449 = vrot.lane.b32.xlu0 %v441, 94
  %v450 = vpop.permute.xlu0 %449
  %451 = vrot.lane.b32.xlu0 %v442, 94
  %v452 = vpop.permute.xlu0 %451
  %vm453 = vcmask 769024
  %v454 = vsel %vm453, %v444, %v446
  %v455 = vsel %vm453, %v446, %v448
  %v456 = vsel %vm453, %v448, %v450
  %v457 = vsel %vm453, %v450, %v452
  %462 = vst [vmem:[#allocation3 + $0x20] sm:$0x70] %v454
  %463 = vst [vmem:[#allocation3 + $0x28] sm:$0x70] %v455
  %464 = vst [vmem:[#allocation3 + $0x30] sm:$0x70] %v456
  %465 = vst [vmem:[#allocation3 + $0x38] sm:$0x70] %v457
  %v466 = vld [vmem:[#allocation2] sm:$0x7]
  %v467 = vld [vmem:[#allocation2 + $0x8] sm:$0x7]
  %v468 = vld [vmem:[#allocation2 + $0x10] sm:$0x7]
  %v469 = vld [vmem:[#allocation2 + $0x18] sm:$0x7]
  %v470 = vld [vmem:[#allocation2 + $0x20] sm:$0x7]
  %v471 = vsel %vm285, 1.0, 0.0
  %v472 = vsel %vm286, 1.0, 0.0
  %v473 = vsel %vm287, 1.0, 0.0
  %v474 = vsel %vm288, 1.0, 0.0
  %479 = vrot.lane.b32.xlu0 %v471, 35
  %v480 = vpop.permute.xlu0 %479
  %481 = vrot.lane.b32.xlu0 %v472, 35
  %v482 = vpop.permute.xlu0 %481
  %483 = vrot.lane.b32.xlu0 %v473, 35
  %v484 = vpop.permute.xlu0 %483
  %485 = vrot.lane.b32.xlu0 %v474, 35
  %v486 = vpop.permute.xlu0 %485
  %vm487 = vcmask 285696
  %v488 = vsel %vm487, %v480, %v482
  %v489 = vsel %vm487, %v482, %v484
  %v490 = vsel %vm487, %v484, %v486
  %v496 = vmul.f32 %v466, %v480
  %v497 = vmul.f32 %v467, %v488
  %v498 = vmul.f32 %v468, %v489
  %v499 = vmul.f32 %v469, %v490
  %v500 = vmul.f32 %v470, %v486
  %v506 = vrot.slane %v496, 1
  %v507 = vrot.slane %v497, 1
  %v508 = vrot.slane %v498, 1
  %v509 = vrot.slane %v499, 1
  %v510 = vrot.slane %v500, 1
  %511 = vrot.lane.b32.xlu0 %v506, 93
  %v512 = vpop.permute.xlu0 %511
  %513 = vrot.lane.b32.xlu0 %v507, 93
  %v514 = vpop.permute.xlu0 %513
  %515 = vrot.lane.b32.xlu0 %v508, 93
  %v516 = vpop.permute.xlu0 %515
  %517 = vrot.lane.b32.xlu0 %v509, 93
  %v518 = vpop.permute.xlu0 %517
  %519 = vrot.lane.b32.xlu0 %v510, 93
  %v520 = vpop.permute.xlu0 %519
  %vm521 = vcmask 760832
  %v522 = vsel %vm521, %v512, %v514
  %v523 = vsel %vm521, %v514, %v516
  %v524 = vsel %vm521, %v516, %v518
  %v525 = vsel %vm521, %v518, %v520
  %530 = vst [vmem:[#allocation3 + $0x20] sm:$0x80] %v522
  %531 = vst [vmem:[#allocation3 + $0x28] sm:$0x80] %v523
  %532 = vst [vmem:[#allocation3 + $0x30] sm:$0x80] %v524
  %533 = vst [vmem:[#allocation3 + $0x38] sm:$0x80] %v525
  %534 = vst [vmem:[#allocation3 + $0x40] sm:$0x3] %v522
  %535 = vst [vmem:[#allocation3 + $0x48] sm:$0x3] %v523
  %536 = vst [vmem:[#allocation3 + $0x50] sm:$0x3] %v524
  %537 = vst [vmem:[#allocation3 + $0x58] sm:$0x3] %v525
  %v538 = vld [vmem:[#allocation2] sm:$0x7]
  %v539 = vld [vmem:[#allocation2 + $0x8] sm:$0x7]
  %v540 = vld [vmem:[#allocation2 + $0x10] sm:$0x7]
  %v541 = vld [vmem:[#allocation2 + $0x18] sm:$0x7]
  %v542 = vld [vmem:[#allocation2 + $0x20] sm:$0x7]
  %vm543 = vcmp.lt.s32.totalorder %v138, 15
  %vm544 = vcmp.lt.s32.totalorder %v139, 15
  %vm545 = vcmp.lt.s32.totalorder %v140, 15
  %vm546 = vcmp.lt.s32.totalorder %v141, 15
  %vm547 = vmand %vm543, %vm146
  %vm548 = vmand %vm544, %vm147
  %vm549 = vmand %vm545, %vm148
  %vm550 = vmand %vm546, %vm149
  %v551 = vsel %vm547, 1.0, 0.0
  %v552 = vsel %vm548, 1.0, 0.0
  %v553 = vsel %vm549, 1.0, 0.0
  %v554 = vsel %vm550, 1.0, 0.0
  %559 = vrot.lane.b32.xlu0 %v551, 49
  %v560 = vpop.permute.xlu0 %559
  %561 = vrot.lane.b32.xlu0 %v552, 49
  %v562 = vpop.permute.xlu0 %561
  %563 = vrot.lane.b32.xlu0 %v553, 49
  %v564 = vpop.permute.xlu0 %563
  %565 = vrot.lane.b32.xlu0 %v554, 49
  %v566 = vpop.permute.xlu0 %565
  %vm567 = vcmask 400384
  %v568 = vsel %vm567, %v560, %v562
  %v569 = vsel %vm567, %v562, %v564
  %v570 = vsel %vm567, %v564, %v566
  %v576 = vmul.f32 %v538, %v560
  %v577 = vmul.f32 %v539, %v568
  %v578 = vmul.f32 %v540, %v569
  %v579 = vmul.f32 %v541, %v570
  %v580 = vmul.f32 %v542, %v566
  %v586 = vrot.slane %v576, 6
  %v587 = vrot.slane %v577, 6
  %v588 = vrot.slane %v578, 6
  %v589 = vrot.slane %v579, 6
  %v590 = vrot.slane %v580, 6
  %591 = vrot.lane.b32.xlu0 %v586, 79
  %v592 = vpop.permute.xlu0 %591
  %593 = vrot.lane.b32.xlu0 %v587, 79
  %v594 = vpop.permute.xlu0 %593
  %595 = vrot.lane.b32.xlu0 %v588, 79
  %v596 = vpop.permute.xlu0 %595
  %597 = vrot.lane.b32.xlu0 %v589, 79
  %v598 = vpop.permute.xlu0 %597
  %599 = vrot.lane.b32.xlu0 %v590, 79
  %v600 = vpop.permute.xlu0 %599
  %vm601 = vcmask 646144
  %v602 = vsel %vm601, %v592, %v594
  %v603 = vsel %vm601, %v594, %v596
  %v604 = vsel %vm601, %v596, %v598
  %v605 = vsel %vm601, %v598, %v600
  %610 = vst [vmem:[#allocation3 + $0x40] sm:$0x1c] %v602
  %611 = vst [vmem:[#allocation3 + $0x48] sm:$0x1c] %v603
  %612 = vst [vmem:[#allocation3 + $0x50] sm:$0x1c] %v604
  %613 = vst [vmem:[#allocation3 + $0x58] sm:$0x1c] %v605
  %v614 = vld [vmem:[#allocation2] sm:$0x7]
  %v615 = vld [vmem:[#allocation2 + $0x8] sm:$0x7]
  %v616 = vld [vmem:[#allocation2 + $0x10] sm:$0x7]
  %v617 = vld [vmem:[#allocation2 + $0x18] sm:$0x7]
  %v618 = vld [vmem:[#allocation2 + $0x20] sm:$0x7]
  %v619 = vsel %vm543, 1.0, 0.0
  %v620 = vsel %vm544, 1.0, 0.0
  %v621 = vsel %vm545, 1.0, 0.0
  %v622 = vsel %vm546, 1.0, 0.0
  %627 = vrot.lane.b32.xlu0 %v619, 50
  %v628 = vpop.permute.xlu0 %627
  %629 = vrot.lane.b32.xlu0 %v620, 50
  %v630 = vpop.permute.xlu0 %629
  %631 = vrot.lane.b32.xlu0 %v621, 50
  %v632 = vpop.permute.xlu0 %631
  %633 = vrot.lane.b32.xlu0 %v622, 50
  %v634 = vpop.permute.xlu0 %633
  %vm635 = vcmask 408576
  %v636 = vsel %vm635, %v628, %v630
  %v637 = vsel %vm635, %v630, %v632
  %v638 = vsel %vm635, %v632, %v634
  %v644 = vmul.f32 %v614, %v628
  %v645 = vmul.f32 %v615, %v636
  %v646 = vmul.f32 %v616, %v637
  %v647 = vmul.f32 %v617, %v638
  %v648 = vmul.f32 %v618, %v634
  %v654 = vrot.slane %v644, 3
  %v655 = vrot.slane %v645, 3
  %v656 = vrot.slane %v646, 3
  %v657 = vrot.slane %v647, 3
  %v658 = vrot.slane %v648, 3
  %659 = vrot.lane.b32.xlu0 %v654, 78
  %v660 = vpop.permute.xlu0 %659
  %661 = vrot.lane.b32.xlu0 %v655, 78
  %v662 = vpop.permute.xlu0 %661
  %663 = vrot.lane.b32.xlu0 %v656, 78
  %v664 = vpop.permute.xlu0 %663
  %665 = vrot.lane.b32.xlu0 %v657, 78
  %v666 = vpop.permute.xlu0 %665
  %667 = vrot.lane.b32.xlu0 %v658, 78
  %v668 = vpop.permute.xlu0 %667
  %vm669 = vcmask 637952
  %v670 = vsel %vm669, %v660, %v662
  %v671 = vsel %vm669, %v662, %v664
  %v672 = vsel %vm669, %v664, %v666
  %v673 = vsel %vm669, %v666, %v668
  %678 = vst [vmem:[#allocation3 + $0x40] sm:$0xe0] %v670
  %679 = vst [vmem:[#allocation3 + $0x48] sm:$0xe0] %v671
  %680 = vst [vmem:[#allocation3 + $0x50] sm:$0xe0] %v672
  %681 = vst [vmem:[#allocation3 + $0x58] sm:$0xe0] %v673
  %v682 = vld [vmem:[#allocation2] sm:$0x7]
  %v683 = vld [vmem:[#allocation2 + $0x8] sm:$0x7]
  %v684 = vld [vmem:[#allocation2 + $0x10] sm:$0x7]
  %v685 = vld [vmem:[#allocation2 + $0x18] sm:$0x7]
  %v686 = vld [vmem:[#allocation2 + $0x20] sm:$0x7]
  %vm687 = vmand %vm543, %vm285
  %vm688 = vmand %vm544, %vm286
  %vm689 = vmand %vm545, %vm287
  %vm690 = vmand %vm546, %vm288
  %v691 = vsel %vm687, 1.0, 0.0
  %v692 = vsel %vm688, 1.0, 0.0
  %v693 = vsel %vm689, 1.0, 0.0
  %v694 = vsel %vm690, 1.0, 0.0
  %699 = vrot.lane.b32.xlu0 %v691, 51
  %v700 = vpop.permute.xlu0 %699
  %701 = vrot.lane.b32.xlu0 %v692, 51
  %v702 = vpop.permute.xlu0 %701
  %703 = vrot.lane.b32.xlu0 %v693, 51
  %v704 = vpop.permute.xlu0 %703
  %705 = vrot.lane.b32.xlu0 %v694, 51
  %v706 = vpop.permute.xlu0 %705
  %vm707 = vcmask 416768
  %v708 = vsel %vm707, %v700, %v702
  %v709 = vsel %vm707, %v702, %v704
  %v710 = vsel %vm707, %v704, %v706
  %v716 = vmul.f32 %v682, %v700
  %v717 = vmul.f32 %v683, %v708
  %v718 = vmul.f32 %v684, %v709
  %v719 = vmul.f32 %v685, %v710
  %v720 = vmul.f32 %v686, %v706
  %726 = vrot.lane.b32.xlu0 %v716, 77
  %v727 = vpop.permute.xlu0 %726
  %728 = vrot.lane.b32.xlu0 %v717, 77
  %v729 = vpop.permute.xlu0 %728
  %730 = vrot.lane.b32.xlu0 %v718, 77
  %v731 = vpop.permute.xlu0 %730
  %732 = vrot.lane.b32.xlu0 %v719, 77
  %v733 = vpop.permute.xlu0 %732
  %734 = vrot.lane.b32.xlu0 %v720, 77
  %v735 = vpop.permute.xlu0 %734
  %vm736 = vcmask 629760
  %v737 = vsel %vm736, %v727, %v729
  %v738 = vsel %vm736, %v729, %v731
  %v739 = vsel %vm736, %v731, %v733
  %v740 = vsel %vm736, %v733, %v735
  %745 = vst [vmem:[#allocation3 + $0x60] sm:$0x7] %v737
  %746 = vst [vmem:[#allocation3 + $0x68] sm:$0x7] %v738
  %747 = vst [vmem:[#allocation3 + $0x70] sm:$0x7] %v739
  %748 = vst [vmem:[#allocation3 + $0x78] sm:$0x7] %v740
  %v749 = vld [vmem:[#allocation3] sm:$0xff]
  %v750 = vld [vmem:[#allocation3 + $0x8] sm:$0xff]
  %v751 = vld [vmem:[#allocation3 + $0x10] sm:$0xff]
  %v752 = vld [vmem:[#allocation3 + $0x18] sm:$0xff]
  %v753 = vld [vmem:[#allocation3 + $0x20] sm:$0xff]
  %v754 = vld [vmem:[#allocation3 + $0x28] sm:$0xff]
  %v755 = vld [vmem:[#allocation3 + $0x30] sm:$0xff]
  %v756 = vld [vmem:[#allocation3 + $0x38] sm:$0xff]
  %v757 = vld [vmem:[#allocation3 + $0x40] sm:$0xff]
  %v758 = vld [vmem:[#allocation3 + $0x48] sm:$0xff]
  %v759 = vld [vmem:[#allocation3 + $0x50] sm:$0xff]
  %v760 = vld [vmem:[#allocation3 + $0x58] sm:$0xff]
  %v761 = vld [vmem:[#allocation3 + $0x60] sm:$0x7]
  %v762 = vld [vmem:[#allocation3 + $0x68] sm:$0x7]
  %v763 = vld [vmem:[#allocation3 + $0x70] sm:$0x7]
  %v764 = vld [vmem:[#allocation3 + $0x78] sm:$0x7]
  %vm765 = vcmask 220160
  %v767 = vsel %vm765, %v84, 0
  %vm769 = vcmask 1042432
  %v771 = vsel %vm769, %v761, 0
  %v774 = vsel %vm769, %v762, 0
  %v777 = vsel %vm769, %v763, 0
  %v780 = vsel %vm769, %v764, 0
  %782 = vmatpush.msra.mxu0 0.0
  %783 = vmatpush.msra.mxu0 0.0
  %784 = vmatpush.msra.mxu0 0.0
  %785 = vmatpush.msra.mxu0 0.0
  %786 = vmatpush.msra.mxu0 0.0
  %787 = vmatpush.msra.mxu0 0.0
  %788 = vmatpush.msra.mxu0 0.0
  %789 = vmatpush.msra.mxu0 0.0
  %790 = vmatpush.msra.mxu0 0.0
  %791 = vmatpush.msra.mxu0 0.0
  %792 = vmatpush.msra.mxu0 0.0
  %793 = vmatpush.msra.mxu0 0.0
  %794 = vmatpush.msra.mxu0 %v771
  %795 = vmatpush.msra.mxu0 %v757
  %796 = vmatpush.msra.mxu0 %v753
  %797 = vmatpush.msra.mxu0 %v749
  %798 = vmatmul.f32.gmra.mxu0 %v767
  %v799 = vpop.f32.mrf.mxu0
  %v800 = vadd.f32 0.0, %v799
  %801 = vdwg.mxu0
  %802 = vmatpush.msra.mxu0 0.0
  %803 = vmatpush.msra.mxu0 0.0
  %804 = vmatpush.msra.mxu0 0.0
  %805 = vmatpush.msra.mxu0 0.0
  %806 = vmatpush.msra.mxu0 0.0
  %807 = vmatpush.msra.mxu0 0.0
  %808 = vmatpush.msra.mxu0 0.0
  %809 = vmatpush.msra.mxu0 0.0
  %810 = vmatpush.msra.mxu0 0.0
  %811 = vmatpush.msra.mxu0 0.0
  %812 = vmatpush.msra.mxu0 0.0
  %813 = vmatpush.msra.mxu0 0.0
  %814 = vmatpush.msra.mxu0 %v774
  %815 = vmatpush.msra.mxu0 %v758
  %816 = vmatpush.msra.mxu0 %v754
  %817 = vmatpush.msra.mxu0 %v750
  %818 = vmatmul.f32.gmra.mxu0 %v767
  %v819 = vpop.f32.mrf.mxu0
  %v820 = vadd.f32 0.0, %v819
  %821 = vdwg.mxu0
  %822 = vmatpush.msra.mxu0 0.0
  %823 = vmatpush.msra.mxu0 0.0
  %824 = vmatpush.msra.mxu0 0.0
  %825 = vmatpush.msra.mxu0 0.0
  %826 = vmatpush.msra.mxu0 0.0
  %827 = vmatpush.msra.mxu0 0.0
  %828 = vmatpush.msra.mxu0 0.0
  %829 = vmatpush.msra.mxu0 0.0
  %830 = vmatpush.msra.mxu0 0.0
  %831 = vmatpush.msra.mxu0 0.0
  %832 = vmatpush.msra.mxu0 0.0
  %833 = vmatpush.msra.mxu0 0.0
  %834 = vmatpush.msra.mxu0 %v777
  %835 = vmatpush.msra.mxu0 %v759
  %836 = vmatpush.msra.mxu0 %v755
  %837 = vmatpush.msra.mxu0 %v751
  %838 = vmatmul.f32.gmra.mxu0 %v767
  %v839 = vpop.f32.mrf.mxu0
  %v840 = vadd.f32 0.0, %v839
  %841 = vdwg.mxu0
  %842 = vmatpush.msra.mxu0 0.0
  %843 = vmatpush.msra.mxu0 0.0
  %844 = vmatpush.msra.mxu0 0.0
  %845 = vmatpush.msra.mxu0 0.0
  %846 = vmatpush.msra.mxu0 0.0
  %847 = vmatpush.msra.mxu0 0.0
  %848 = vmatpush.msra.mxu0 0.0
  %849 = vmatpush.msra.mxu0 0.0
  %850 = vmatpush.msra.mxu0 0.0
  %851 = vmatpush.msra.mxu0 0.0
  %852 = vmatpush.msra.mxu0 0.0
  %853 = vmatpush.msra.mxu0 0.0
  %854 = vmatpush.msra.mxu0 %v780
  %855 = vmatpush.msra.mxu0 %v760
  %856 = vmatpush.msra.mxu0 %v756
  %857 = vmatpush.msra.mxu0 %v752
  %858 = vmatmul.f32.gmra.mxu0 %v767
  %v859 = vpop.f32.mrf.mxu0
  %v860 = vadd.f32 0.0, %v859
  %861 = vdwg.mxu0
  %v862 = vadd.f32 %v800, %v820
  %v863 = vadd.f32 %v862, %v840
  %v864 = vadd.f32 %v863, %v860
  %865 = vadd.xlane.f32.xlu0 %v864
  %v866 = vpop.xlane.xlu0 %865
  %v867 = vmul.f32 %v866, 0.001953125
  %v868 = vsub.f32 %v800, %v867
  %v869 = vsub.f32 %v820, %v867
  %v870 = vsub.f32 %v840, %v867
  %v871 = vsub.f32 %v860, %v867
  %v872 = vmul.f32 %v868, %v868
  %v873 = vmul.f32 %v869, %v869
  %v874 = vmul.f32 %v870, %v870
  %v875 = vmul.f32 %v871, %v871
  %v876 = vadd.f32 %v872, %v873
  %v877 = vadd.f32 %v876, %v874
  %v878 = vadd.f32 %v877, %v875
  %879 = vadd.xlane.f32.xlu0 %v878
  %v880 = vpop.xlane.xlu0 %879
  %v881 = vmul.f32 %v880, 0.001953125
  %v882 = vadd.f32 %v881, 1e-05
  %v883 = vrsqrt.pop %v882
  %v884 = vmul.f32 %v883, %v882
  %v885 = vmul.f32 %v884, %v883
  %v886 = vmul.f32 0.5, %v885
  %v887 = vsub.f32 1.5, %v886
  %v888 = vmul.f32 %v883, %v887
  %vm889 = vweird.f32 %v882
  %vm890 = vweird.f32 %v883
  %vm891 = vmor %vm889, %vm890
  %v892 = vsel %vm891, %v883, %v888
  %v893 = vmul.f32 %v892, %v85
  %895 = vset.pattern.permute.xlu0 0
  %896 = vperm.xlu0 %895, %v893
  %v897 = vpop.permute.xlu0 %896
  %v899 = vmul.f32 %v868, %v897
  %v900 = vmul.f32 %v869, %v897
  %v901 = vmul.f32 %v870, %v897
  %v902 = vmul.f32 %v871, %v897
  %904 = vset.pattern.permute.xlu0 0
  %905 = vperm.xlu0 %904, %v86
  %v906 = vpop.permute.xlu0 %905
  %v908 = vadd.f32 %v899, %v906
  %v909 = vadd.f32 %v900, %v906
  %v910 = vadd.f32 %v901, %v906
  %v911 = vadd.f32 %v902, %v906
  %v912 = vsub.f32 0.0, %v908
  %v913 = vsub.f32 0.0, %v909
  %v914 = vsub.f32 0.0, %v910
  %v915 = vsub.f32 0.0, %v911
  %v916 = vmul.f32 %v912, 1.442695
  %v917 = vpow.pop %v916
  %v918 = vmul.f32 %v913, 1.442695
  %v919 = vpow.pop %v918
  %v920 = vmul.f32 %v914, 1.442695
  %v921 = vpow.pop %v920
  %v922 = vmul.f32 %v915, 1.442695
  %v923 = vpow.pop %v922
  %v924 = vadd.f32 %v917, 1.0
  %v925 = vadd.f32 %v919, 1.0
  %v926 = vadd.f32 %v921, 1.0
  %v927 = vadd.f32 %v923, 1.0
  %v928 = vrcp.pop %v924
  %v929 = vmul.f32 %v924, %v928
  %v930 = vsub.f32 1.0, %v929
  %v931 = vmul.f32 %v928, %v930
  %v932 = vadd.f32 %v928, %v931
  %vm933 = vweird.f32 %v924
  %vm934 = vweird.f32 %v928
  %vm935 = vmor %vm933, %vm934
  %v936 = vsel %vm935, %v928, %v932
  %v937 = vand.u32 2147483647, %v924
  %vm938 = vcmp.eq.f32.partialorder %v937, 8.507059e+37
  %v939 = vand.u32 %v924, 2147483648
  %v940 = vor.u32 1.1754944e-38, %v939
  %v941 = vsel %vm938, %v940, %v936
  %v942 = vmul.f32 1.0, %v941
  %v943 = vrcp.pop %v925
  %v944 = vmul.f32 %v925, %v943
  %v945 = vsub.f32 1.0, %v944
  %v946 = vmul.f32 %v943, %v945
  %v947 = vadd.f32 %v943, %v946
  %vm948 = vweird.f32 %v925
  %vm949 = vweird.f32 %v943
  %vm950 = vmor %vm948, %vm949
  %v951 = vsel %vm950, %v943, %v947
  %v952 = vand.u32 2147483647, %v925
  %vm953 = vcmp.eq.f32.partialorder %v952, 8.507059e+37
  %v954 = vand.u32 %v925, 2147483648
  %v955 = vor.u32 1.1754944e-38, %v954
  %v956 = vsel %vm953, %v955, %v951
  %v957 = vmul.f32 1.0, %v956
  %v958 = vrcp.pop %v926
  %v959 = vmul.f32 %v926, %v958
  %v960 = vsub.f32 1.0, %v959
  %v961 = vmul.f32 %v958, %v960
  %v962 = vadd.f32 %v958, %v961
  %vm963 = vweird.f32 %v926
  %vm964 = vweird.f32 %v958
  %vm965 = vmor %vm963, %vm964
  %v966 = vsel %vm965, %v958, %v962
  %v967 = vand.u32 2147483647, %v926
  %vm968 = vcmp.eq.f32.partialorder %v967, 8.507059e+37
  %v969 = vand.u32 %v926, 2147483648
  %v970 = vor.u32 1.1754944e-38, %v969
  %v971 = vsel %vm968, %v970, %v966
  %v972 = vmul.f32 1.0, %v971
  %v973 = vrcp.pop %v927
  %v974 = vmul.f32 %v927, %v973
  %v975 = vsub.f32 1.0, %v974
  %v976 = vmul.f32 %v973, %v975
  %v977 = vadd.f32 %v973, %v976
  %vm978 = vweird.f32 %v927
  %vm979 = vweird.f32 %v973
  %vm980 = vmor %vm978, %vm979
  %v981 = vsel %vm980, %v973, %v977
  %v982 = vand.u32 2147483647, %v927
  %vm983 = vcmp.eq.f32.partialorder %v982, 8.507059e+37
  %v984 = vand.u32 %v927, 2147483648
  %v985 = vor.u32 1.1754944e-38, %v984
  %v986 = vsel %vm983, %v985, %v981
  %v987 = vmul.f32 1.0, %v986
  %v988 = vmul.f32 %v908, %v942
  %v989 = vmul.f32 %v909, %v957
  %v990 = vmul.f32 %v910, %v972
  %v991 = vmul.f32 %v911, %v987
  %v992 = vld [vmem:[%s4] sm:$0xff]
  %v993 = vld [vmem:[%s5] sm:$0xff]
  %v994 = vld [vmem:[%s6] sm:$0xff]
  %999 = vrot.lane.b32.xlu0 %v988, 34
  %v1000 = vpop.permute.xlu0 %999
  %1001 = vrot.lane.b32.xlu0 %v989, 34
  %v1002 = vpop.permute.xlu0 %1001
  %1003 = vrot.lane.b32.xlu0 %v990, 34
  %v1004 = vpop.permute.xlu0 %1003
  %1005 = vrot.lane.b32.xlu0 %v991, 34
  %v1006 = vpop.permute.xlu0 %1005
  %v1007 = vsel %vm104, %v1000, %v1002
  %v1008 = vsel %vm104, %v1002, %v1004
  %v1009 = vsel %vm104, %v1004, %v1006
  %vm1015 = vcmask 1047824
  %1016 = vst.msk [vmem:[#allocation2] sm:$0xff] %vm1015, %v1000
  %1017 = vst [vmem:[#allocation2 + $0x8] sm:$0xff] %v1007
  %1018 = vst [vmem:[#allocation2 + $0x10] sm:$0xff] %v1008
  %1019 = vst [vmem:[#allocation2 + $0x18] sm:$0xff] %v1009
  %1020 = vst.msk [vmem:[#allocation2 + $0x20] sm:$0xff] %vm104, %v1006
  %v1021 = vld [vmem:[#allocation2] sm:$0xff]
  %v1022 = vld [vmem:[#allocation2 + $0x8] sm:$0xff]
  %v1023 = vld [vmem:[#allocation2 + $0x10] sm:$0xff]
  %v1024 = vld [vmem:[#allocation2 + $0x18] sm:$0xff]
  %v1025 = vld [vmem:[#allocation2 + $0x20] sm:$0xff]
  %v1026 = vmul.f32 %v1021, %v163
  %v1027 = vmul.f32 %v1022, %v171
  %v1028 = vmul.f32 %v1023, %v172
  %v1029 = vmul.f32 %v1024, %v173
  %v1030 = vmul.f32 %v1025, %v169
  %1036 = vrot.lane.b32.xlu0 %v1026, 111
  %v1037 = vpop.permute.xlu0 %1036
  %1038 = vrot.lane.b32.xlu0 %v1027, 111
  %v1039 = vpop.permute.xlu0 %1038
  %1040 = vrot.lane.b32.xlu0 %v1028, 111
  %v1041 = vpop.permute.xlu0 %1040
  %1042 = vrot.lane.b32.xlu0 %v1029, 111
  %v1043 = vpop.permute.xlu0 %1042
  %1044 = vrot.lane.b32.xlu0 %v1030, 111
  %v1045 = vpop.permute.xlu0 %1044
  %v1046 = vsel %vm199, %v1037, %v1039
  %v1047 = vsel %vm199, %v1039, %v1041
  %v1048 = vsel %vm199, %v1041, %v1043
  %v1049 = vsel %vm199, %v1043, %v1045
  %1054 = vst [vmem:[#allocation3] sm:$0xff] %v1046
  %1055 = vst [vmem:[#allocation3 + $0x8] sm:$0xff] %v1047
  %1056 = vst [vmem:[#allocation3 + $0x10] sm:$0xff] %v1048
  %1057 = vst [vmem:[#allocation3 + $0x18] sm:$0xff] %v1049
  %v1058 = vld [vmem:[#allocation2] sm:$0xff]
  %v1059 = vld [vmem:[#allocation2 + $0x8] sm:$0xff]
  %v1060 = vld [vmem:[#allocation2 + $0x10] sm:$0xff]
  %v1061 = vld [vmem:[#allocation2 + $0x18] sm:$0xff]
  %v1062 = vld [vmem:[#allocation2 + $0x20] sm:$0xff]
  %v1063 = vmul.f32 %v1058, %v226
  %v1064 = vmul.f32 %v1059, %v234
  %v1065 = vmul.f32 %v1060, %v235
  %v1066 = vmul.f32 %v1061, %v236
  %v1067 = vmul.f32 %v1062, %v232
  %1073 = vrot.lane.b32.xlu0 %v1063, 110
  %v1074 = vpop.permute.xlu0 %1073
  %1075 = vrot.lane.b32.xlu0 %v1064, 110
  %v1076 = vpop.permute.xlu0 %1075
  %1077 = vrot.lane.b32.xlu0 %v1065, 110
  %v1078 = vpop.permute.xlu0 %1077
  %1079 = vrot.lane.b32.xlu0 %v1066, 110
  %v1080 = vpop.permute.xlu0 %1079
  %1081 = vrot.lane.b32.xlu0 %v1067, 110
  %v1082 = vpop.permute.xlu0 %1081
  %v1083 = vsel %vm267, %v1074, %v1076
  %v1084 = vsel %vm267, %v1076, %v1078
  %v1085 = vsel %vm267, %v1078, %v1080
  %v1086 = vsel %vm267, %v1080, %v1082
  %1091 = vst [vmem:[#allocation3 + $0x20] sm:$0xff] %v1083
  %1092 = vst [vmem:[#allocation3 + $0x28] sm:$0xff] %v1084
  %1093 = vst [vmem:[#allocation3 + $0x30] sm:$0xff] %v1085
  %1094 = vst [vmem:[#allocation3 + $0x38] sm:$0xff] %v1086
  %v1095 = vld [vmem:[#allocation2] sm:$0xff]
  %v1096 = vld [vmem:[#allocation2 + $0x8] sm:$0xff]
  %v1097 = vld [vmem:[#allocation2 + $0x10] sm:$0xff]
  %v1098 = vld [vmem:[#allocation2 + $0x18] sm:$0xff]
  %v1099 = vld [vmem:[#allocation2 + $0x20] sm:$0xff]
  %v1100 = vmul.f32 %v1095, %v302
  %v1101 = vmul.f32 %v1096, %v310
  %v1102 = vmul.f32 %v1097, %v311
  %v1103 = vmul.f32 %v1098, %v312
  %v1104 = vmul.f32 %v1099, %v308
  %1110 = vrot.lane.b32.xlu0 %v1100, 109
  %v1111 = vpop.permute.xlu0 %1110
  %1112 = vrot.lane.b32.xlu0 %v1101, 109
  %v1113 = vpop.permute.xlu0 %1112
  %1114 = vrot.lane.b32.xlu0 %v1102, 109
  %v1115 = vpop.permute.xlu0 %1114
  %1116 = vrot.lane.b32.xlu0 %v1103, 109
  %v1117 = vpop.permute.xlu0 %1116
  %1118 = vrot.lane.b32.xlu0 %v1104, 109
  %v1119 = vpop.permute.xlu0 %1118
  %v1120 = vsel %vm343, %v1111, %v1113
  %v1121 = vsel %vm343, %v1113, %v1115
  %v1122 = vsel %vm343, %v1115, %v1117
  %v1123 = vsel %vm343, %v1117, %v1119
  %1128 = vst [vmem:[#allocation3 + $0x40] sm:$0xff] %v1120
  %1129 = vst [vmem:[#allocation3 + $0x48] sm:$0xff] %v1121
  %1130 = vst [vmem:[#allocation3 + $0x50] sm:$0xff] %v1122
  %1131 = vst [vmem:[#allocation3 + $0x58] sm:$0xff] %v1123
  %v1132 = vld [vmem:[#allocation2] sm:$0xff]
  %v1133 = vld [vmem:[#allocation2 + $0x8] sm:$0xff]
  %v1134 = vld [vmem:[#allocation2 + $0x10] sm:$0xff]
  %v1135 = vld [vmem:[#allocation2 + $0x18] sm:$0xff]
  %v1136 = vld [vmem:[#allocation2 + $0x20] sm:$0xff]
  %vm1137 = vcmp.lt.s32.totalorder %v130, 14
  %vm1138 = vcmp.lt.s32.totalorder %v131, 14
  %vm1139 = vcmp.lt.s32.totalorder %v132, 14
  %vm1140 = vcmp.lt.s32.totalorder %v133, 14
  %vm1141 = vmand %vm142, %vm1137
  %vm1142 = vmand %vm143, %vm1138
  %vm1143 = vmand %vm144, %vm1139
  %vm1144 = vmand %vm145, %vm1140
  %v1145 = vsel %vm1141, 1.0, 0.0
  %v1146 = vsel %vm1142, 1.0, 0.0
  %v1147 = vsel %vm1143, 1.0, 0.0
  %v1148 = vsel %vm1144, 1.0, 0.0
  %1153 = vrot.lane.b32.xlu0 %v1145, 20
  %v1154 = vpop.permute.xlu0 %1153
  %1155 = vrot.lane.b32.xlu0 %v1146, 20
  %v1156 = vpop.permute.xlu0 %1155
  %1157 = vrot.lane.b32.xlu0 %v1147, 20
  %v1158 = vpop.permute.xlu0 %1157
  %1159 = vrot.lane.b32.xlu0 %v1148, 20
  %v1160 = vpop.permute.xlu0 %1159
  %vm1161 = vcmask 162816
  %v1162 = vsel %vm1161, %v1154, %v1156
  %v1163 = vsel %vm1161, %v1156, %v1158
  %v1164 = vsel %vm1161, %v1158, %v1160
  %v1170 = vmul.f32 %v1132, %v1154
  %v1171 = vmul.f32 %v1133, %v1162
  %v1172 = vmul.f32 %v1134, %v1163
  %v1173 = vmul.f32 %v1135, %v1164
  %v1174 = vmul.f32 %v1136, %v1160
  %1180 = vrot.lane.b32.xlu0 %v1170, 108
  %v1181 = vpop.permute.xlu0 %1180
  %1182 = vrot.lane.b32.xlu0 %v1171, 108
  %v1183 = vpop.permute.xlu0 %1182
  %1184 = vrot.lane.b32.xlu0 %v1172, 108
  %v1185 = vpop.permute.xlu0 %1184
  %1186 = vrot.lane.b32.xlu0 %v1173, 108
  %v1187 = vpop.permute.xlu0 %1186
  %1188 = vrot.lane.b32.xlu0 %v1174, 108
  %v1189 = vpop.permute.xlu0 %1188
  %vm1190 = vcmask 883712
  %v1191 = vsel %vm1190, %v1181, %v1183
  %v1192 = vsel %vm1190, %v1183, %v1185
  %v1193 = vsel %vm1190, %v1185, %v1187
  %v1194 = vsel %vm1190, %v1187, %v1189
  %1199 = vst [vmem:[#allocation3 + $0x60] sm:$0xff] %v1191
  %1200 = vst [vmem:[#allocation3 + $0x68] sm:$0xff] %v1192
  %1201 = vst [vmem:[#allocation3 + $0x70] sm:$0xff] %v1193
  %1202 = vst [vmem:[#allocation3 + $0x78] sm:$0xff] %v1194
  %v1203 = vld [vmem:[#allocation2] sm:$0xff]
  %v1204 = vld [vmem:[#allocation2 + $0x8] sm:$0xff]
  %v1205 = vld [vmem:[#allocation2 + $0x10] sm:$0xff]
  %v1206 = vld [vmem:[#allocation2 + $0x18] sm:$0xff]
  %v1207 = vld [vmem:[#allocation2 + $0x20] sm:$0xff]
  %v1208 = vmul.f32 %v1203, %v374
  %v1209 = vmul.f32 %v1204, %v382
  %v1210 = vmul.f32 %v1205, %v383
  %v1211 = vmul.f32 %v1206, %v384
  %v1212 = vmul.f32 %v1207, %v380
  %1218 = vrot.lane.b32.xlu0 %v1208, 95
  %v1219 = vpop.permute.xlu0 %1218
  %1220 = vrot.lane.b32.xlu0 %v1209, 95
  %v1221 = vpop.permute.xlu0 %1220
  %1222 = vrot.lane.b32.xlu0 %v1210, 95
  %v1223 = vpop.permute.xlu0 %1222
  %1224 = vrot.lane.b32.xlu0 %v1211, 95
  %v1225 = vpop.permute.xlu0 %1224
  %1226 = vrot.lane.b32.xlu0 %v1212, 95
  %v1227 = vpop.permute.xlu0 %1226
  %v1228 = vsel %vm415, %v1219, %v1221
  %v1229 = vsel %vm415, %v1221, %v1223
  %v1230 = vsel %vm415, %v1223, %v1225
  %v1231 = vsel %vm415, %v1225, %v1227
  %1236 = vst [vmem:[#allocation3 + $0x80] sm:$0xff] %v1228
  %1237 = vst [vmem:[#allocation3 + $0x88] sm:$0xff] %v1229
  %1238 = vst [vmem:[#allocation3 + $0x90] sm:$0xff] %v1230
  %1239 = vst [vmem:[#allocation3 + $0x98] sm:$0xff] %v1231
  %v1240 = vld [vmem:[#allocation2] sm:$0xff]
  %v1241 = vld [vmem:[#allocation2 + $0x8] sm:$0xff]
  %v1242 = vld [vmem:[#allocation2 + $0x10] sm:$0xff]
  %v1243 = vld [vmem:[#allocation2 + $0x18] sm:$0xff]
  %v1244 = vld [vmem:[#allocation2 + $0x20] sm:$0xff]
  %1250 = vrot.lane.b32.xlu0 %v1240, 94
  %v1251 = vpop.permute.xlu0 %1250
  %1252 = vrot.lane.b32.xlu0 %v1241, 94
  %v1253 = vpop.permute.xlu0 %1252
  %1254 = vrot.lane.b32.xlu0 %v1242, 94
  %v1255 = vpop.permute.xlu0 %1254
  %1256 = vrot.lane.b32.xlu0 %v1243, 94
  %v1257 = vpop.permute.xlu0 %1256
  %1258 = vrot.lane.b32.xlu0 %v1244, 94
  %v1259 = vpop.permute.xlu0 %1258
  %v1260 = vsel %vm453, %v1251, %v1253
  %v1261 = vsel %vm453, %v1253, %v1255
  %v1262 = vsel %vm453, %v1255, %v1257
  %v1263 = vsel %vm453, %v1257, %v1259
  %1268 = vst [vmem:[#allocation3 + $0xa0] sm:$0xff] %v1260
  %1269 = vst [vmem:[#allocation3 + $0xa8] sm:$0xff] %v1261
  %1270 = vst [vmem:[#allocation3 + $0xb0] sm:$0xff] %v1262
  %1271 = vst [vmem:[#allocation3 + $0xb8] sm:$0xff] %v1263
  %v1272 = vld [vmem:[#allocation2] sm:$0xff]
  %v1273 = vld [vmem:[#allocation2 + $0x8] sm:$0xff]
  %v1274 = vld [vmem:[#allocation2 + $0x10] sm:$0xff]
  %v1275 = vld [vmem:[#allocation2 + $0x18] sm:$0xff]
  %v1276 = vld [vmem:[#allocation2 + $0x20] sm:$0xff]
  %v1277 = vmul.f32 %v1272, %v480
  %v1278 = vmul.f32 %v1273, %v488
  %v1279 = vmul.f32 %v1274, %v489
  %v1280 = vmul.f32 %v1275, %v490
  %v1281 = vmul.f32 %v1276, %v486
  %1287 = vrot.lane.b32.xlu0 %v1277, 93
  %v1288 = vpop.permute.xlu0 %1287
  %1289 = vrot.lane.b32.xlu0 %v1278, 93
  %v1290 = vpop.permute.xlu0 %1289
  %1291 = vrot.lane.b32.xlu0 %v1279, 93
  %v1292 = vpop.permute.xlu0 %1291
  %1293 = vrot.lane.b32.xlu0 %v1280, 93
  %v1294 = vpop.permute.xlu0 %1293
  %1295 = vrot.lane.b32.xlu0 %v1281, 93
  %v1296 = vpop.permute.xlu0 %1295
  %v1297 = vsel %vm521, %v1288, %v1290
  %v1298 = vsel %vm521, %v1290, %v1292
  %v1299 = vsel %vm521, %v1292, %v1294
  %v1300 = vsel %vm521, %v1294, %v1296
  %1305 = vst [vmem:[#allocation3 + $0xc0] sm:$0xff] %v1297
  %1306 = vst [vmem:[#allocation3 + $0xc8] sm:$0xff] %v1298
  %1307 = vst [vmem:[#allocation3 + $0xd0] sm:$0xff] %v1299
  %1308 = vst [vmem:[#allocation3 + $0xd8] sm:$0xff] %v1300
  %v1309 = vld [vmem:[#allocation2] sm:$0xff]
  %v1310 = vld [vmem:[#allocation2 + $0x8] sm:$0xff]
  %v1311 = vld [vmem:[#allocation2 + $0x10] sm:$0xff]
  %v1312 = vld [vmem:[#allocation2 + $0x18] sm:$0xff]
  %v1313 = vld [vmem:[#allocation2 + $0x20] sm:$0xff]
  %v1314 = vsel %vm1137, 1.0, 0.0
  %v1315 = vsel %vm1138, 1.0, 0.0
  %v1316 = vsel %vm1139, 1.0, 0.0
  %v1317 = vsel %vm1140, 1.0, 0.0
  %1322 = vrot.lane.b32.xlu0 %v1314, 36
  %v1323 = vpop.permute.xlu0 %1322
  %1324 = vrot.lane.b32.xlu0 %v1315, 36
  %v1325 = vpop.permute.xlu0 %1324
  %1326 = vrot.lane.b32.xlu0 %v1316, 36
  %v1327 = vpop.permute.xlu0 %1326
  %1328 = vrot.lane.b32.xlu0 %v1317, 36
  %v1329 = vpop.permute.xlu0 %1328
  %vm1330 = vcmask 293888
  %v1331 = vsel %vm1330, %v1323, %v1325
  %v1332 = vsel %vm1330, %v1325, %v1327
  %v1333 = vsel %vm1330, %v1327, %v1329
  %v1339 = vmul.f32 %v1309, %v1323
  %v1340 = vmul.f32 %v1310, %v1331
  %v1341 = vmul.f32 %v1311, %v1332
  %v1342 = vmul.f32 %v1312, %v1333
  %v1343 = vmul.f32 %v1313, %v1329
  %1349 = vrot.lane.b32.xlu0 %v1339, 92
  %v1350 = vpop.permute.xlu0 %1349
  %1351 = vrot.lane.b32.xlu0 %v1340, 92
  %v1352 = vpop.permute.xlu0 %1351
  %1353 = vrot.lane.b32.xlu0 %v1341, 92
  %v1354 = vpop.permute.xlu0 %1353
  %1355 = vrot.lane.b32.xlu0 %v1342, 92
  %v1356 = vpop.permute.xlu0 %1355
  %1357 = vrot.lane.b32.xlu0 %v1343, 92
  %v1358 = vpop.permute.xlu0 %1357
  %vm1359 = vcmask 752640
  %v1360 = vsel %vm1359, %v1350, %v1352
  %v1361 = vsel %vm1359, %v1352, %v1354
  %v1362 = vsel %vm1359, %v1354, %v1356
  %v1363 = vsel %vm1359, %v1356, %v1358
  %1368 = vst [vmem:[#allocation3 + $0xe0] sm:$0xff] %v1360
  %1369 = vst [vmem:[#allocation3 + $0xe8] sm:$0xff] %v1361
  %1370 = vst [vmem:[#allocation3 + $0xf0] sm:$0xff] %v1362
  %1371 = vst [vmem:[#allocation3 + $0xf8] sm:$0xff] %v1363
  %v1372 = vld [vmem:[#allocation2] sm:$0xff]
  %v1373 = vld [vmem:[#allocation2 + $0x8] sm:$0xff]
  %v1374 = vld [vmem:[#allocation2 + $0x10] sm:$0xff]
  %v1375 = vld [vmem:[#allocation2 + $0x18] sm:$0xff]
  %v1376 = vld [vmem:[#allocation2 + $0x20] sm:$0xff]
  %v1377 = vmul.f32 %v1372, %v560
  %v1378 = vmul.f32 %v1373, %v568
  %v1379 = vmul.f32 %v1374, %v569
  %v1380 = vmul.f32 %v1375, %v570
  %v1381 = vmul.f32 %v1376, %v566
  %1387 = vrot.lane.b32.xlu0 %v1377, 79
  %v1388 = vpop.permute.xlu0 %1387
  %1389 = vrot.lane.b32.xlu0 %v1378, 79
  %v1390 = vpop.permute.xlu0 %1389
  %1391 = vrot.lane.b32.xlu0 %v1379, 79
  %v1392 = vpop.permute.xlu0 %1391
  %1393 = vrot.lane.b32.xlu0 %v1380, 79
  %v1394 = vpop.permute.xlu0 %1393
  %1395 = vrot.lane.b32.xlu0 %v1381, 79
  %v1396 = vpop.permute.xlu0 %1395
  %v1397 = vsel %vm601, %v1388, %v1390
  %v1398 = vsel %vm601, %v1390, %v1392
  %v1399 = vsel %vm601, %v1392, %v1394
  %v1400 = vsel %vm601, %v1394, %v1396
  %1405 = vst [vmem:[#allocation3 + $0x100] sm:$0xff] %v1397
  %1406 = vst [vmem:[#allocation3 + $0x108] sm:$0xff] %v1398
  %1407 = vst [vmem:[#allocation3 + $0x110] sm:$0xff] %v1399
  %1408 = vst [vmem:[#allocation3 + $0x118] sm:$0xff] %v1400
  %v1409 = vld [vmem:[#allocation2] sm:$0xff]
  %v1410 = vld [vmem:[#allocation2 + $0x8] sm:$0xff]
  %v1411 = vld [vmem:[#allocation2 + $0x10] sm:$0xff]
  %v1412 = vld [vmem:[#allocation2 + $0x18] sm:$0xff]
  %v1413 = vld [vmem:[#allocation2 + $0x20] sm:$0xff]
  %v1414 = vmul.f32 %v1409, %v628
  %v1415 = vmul.f32 %v1410, %v636
  %v1416 = vmul.f32 %v1411, %v637
  %v1417 = vmul.f32 %v1412, %v638
  %v1418 = vmul.f32 %v1413, %v634
  %1424 = vrot.lane.b32.xlu0 %v1414, 78
  %v1425 = vpop.permute.xlu0 %1424
  %1426 = vrot.lane.b32.xlu0 %v1415, 78
  %v1427 = vpop.permute.xlu0 %1426
  %1428 = vrot.lane.b32.xlu0 %v1416, 78
  %v1429 = vpop.permute.xlu0 %1428
  %1430 = vrot.lane.b32.xlu0 %v1417, 78
  %v1431 = vpop.permute.xlu0 %1430
  %1432 = vrot.lane.b32.xlu0 %v1418, 78
  %v1433 = vpop.permute.xlu0 %1432
  %v1434 = vsel %vm669, %v1425, %v1427
  %v1435 = vsel %vm669, %v1427, %v1429
  %v1436 = vsel %vm669, %v1429, %v1431
  %v1437 = vsel %vm669, %v1431, %v1433
  %1442 = vst [vmem:[#allocation3 + $0x120] sm:$0xff] %v1434
  %1443 = vst [vmem:[#allocation3 + $0x128] sm:$0xff] %v1435
  %1444 = vst [vmem:[#allocation3 + $0x130] sm:$0xff] %v1436
  %1445 = vst [vmem:[#allocation3 + $0x138] sm:$0xff] %v1437
  %v1446 = vld [vmem:[#allocation2] sm:$0xff]
  %v1447 = vld [vmem:[#allocation2 + $0x8] sm:$0xff]
  %v1448 = vld [vmem:[#allocation2 + $0x10] sm:$0xff]
  %v1449 = vld [vmem:[#allocation2 + $0x18] sm:$0xff]
  %v1450 = vld [vmem:[#allocation2 + $0x20] sm:$0xff]
  %v1451 = vmul.f32 %v1446, %v700
  %v1452 = vmul.f32 %v1447, %v708
  %v1453 = vmul.f32 %v1448, %v709
  %v1454 = vmul.f32 %v1449, %v710
  %v1455 = vmul.f32 %v1450, %v706
  %1461 = vrot.lane.b32.xlu0 %v1451, 77
  %v1462 = vpop.permute.xlu0 %1461
  %1463 = vrot.lane.b32.xlu0 %v1452, 77
  %v1464 = vpop.permute.xlu0 %1463
  %1465 = vrot.lane.b32.xlu0 %v1453, 77
  %v1466 = vpop.permute.xlu0 %1465
  %1467 = vrot.lane.b32.xlu0 %v1454, 77
  %v1468 = vpop.permute.xlu0 %1467
  %1469 = vrot.lane.b32.xlu0 %v1455, 77
  %v1470 = vpop.permute.xlu0 %1469
  %v1471 = vsel %vm736, %v1462, %v1464
  %v1472 = vsel %vm736, %v1464, %v1466
  %v1473 = vsel %vm736, %v1466, %v1468
  %v1474 = vsel %vm736, %v1468, %v1470
  %1479 = vst [vmem:[#allocation3 + $0x140] sm:$0xff] %v1471
  %1480 = vst [vmem:[#allocation3 + $0x148] sm:$0xff] %v1472
  %1481 = vst [vmem:[#allocation3 + $0x150] sm:$0xff] %v1473
  %1482 = vst [vmem:[#allocation3 + $0x158] sm:$0xff] %v1474
  %v1483 = vld [vmem:[#allocation2] sm:$0xff]
  %v1484 = vld [vmem:[#allocation2 + $0x8] sm:$0xff]
  %v1485 = vld [vmem:[#allocation2 + $0x10] sm:$0xff]
  %v1486 = vld [vmem:[#allocation2 + $0x18] sm:$0xff]
  %v1487 = vld [vmem:[#allocation2 + $0x20] sm:$0xff]
  %vm1488 = vmand %vm543, %vm1137
  %vm1489 = vmand %vm544, %vm1138
  %vm1490 = vmand %vm545, %vm1139
  %vm1491 = vmand %vm546, %vm1140
  %v1492 = vsel %vm1488, 1.0, 0.0
  %v1493 = vsel %vm1489, 1.0, 0.0
  %v1494 = vsel %vm1490, 1.0, 0.0
  %v1495 = vsel %vm1491, 1.0, 0.0
  %1500 = vrot.lane.b32.xlu0 %v1492, 52
  %v1501 = vpop.permute.xlu0 %1500
  %1502 = vrot.lane.b32.xlu0 %v1493, 52
  %v1503 = vpop.permute.xlu0 %1502
  %1504 = vrot.lane.b32.xlu0 %v1494, 52
  %v1505 = vpop.permute.xlu0 %1504
  %1506 = vrot.lane.b32.xlu0 %v1495, 52
  %v1507 = vpop.permute.xlu0 %1506
  %vm1508 = vcmask 424960
  %v1509 = vsel %vm1508, %v1501, %v1503
  %v1510 = vsel %vm1508, %v1503, %v1505
  %v1511 = vsel %vm1508, %v1505, %v1507
  %v1517 = vmul.f32 %v1483, %v1501
  %v1518 = vmul.f32 %v1484, %v1509
  %v1519 = vmul.f32 %v1485, %v1510
  %v1520 = vmul.f32 %v1486, %v1511
  %v1521 = vmul.f32 %v1487, %v1507
  %1527 = vrot.lane.b32.xlu0 %v1517, 76
  %v1528 = vpop.permute.xlu0 %1527
  %1529 = vrot.lane.b32.xlu0 %v1518, 76
  %v1530 = vpop.permute.xlu0 %1529
  %1531 = vrot.lane.b32.xlu0 %v1519, 76
  %v1532 = vpop.permute.xlu0 %1531
  %1533 = vrot.lane.b32.xlu0 %v1520, 76
  %v1534 = vpop.permute.xlu0 %1533
  %1535 = vrot.lane.b32.xlu0 %v1521, 76
  %v1536 = vpop.permute.xlu0 %1535
  %vm1537 = vcmask 621568
  %v1538 = vsel %vm1537, %v1528, %v1530
  %v1539 = vsel %vm1537, %v1530, %v1532
  %v1540 = vsel %vm1537, %v1532, %v1534
  %v1541 = vsel %vm1537, %v1534, %v1536
  %1546 = vst [vmem:[#allocation3 + $0x160] sm:$0xff] %v1538
  %1547 = vst [vmem:[#allocation3 + $0x168] sm:$0xff] %v1539
  %1548 = vst [vmem:[#allocation3 + $0x170] sm:$0xff] %v1540
  %1549 = vst [vmem:[#allocation3 + $0x178] sm:$0xff] %v1541
  %v1550 = vld [vmem:[#allocation2] sm:$0xff]
  %v1551 = vld [vmem:[#allocation2 + $0x8] sm:$0xff]
  %v1552 = vld [vmem:[#allocation2 + $0x10] sm:$0xff]
  %v1553 = vld [vmem:[#allocation2 + $0x18] sm:$0xff]
  %v1554 = vld [vmem:[#allocation2 + $0x20] sm:$0xff]
  %vm1555 = vcmp.lt.s32.totalorder %v138, 14
  %vm1556 = vcmp.lt.s32.totalorder %v139, 14
  %vm1557 = vcmp.lt.s32.totalorder %v140, 14
  %vm1558 = vcmp.lt.s32.totalorder %v141, 14
  %vm1559 = vmand %vm1555, %vm146
  %vm1560 = vmand %vm1556, %vm147
  %vm1561 = vmand %vm1557, %vm148
  %vm1562 = vmand %vm1558, %vm149
  %v1563 = vsel %vm1559, 1.0, 0.0
  %v1564 = vsel %vm1560, 1.0, 0.0
  %v1565 = vsel %vm1561, 1.0, 0.0
  %v1566 = vsel %vm1562, 1.0, 0.0
  %1571 = vrot.lane.b32.xlu0 %v1563, 65
  %v1572 = vpop.permute.xlu0 %1571
  %1573 = vrot.lane.b32.xlu0 %v1564, 65
  %v1574 = vpop.permute.xlu0 %1573
  %1575 = vrot.lane.b32.xlu0 %v1565, 65
  %v1576 = vpop.permute.xlu0 %1575
  %1577 = vrot.lane.b32.xlu0 %v1566, 65
  %v1578 = vpop.permute.xlu0 %1577
  %vm1579 = vcmask 531456
  %v1580 = vsel %vm1579, %v1572, %v1574
  %v1581 = vsel %vm1579, %v1574, %v1576
  %v1582 = vsel %vm1579, %v1576, %v1578
  %v1588 = vmul.f32 %v1550, %v1572
  %v1589 = vmul.f32 %v1551, %v1580
  %v1590 = vmul.f32 %v1552, %v1581
  %v1591 = vmul.f32 %v1553, %v1582
  %v1592 = vmul.f32 %v1554, %v1578
  %1598 = vrot.lane.b32.xlu0 %v1588, 63
  %v1599 = vpop.permute.xlu0 %1598
  %1600 = vrot.lane.b32.xlu0 %v1589, 63
  %v1601 = vpop.permute.xlu0 %1600
  %1602 = vrot.lane.b32.xlu0 %v1590, 63
  %v1603 = vpop.permute.xlu0 %1602
  %1604 = vrot.lane.b32.xlu0 %v1591, 63
  %v1605 = vpop.permute.xlu0 %1604
  %1606 = vrot.lane.b32.xlu0 %v1592, 63
  %v1607 = vpop.permute.xlu0 %1606
  %vm1608 = vcmask 515072
  %v1609 = vsel %vm1608, %v1599, %v1601
  %v1610 = vsel %vm1608, %v1601, %v1603
  %v1611 = vsel %vm1608, %v1603, %v1605
  %v1612 = vsel %vm1608, %v1605, %v1607
  %1617 = vst [vmem:[#allocation3 + $0x180] sm:$0xff] %v1609
  %1618 = vst [vmem:[#allocation3 + $0x188] sm:$0xff] %v1610
  %1619 = vst [vmem:[#allocation3 + $0x190] sm:$0xff] %v1611
  %1620 = vst [vmem:[#allocation3 + $0x198] sm:$0xff] %v1612
  %v1621 = vld [vmem:[#allocation2] sm:$0xff]
  %v1622 = vld [vmem:[#allocation2 + $0x8] sm:$0xff]
  %v1623 = vld [vmem:[#allocation2 + $0x10] sm:$0xff]
  %v1624 = vld [vmem:[#allocation2 + $0x18] sm:$0xff]
  %v1625 = vld [vmem:[#allocation2 + $0x20] sm:$0xff]
  %v1626 = vsel %vm1555, 1.0, 0.0
  %v1627 = vsel %vm1556, 1.0, 0.0
  %v1628 = vsel %vm1557, 1.0, 0.0
  %v1629 = vsel %vm1558, 1.0, 0.0
  %1634 = vrot.lane.b32.xlu0 %v1626, 66
  %v1635 = vpop.permute.xlu0 %1634
  %1636 = vrot.lane.b32.xlu0 %v1627, 66
  %v1637 = vpop.permute.xlu0 %1636
  %1638 = vrot.lane.b32.xlu0 %v1628, 66
  %v1639 = vpop.permute.xlu0 %1638
  %1640 = vrot.lane.b32.xlu0 %v1629, 66
  %v1641 = vpop.permute.xlu0 %1640
  %vm1642 = vcmask 539648
  %v1643 = vsel %vm1642, %v1635, %v1637
  %v1644 = vsel %vm1642, %v1637, %v1639
  %v1645 = vsel %vm1642, %v1639, %v1641
  %v1651 = vmul.f32 %v1621, %v1635
  %v1652 = vmul.f32 %v1622, %v1643
  %v1653 = vmul.f32 %v1623, %v1644
  %v1654 = vmul.f32 %v1624, %v1645
  %v1655 = vmul.f32 %v1625, %v1641
  %1661 = vrot.lane.b32.xlu0 %v1651, 62
  %v1662 = vpop.permute.xlu0 %1661
  %1663 = vrot.lane.b32.xlu0 %v1652, 62
  %v1664 = vpop.permute.xlu0 %1663
  %1665 = vrot.lane.b32.xlu0 %v1653, 62
  %v1666 = vpop.permute.xlu0 %1665
  %1667 = vrot.lane.b32.xlu0 %v1654, 62
  %v1668 = vpop.permute.xlu0 %1667
  %1669 = vrot.lane.b32.xlu0 %v1655, 62
  %v1670 = vpop.permute.xlu0 %1669
  %vm1671 = vcmask 506880
  %v1672 = vsel %vm1671, %v1662, %v1664
  %v1673 = vsel %vm1671, %v1664, %v1666
  %v1674 = vsel %vm1671, %v1666, %v1668
  %v1675 = vsel %vm1671, %v1668, %v1670
  %1680 = vst [vmem:[#allocation3 + $0x1a0] sm:$0xff] %v1672
  %1681 = vst [vmem:[#allocation3 + $0x1a8] sm:$0xff] %v1673
  %1682 = vst [vmem:[#allocation3 + $0x1b0] sm:$0xff] %v1674
  %1683 = vst [vmem:[#allocation3 + $0x1b8] sm:$0xff] %v1675
  %v1684 = vld [vmem:[#allocation2] sm:$0xff]
  %v1685 = vld [vmem:[#allocation2 + $0x8] sm:$0xff]
  %v1686 = vld [vmem:[#allocation2 + $0x10] sm:$0xff]
  %v1687 = vld [vmem:[#allocation2 + $0x18] sm:$0xff]
  %v1688 = vld [vmem:[#allocation2 + $0x20] sm:$0xff]
  %vm1689 = vmand %vm1555, %vm285
  %vm1690 = vmand %vm1556, %vm286
  %vm1691 = vmand %vm1557, %vm287
  %vm1692 = vmand %vm1558, %vm288
  %v1693 = vsel %vm1689, 1.0, 0.0
  %v1694 = vsel %vm1690, 1.0, 0.0
  %v1695 = vsel %vm1691, 1.0, 0.0
  %v1696 = vsel %vm1692, 1.0, 0.0
  %1701 = vrot.lane.b32.xlu0 %v1693, 67
  %v1702 = vpop.permute.xlu0 %1701
  %1703 = vrot.lane.b32.xlu0 %v1694, 67
  %v1704 = vpop.permute.xlu0 %1703
  %1705 = vrot.lane.b32.xlu0 %v1695, 67
  %v1706 = vpop.permute.xlu0 %1705
  %1707 = vrot.lane.b32.xlu0 %v1696, 67
  %v1708 = vpop.permute.xlu0 %1707
  %vm1709 = vcmask 547840
  %v1710 = vsel %vm1709, %v1702, %v1704
  %v1711 = vsel %vm1709, %v1704, %v1706
  %v1712 = vsel %vm1709, %v1706, %v1708
  %v1718 = vmul.f32 %v1684, %v1702
  %v1719 = vmul.f32 %v1685, %v1710
  %v1720 = vmul.f32 %v1686, %v1711
  %v1721 = vmul.f32 %v1687, %v1712
  %v1722 = vmul.f32 %v1688, %v1708
  %1728 = vrot.lane.b32.xlu0 %v1718, 61
  %v1729 = vpop.permute.xlu0 %1728
  %1730 = vrot.lane.b32.xlu0 %v1719, 61
  %v1731 = vpop.permute.xlu0 %1730
  %1732 = vrot.lane.b32.xlu0 %v1720, 61
  %v1733 = vpop.permute.xlu0 %1732
  %1734 = vrot.lane.b32.xlu0 %v1721, 61
  %v1735 = vpop.permute.xlu0 %1734
  %1736 = vrot.lane.b32.xlu0 %v1722, 61
  %v1737 = vpop.permute.xlu0 %1736
  %vm1738 = vcmask 498688
  %v1739 = vsel %vm1738, %v1729, %v1731
  %v1740 = vsel %vm1738, %v1731, %v1733
  %v1741 = vsel %vm1738, %v1733, %v1735
  %v1742 = vsel %vm1738, %v1735, %v1737
  %1747 = vst [vmem:[#allocation3 + $0x1c0] sm:$0xff] %v1739
  %1748 = vst [vmem:[#allocation3 + $0x1c8] sm:$0xff] %v1740
  %1749 = vst [vmem:[#allocation3 + $0x1d0] sm:$0xff] %v1741
  %1750 = vst [vmem:[#allocation3 + $0x1d8] sm:$0xff] %v1742
  %v1751 = vld [vmem:[#allocation2] sm:$0xff]
  %v1752 = vld [vmem:[#allocation2 + $0x8] sm:$0xff]
  %v1753 = vld [vmem:[#allocation2 + $0x10] sm:$0xff]
  %v1754 = vld [vmem:[#allocation2 + $0x18] sm:$0xff]
  %v1755 = vld [vmem:[#allocation2 + $0x20] sm:$0xff]
  %vm1756 = vmand %vm1555, %vm1137
  %vm1757 = vmand %vm1556, %vm1138
  %vm1758 = vmand %vm1557, %vm1139
  %vm1759 = vmand %vm1558, %vm1140
  %v1760 = vsel %vm1756, 1.0, 0.0
  %v1761 = vsel %vm1757, 1.0, 0.0
  %v1762 = vsel %vm1758, 1.0, 0.0
  %v1763 = vsel %vm1759, 1.0, 0.0
  %1768 = vrot.lane.b32.xlu0 %v1760, 68
  %v1769 = vpop.permute.xlu0 %1768
  %1770 = vrot.lane.b32.xlu0 %v1761, 68
  %v1771 = vpop.permute.xlu0 %1770
  %1772 = vrot.lane.b32.xlu0 %v1762, 68
  %v1773 = vpop.permute.xlu0 %1772
  %1774 = vrot.lane.b32.xlu0 %v1763, 68
  %v1775 = vpop.permute.xlu0 %1774
  %v1776 = vsel %vm75, %v1769, %v1771
  %v1777 = vsel %vm75, %v1771, %v1773
  %v1778 = vsel %vm75, %v1773, %v1775
  %v1784 = vmul.f32 %v1751, %v1769
  %v1785 = vmul.f32 %v1752, %v1776
  %v1786 = vmul.f32 %v1753, %v1777
  %v1787 = vmul.f32 %v1754, %v1778
  %v1788 = vmul.f32 %v1755, %v1775
  %1794 = vrot.lane.b32.xlu0 %v1784, 60
  %v1795 = vpop.permute.xlu0 %1794
  %1796 = vrot.lane.b32.xlu0 %v1785, 60
  %v1797 = vpop.permute.xlu0 %1796
  %1798 = vrot.lane.b32.xlu0 %v1786, 60
  %v1799 = vpop.permute.xlu0 %1798
  %1800 = vrot.lane.b32.xlu0 %v1787, 60
  %v1801 = vpop.permute.xlu0 %1800
  %1802 = vrot.lane.b32.xlu0 %v1788, 60
  %v1803 = vpop.permute.xlu0 %1802
  %vm1804 = vcmask 490496
  %v1805 = vsel %vm1804, %v1795, %v1797
  %v1806 = vsel %vm1804, %v1797, %v1799
  %v1807 = vsel %vm1804, %v1799, %v1801
  %v1808 = vsel %vm1804, %v1801, %v1803
  %1813 = vst [vmem:[#allocation3 + $0x1e0] sm:$0xff] %v1805
  %1814 = vst [vmem:[#allocation3 + $0x1e8] sm:$0xff] %v1806
  %1815 = vst [vmem:[#allocation3 + $0x1f0] sm:$0xff] %v1807
  %1816 = vst [vmem:[#allocation3 + $0x1f8] sm:$0xff] %v1808
  %v1817 = vld [vmem:[#allocation3] sm:$0xff]
  %v1818 = vld [vmem:[#allocation3 + $0x8] sm:$0xff]
  %v1819 = vld [vmem:[#allocation3 + $0x10] sm:$0xff]
  %v1820 = vld [vmem:[#allocation3 + $0x18] sm:$0xff]
  %v1821 = vld [vmem:[#allocation3 + $0x20] sm:$0xff]
  %v1822 = vld [vmem:[#allocation3 + $0x28] sm:$0xff]
  %v1823 = vld [vmem:[#allocation3 + $0x30] sm:$0xff]
  %v1824 = vld [vmem:[#allocation3 + $0x38] sm:$0xff]
  %v1825 = vld [vmem:[#allocation3 + $0x40] sm:$0xff]
  %v1826 = vld [vmem:[#allocation3 + $0x48] sm:$0xff]
  %v1827 = vld [vmem:[#allocation3 + $0x50] sm:$0xff]
  %v1828 = vld [vmem:[#allocation3 + $0x58] sm:$0xff]
  %v1829 = vld [vmem:[#allocation3 + $0x60] sm:$0xff]
  %v1830 = vld [vmem:[#allocation3 + $0x68] sm:$0xff]
  %v1831 = vld [vmem:[#allocation3 + $0x70] sm:$0xff]
  %v1832 = vld [vmem:[#allocation3 + $0x78] sm:$0xff]
  %v1833 = vld [vmem:[#allocation3 + $0x80] sm:$0xff]
  %v1834 = vld [vmem:[#allocation3 + $0x88] sm:$0xff]
  %v1835 = vld [vmem:[#allocation3 + $0x90] sm:$0xff]
  %v1836 = vld [vmem:[#allocation3 + $0x98] sm:$0xff]
  %v1837 = vld [vmem:[#allocation3 + $0xa0] sm:$0xff]
  %v1838 = vld [vmem:[#allocation3 + $0xa8] sm:$0xff]
  %v1839 = vld [vmem:[#allocation3 + $0xb0] sm:$0xff]
  %v1840 = vld [vmem:[#allocation3 + $0xb8] sm:$0xff]
  %v1841 = vld [vmem:[#allocation3 + $0xc0] sm:$0xff]
  %v1842 = vld [vmem:[#allocation3 + $0xc8] sm:$0xff]
  %v1843 = vld [vmem:[#allocation3 + $0xd0] sm:$0xff]
  %v1844 = vld [vmem:[#allocation3 + $0xd8] sm:$0xff]
  %v1845 = vld [vmem:[#allocation3 + $0xe0] sm:$0xff]
  %v1846 = vld [vmem:[#allocation3 + $0xe8] sm:$0xff]
  %v1847 = vld [vmem:[#allocation3 + $0xf0] sm:$0xff]
  %v1848 = vld [vmem:[#allocation3 + $0xf8] sm:$0xff]
  %v1849 = vld [vmem:[#allocation3 + $0x100] sm:$0xff]
  %v1850 = vld [vmem:[#allocation3 + $0x108] sm:$0xff]
  %v1851 = vld [vmem:[#allocation3 + $0x110] sm:$0xff]
  %v1852 = vld [vmem:[#allocation3 + $0x118] sm:$0xff]
  %v1853 = vld [vmem:[#allocation3 + $0x120] sm:$0xff]
  %v1854 = vld [vmem:[#allocation3 + $0x128] sm:$0xff]
  %v1855 = vld [vmem:[#allocation3 + $0x130] sm:$0xff]
  %v1856 = vld [vmem:[#allocation3 + $0x138] sm:$0xff]
  %v1857 = vld [vmem:[#allocation3 + $0x140] sm:$0xff]
  %v1858 = vld [vmem:[#allocation3 + $0x148] sm:$0xff]
  %v1859 = vld [vmem:[#allocation3 + $0x150] sm:$0xff]
  %v1860 = vld [vmem:[#allocation3 + $0x158] sm:$0xff]
  %v1861 = vld [vmem:[#allocation3 + $0x160] sm:$0xff]
  %v1862 = vld [vmem:[#allocation3 + $0x168] sm:$0xff]
  %v1863 = vld [vmem:[#allocation3 + $0x170] sm:$0xff]
  %v1864 = vld [vmem:[#allocation3 + $0x178] sm:$0xff]
  %v1865 = vld [vmem:[#allocation3 + $0x180] sm:$0xff]
  %v1866 = vld [vmem:[#allocation3 + $0x188] sm:$0xff]
  %v1867 = vld [vmem:[#allocation3 + $0x190] sm:$0xff]
  %v1868 = vld [vmem:[#allocation3 + $0x198] sm:$0xff]
  %v1869 = vld [vmem:[#allocation3 + $0x1a0] sm:$0xff]
  %v1870 = vld [vmem:[#allocation3 + $0x1a8] sm:$0xff]
  %v1871 = vld [vmem:[#allocation3 + $0x1b0] sm:$0xff]
  %v1872 = vld [vmem:[#allocation3 + $0x1b8] sm:$0xff]
  %v1873 = vld [vmem:[#allocation3 + $0x1c0] sm:$0xff]
  %v1874 = vld [vmem:[#allocation3 + $0x1c8] sm:$0xff]
  %v1875 = vld [vmem:[#allocation3 + $0x1d0] sm:$0xff]
  %v1876 = vld [vmem:[#allocation3 + $0x1d8] sm:$0xff]
  %v1877 = vld [vmem:[#allocation3 + $0x1e0] sm:$0xff]
  %v1878 = vld [vmem:[#allocation3 + $0x1e8] sm:$0xff]
  %v1879 = vld [vmem:[#allocation3 + $0x1f0] sm:$0xff]
  %v1880 = vld [vmem:[#allocation3 + $0x1f8] sm:$0xff]
  %1881 = vmatpush.msra.mxu0 %v1877
  %1882 = vmatpush.msra.mxu0 %v1873
  %1883 = vmatpush.msra.mxu0 %v1869
  %1884 = vmatpush.msra.mxu0 %v1865
  %1885 = vmatpush.msra.mxu0 %v1861
  %1886 = vmatpush.msra.mxu0 %v1857
  %1887 = vmatpush.msra.mxu0 %v1853
  %1888 = vmatpush.msra.mxu0 %v1849
  %1889 = vmatpush.msra.mxu0 %v1845
  %1890 = vmatpush.msra.mxu0 %v1841
  %1891 = vmatpush.msra.mxu0 %v1837
  %1892 = vmatpush.msra.mxu0 %v1833
  %1893 = vmatpush.msra.mxu0 %v1829
  %1894 = vmatpush.msra.mxu0 %v1825
  %1895 = vmatpush.msra.mxu0 %v1821
  %1896 = vmatpush.msra.mxu0 %v1817
  %1897 = vmatmul.f32.gmra.mxu0 %v992
  %v1898 = vpop.f32.mrf.mxu0
  %v1899 = vadd.f32 0.0, %v1898
  %1900 = vdwg.mxu0
  %1901 = vmatpush.msra.mxu0 %v1878
  %1902 = vmatpush.msra.mxu0 %v1874
  %1903 = vmatpush.msra.mxu0 %v1870
  %1904 = vmatpush.msra.mxu0 %v1866
  %1905 = vmatpush.msra.mxu0 %v1862
  %1906 = vmatpush.msra.mxu0 %v1858
  %1907 = vmatpush.msra.mxu0 %v1854
  %1908 = vmatpush.msra.mxu0 %v1850
  %1909 = vmatpush.msra.mxu0 %v1846
  %1910 = vmatpush.msra.mxu0 %v1842
  %1911 = vmatpush.msra.mxu0 %v1838
  %1912 = vmatpush.msra.mxu0 %v1834
  %1913 = vmatpush.msra.mxu0 %v1830
  %1914 = vmatpush.msra.mxu0 %v1826
  %1915 = vmatpush.msra.mxu0 %v1822
  %1916 = vmatpush.msra.mxu0 %v1818
  %1917 = vmatmul.f32.gmra.mxu0 %v992
  %v1918 = vpop.f32.mrf.mxu0
  %v1919 = vadd.f32 0.0, %v1918
  %1920 = vdwg.mxu0
  %1921 = vmatpush.msra.mxu0 %v1879
  %1922 = vmatpush.msra.mxu0 %v1875
  %1923 = vmatpush.msra.mxu0 %v1871
  %1924 = vmatpush.msra.mxu0 %v1867
  %1925 = vmatpush.msra.mxu0 %v1863
  %1926 = vmatpush.msra.mxu0 %v1859
  %1927 = vmatpush.msra.mxu0 %v1855
  %1928 = vmatpush.msra.mxu0 %v1851
  %1929 = vmatpush.msra.mxu0 %v1847
  %1930 = vmatpush.msra.mxu0 %v1843
  %1931 = vmatpush.msra.mxu0 %v1839
  %1932 = vmatpush.msra.mxu0 %v1835
  %1933 = vmatpush.msra.mxu0 %v1831
  %1934 = vmatpush.msra.mxu0 %v1827
  %1935 = vmatpush.msra.mxu0 %v1823
  %1936 = vmatpush.msra.mxu0 %v1819
  %1937 = vmatmul.f32.gmra.mxu0 %v992
  %v1938 = vpop.f32.mrf.mxu0
  %v1939 = vadd.f32 0.0, %v1938
  %1940 = vdwg.mxu0
  %1941 = vmatpush.msra.mxu0 %v1880
  %1942 = vmatpush.msra.mxu0 %v1876
  %1943 = vmatpush.msra.mxu0 %v1872
  %1944 = vmatpush.msra.mxu0 %v1868
  %1945 = vmatpush.msra.mxu0 %v1864
  %1946 = vmatpush.msra.mxu0 %v1860
  %1947 = vmatpush.msra.mxu0 %v1856
  %1948 = vmatpush.msra.mxu0 %v1852
  %1949 = vmatpush.msra.mxu0 %v1848
  %1950 = vmatpush.msra.mxu0 %v1844
  %1951 = vmatpush.msra.mxu0 %v1840
  %1952 = vmatpush.msra.mxu0 %v1836
  %1953 = vmatpush.msra.mxu0 %v1832
  %1954 = vmatpush.msra.mxu0 %v1828
  %1955 = vmatpush.msra.mxu0 %v1824
  %1956 = vmatpush.msra.mxu0 %v1820
  %1957 = vmatmul.f32.gmra.mxu0 %v992
  %v1958 = vpop.f32.mrf.mxu0
  %v1959 = vadd.f32 0.0, %v1958
  %1960 = vdwg.mxu0
  %v1961 = vlaneseq
  %v1962 = vshrl.u32 %v1961, 7
  %v1963 = vadd.s32 %v1962, 8
  %v1964 = vadd.s32 %v1962, 16
  %v1965 = vadd.s32 %v1962, 24
  %v1966 = vadd.s32 %v1962, 32
  %v1967 = vadd.s32 %v1962, 40
  %v1968 = vadd.s32 %v1962, 48
  %v1969 = vadd.s32 %v1962, 56
  %v1970 = vadd.s32 %v1962, 64
  %v1971 = vadd.s32 %v1962, 72
  %v1972 = vadd.s32 %v1962, 80
  %v1973 = vadd.s32 %v1962, 88
  %v1974 = vadd.s32 %v1962, 96
  %v1975 = vadd.s32 %v1962, 104
  %v1976 = vadd.s32 %v1962, 112
  %v1977 = vadd.s32 %v1962, 120
  %v1978 = vadd.s32 %v1962, 128
  %v1979 = vadd.s32 %v1962, 136
  %v1980 = vadd.s32 %v1962, 144
  %v1981 = vadd.s32 %v1962, 152
  %v1982 = vadd.s32 %v1962, 160
  %v1983 = vadd.s32 %v1962, 168
  %v1984 = vadd.s32 %v1962, 176
  %v1985 = vadd.s32 %v1962, 184
  %v1986 = vadd.s32 %v1962, 192
  %v1987 = vadd.s32 %v1962, 200
  %v1988 = vadd.s32 %v1962, 208
  %v1989 = vadd.s32 %v1962, 216
  %v1990 = vadd.s32 %v1962, 224
  %v1991 = vadd.s32 %v1962, 232
  %v1992 = vadd.s32 %v1962, 240
  %v1993 = vadd.s32 %v1962, 248
  %v1994 = vadd.s32 %v1962, 256
  %v1995 = vadd.s32 %v1962, 264
  %v1996 = vadd.s32 %v1962, 272
  %v1997 = vadd.s32 %v1962, 280
  %v1998 = vadd.s32 %v1962, 288
  %v1999 = vadd.s32 %v1962, 296
  %v2000 = vadd.s32 %v1962, 304
  %v2001 = vadd.s32 %v1962, 312
  %v2002 = vadd.s32 %v1962, 320
  %v2003 = vadd.s32 %v1962, 328
  %v2004 = vadd.s32 %v1962, 336
  %v2005 = vadd.s32 %v1962, 344
  %v2006 = vadd.s32 %v1962, 352
  %v2007 = vadd.s32 %v1962, 360
  %v2008 = vadd.s32 %v1962, 368
  %v2009 = vadd.s32 %v1962, 376
  %v2010 = vadd.s32 %v1962, 384
  %v2011 = vadd.s32 %v1962, 392
  %v2012 = vadd.s32 %v1962, 400
  %v2013 = vadd.s32 %v1962, 408
  %v2014 = vadd.s32 %v1962, 416
  %v2015 = vadd.s32 %v1962, 424
  %v2016 = vadd.s32 %v1962, 432
  %v2017 = vadd.s32 %v1962, 440
  %v2018 = vadd.s32 %v1962, 448
  %v2019 = vadd.s32 %v1962, 456
  %v2020 = vadd.s32 %v1962, 464
  %v2021 = vadd.s32 %v1962, 472
  %v2022 = vadd.s32 %v1962, 480
  %v2023 = vadd.s32 %v1962, 488
  %v2024 = vadd.s32 %v1962, 496
  %v2025 = vadd.s32 %v1962, 504
  %v2026 = vand.u32 %v126, 7
  %v2027 = vshra.s32 %v126, 3
  %v2028 = vand.u32 %v2027, 7
  %v2029 = vshra.s32 %v126, 6
  %v2030 = vmul.u32 %v2029, 256
  %v2031 = vmul.u32 %v2028, 32
  %v2032 = vadd.s32 %v2030, %v2031
  %v2033 = vmul.u32 %v2026, 2
  %v2034 = vadd.s32 %v2032, %v2033
  %vm2035 = vcmp.eq.s32.totalorder %v1962, %v2034
  %vm2036 = vcmp.eq.s32.totalorder %v1963, %v2034
  %vm2037 = vcmp.eq.s32.totalorder %v1964, %v2034
  %vm2038 = vcmp.eq.s32.totalorder %v1965, %v2034
  %vm2039 = vcmp.eq.s32.totalorder %v1966, %v2034
  %vm2040 = vcmp.eq.s32.totalorder %v1967, %v2034
  %vm2041 = vcmp.eq.s32.totalorder %v1968, %v2034
  %vm2042 = vcmp.eq.s32.totalorder %v1969, %v2034
  %vm2043 = vcmp.eq.s32.totalorder %v1970, %v2034
  %vm2044 = vcmp.eq.s32.totalorder %v1971, %v2034
  %vm2045 = vcmp.eq.s32.totalorder %v1972, %v2034
  %vm2046 = vcmp.eq.s32.totalorder %v1973, %v2034
  %vm2047 = vcmp.eq.s32.totalorder %v1974, %v2034
  %vm2048 = vcmp.eq.s32.totalorder %v1975, %v2034
  %vm2049 = vcmp.eq.s32.totalorder %v1976, %v2034
  %vm2050 = vcmp.eq.s32.totalorder %v1977, %v2034
  %vm2051 = vcmp.eq.s32.totalorder %v1978, %v2034
  %vm2052 = vcmp.eq.s32.totalorder %v1979, %v2034
  %vm2053 = vcmp.eq.s32.totalorder %v1980, %v2034
  %vm2054 = vcmp.eq.s32.totalorder %v1981, %v2034
  %vm2055 = vcmp.eq.s32.totalorder %v1982, %v2034
  %vm2056 = vcmp.eq.s32.totalorder %v1983, %v2034
  %vm2057 = vcmp.eq.s32.totalorder %v1984, %v2034
  %vm2058 = vcmp.eq.s32.totalorder %v1985, %v2034
  %vm2059 = vcmp.eq.s32.totalorder %v1986, %v2034
  %vm2060 = vcmp.eq.s32.totalorder %v1987, %v2034
  %vm2061 = vcmp.eq.s32.totalorder %v1988, %v2034
  %vm2062 = vcmp.eq.s32.totalorder %v1989, %v2034
  %vm2063 = vcmp.eq.s32.totalorder %v1990, %v2034
  %vm2064 = vcmp.eq.s32.totalorder %v1991, %v2034
  %vm2065 = vcmp.eq.s32.totalorder %v1992, %v2034
  %vm2066 = vcmp.eq.s32.totalorder %v1993, %v2034
  %vm2067 = vcmp.eq.s32.totalorder %v1994, %v2034
  %vm2068 = vcmp.eq.s32.totalorder %v1995, %v2034
  %vm2069 = vcmp.eq.s32.totalorder %v1996, %v2034
  %vm2070 = vcmp.eq.s32.totalorder %v1997, %v2034
  %vm2071 = vcmp.eq.s32.totalorder %v1998, %v2034
  %vm2072 = vcmp.eq.s32.totalorder %v1999, %v2034
  %vm2073 = vcmp.eq.s32.totalorder %v2000, %v2034
  %vm2074 = vcmp.eq.s32.totalorder %v2001, %v2034
  %vm2075 = vcmp.eq.s32.totalorder %v2002, %v2034
  %vm2076 = vcmp.eq.s32.totalorder %v2003, %v2034
  %vm2077 = vcmp.eq.s32.totalorder %v2004, %v2034
  %vm2078 = vcmp.eq.s32.totalorder %v2005, %v2034
  %vm2079 = vcmp.eq.s32.totalorder %v2006, %v2034
  %vm2080 = vcmp.eq.s32.totalorder %v2007, %v2034
  %vm2081 = vcmp.eq.s32.totalorder %v2008, %v2034
  %vm2082 = vcmp.eq.s32.totalorder %v2009, %v2034
  %vm2083 = vcmp.eq.s32.totalorder %v2010, %v2034
  %vm2084 = vcmp.eq.s32.totalorder %v2011, %v2034
  %vm2085 = vcmp.eq.s32.totalorder %v2012, %v2034
  %vm2086 = vcmp.eq.s32.totalorder %v2013, %v2034
  %vm2087 = vcmp.eq.s32.totalorder %v2014, %v2034
  %vm2088 = vcmp.eq.s32.totalorder %v2015, %v2034
  %vm2089 = vcmp.eq.s32.totalorder %v2016, %v2034
  %vm2090 = vcmp.eq.s32.totalorder %v2017, %v2034
  %vm2091 = vcmp.eq.s32.totalorder %v2018, %v2034
  %vm2092 = vcmp.eq.s32.totalorder %v2019, %v2034
  %vm2093 = vcmp.eq.s32.totalorder %v2020, %v2034
  %vm2094 = vcmp.eq.s32.totalorder %v2021, %v2034
  %vm2095 = vcmp.eq.s32.totalorder %v2022, %v2034
  %vm2096 = vcmp.eq.s32.totalorder %v2023, %v2034
  %vm2097 = vcmp.eq.s32.totalorder %v2024, %v2034
  %vm2098 = vcmp.eq.s32.totalorder %v2025, %v2034
  %v2099 = vsel %vm2035, 1.0, 0.0
  %v2100 = vsel %vm2036, 1.0, 0.0
  %v2101 = vsel %vm2037, 1.0, 0.0
  %v2102 = vsel %vm2038, 1.0, 0.0
  %v2103 = vsel %vm2039, 1.0, 0.0
  %v2104 = vsel %vm2040, 1.0, 0.0
  %v2105 = vsel %vm2041, 1.0, 0.0
  %v2106 = vsel %vm2042, 1.0, 0.0
  %v2107 = vsel %vm2043, 1.0, 0.0
  %v2108 = vsel %vm2044, 1.0, 0.0
  %v2109 = vsel %vm2045, 1.0, 0.0
  %v2110 = vsel %vm2046, 1.0, 0.0
  %v2111 = vsel %vm2047, 1.0, 0.0
  %v2112 = vsel %vm2048, 1.0, 0.0
  %v2113 = vsel %vm2049, 1.0, 0.0
  %v2114 = vsel %vm2050, 1.0, 0.0
  %v2115 = vsel %vm2051, 1.0, 0.0
  %v2116 = vsel %vm2052, 1.0, 0.0
  %v2117 = vsel %vm2053, 1.0, 0.0
  %v2118 = vsel %vm2054, 1.0, 0.0
  %v2119 = vsel %vm2055, 1.0, 0.0
  %v2120 = vsel %vm2056, 1.0, 0.0
  %v2121 = vsel %vm2057, 1.0, 0.0
  %v2122 = vsel %vm2058, 1.0, 0.0
  %v2123 = vsel %vm2059, 1.0, 0.0
  %v2124 = vsel %vm2060, 1.0, 0.0
  %v2125 = vsel %vm2061, 1.0, 0.0
  %v2126 = vsel %vm2062, 1.0, 0.0
  %v2127 = vsel %vm2063, 1.0, 0.0
  %v2128 = vsel %vm2064, 1.0, 0.0
  %v2129 = vsel %vm2065, 1.0, 0.0
  %v2130 = vsel %vm2066, 1.0, 0.0
  %v2131 = vsel %vm2067, 1.0, 0.0
  %v2132 = vsel %vm2068, 1.0, 0.0
  %v2133 = vsel %vm2069, 1.0, 0.0
  %v2134 = vsel %vm2070, 1.0, 0.0
  %v2135 = vsel %vm2071, 1.0, 0.0
  %v2136 = vsel %vm2072, 1.0, 0.0
  %v2137 = vsel %vm2073, 1.0, 0.0
  %v2138 = vsel %vm2074, 1.0, 0.0
  %v2139 = vsel %vm2075, 1.0, 0.0
  %v2140 = vsel %vm2076, 1.0, 0.0
  %v2141 = vsel %vm2077, 1.0, 0.0
  %v2142 = vsel %vm2078, 1.0, 0.0
  %v2143 = vsel %vm2079, 1.0, 0.0
  %v2144 = vsel %vm2080, 1.0, 0.0
  %v2145 = vsel %vm2081, 1.0, 0.0
  %v2146 = vsel %vm2082, 1.0, 0.0
  %v2147 = vsel %vm2083, 1.0, 0.0
  %v2148 = vsel %vm2084, 1.0, 0.0
  %v2149 = vsel %vm2085, 1.0, 0.0
  %v2150 = vsel %vm2086, 1.0, 0.0
  %v2151 = vsel %vm2087, 1.0, 0.0
  %v2152 = vsel %vm2088, 1.0, 0.0
  %v2153 = vsel %vm2089, 1.0, 0.0
  %v2154 = vsel %vm2090, 1.0, 0.0
  %v2155 = vsel %vm2091, 1.0, 0.0
  %v2156 = vsel %vm2092, 1.0, 0.0
  %v2157 = vsel %vm2093, 1.0, 0.0
  %v2158 = vsel %vm2094, 1.0, 0.0
  %v2159 = vsel %vm2095, 1.0, 0.0
  %v2160 = vsel %vm2096, 1.0, 0.0
  %v2161 = vsel %vm2097, 1.0, 0.0
  %v2162 = vsel %vm2098, 1.0, 0.0
  %2163 = vmatpush.msra.mxu0 %v2114
  %2164 = vmatpush.msra.mxu0 %v2113
  %2165 = vmatpush.msra.mxu0 %v2112
  %2166 = vmatpush.msra.mxu0 %v2111
  %2167 = vmatpush.msra.mxu0 %v2110
  %2168 = vmatpush.msra.mxu0 %v2109
  %2169 = vmatpush.msra.mxu0 %v2108
  %2170 = vmatpush.msra.mxu0 %v2107
  %2171 = vmatpush.msra.mxu0 %v2106
  %2172 = vmatpush.msra.mxu0 %v2105
  %2173 = vmatpush.msra.mxu0 %v2104
  %2174 = vmatpush.msra.mxu0 %v2103
  %2175 = vmatpush.msra.mxu0 %v2102
  %2176 = vmatpush.msra.mxu0 %v2101
  %2177 = vmatpush.msra.mxu0 %v2100
  %2178 = vmatpush.msra.mxu0 %v2099
  %2179 = vmatmul.f32.gmra.mxu0 %v1899
  %v2180 = vpop.f32.mrf.mxu0
  %v2181 = vadd.f32 0.0, %v2180
  %2182 = vdwg.mxu0
  %2183 = vmatpush.msra.mxu0 %v2130
  %2184 = vmatpush.msra.mxu0 %v2129
  %2185 = vmatpush.msra.mxu0 %v2128
  %2186 = vmatpush.msra.mxu0 %v2127
  %2187 = vmatpush.msra.mxu0 %v2126
  %2188 = vmatpush.msra.mxu0 %v2125
  %2189 = vmatpush.msra.mxu0 %v2124
  %2190 = vmatpush.msra.mxu0 %v2123
  %2191 = vmatpush.msra.mxu0 %v2122
  %2192 = vmatpush.msra.mxu0 %v2121
  %2193 = vmatpush.msra.mxu0 %v2120
  %2194 = vmatpush.msra.mxu0 %v2119
  %2195 = vmatpush.msra.mxu0 %v2118
  %2196 = vmatpush.msra.mxu0 %v2117
  %2197 = vmatpush.msra.mxu0 %v2116
  %2198 = vmatpush.msra.mxu0 %v2115
  %2199 = vmatmul.f32.gmra.mxu0 %v1919
  %v2200 = vpop.f32.mrf.mxu0
  %v2201 = vadd.f32 %v2181, %v2200
  %2202 = vdwg.mxu0
  %2203 = vmatpush.msra.mxu0 %v2146
  %2204 = vmatpush.msra.mxu0 %v2145
  %2205 = vmatpush.msra.mxu0 %v2144
  %2206 = vmatpush.msra.mxu0 %v2143
  %2207 = vmatpush.msra.mxu0 %v2142
  %2208 = vmatpush.msra.mxu0 %v2141
  %2209 = vmatpush.msra.mxu0 %v2140
  %2210 = vmatpush.msra.mxu0 %v2139
  %2211 = vmatpush.msra.mxu0 %v2138
  %2212 = vmatpush.msra.mxu0 %v2137
  %2213 = vmatpush.msra.mxu0 %v2136
  %2214 = vmatpush.msra.mxu0 %v2135
  %2215 = vmatpush.msra.mxu0 %v2134
  %2216 = vmatpush.msra.mxu0 %v2133
  %2217 = vmatpush.msra.mxu0 %v2132
  %2218 = vmatpush.msra.mxu0 %v2131
  %2219 = vmatmul.f32.gmra.mxu0 %v1939
  %v2220 = vpop.f32.mrf.mxu0
  %v2221 = vadd.f32 %v2201, %v2220
  %2222 = vdwg.mxu0
  %2223 = vmatpush.msra.mxu0 %v2162
  %2224 = vmatpush.msra.mxu0 %v2161
  %2225 = vmatpush.msra.mxu0 %v2160
  %2226 = vmatpush.msra.mxu0 %v2159
  %2227 = vmatpush.msra.mxu0 %v2158
  %2228 = vmatpush.msra.mxu0 %v2157
  %2229 = vmatpush.msra.mxu0 %v2156
  %2230 = vmatpush.msra.mxu0 %v2155
  %2231 = vmatpush.msra.mxu0 %v2154
  %2232 = vmatpush.msra.mxu0 %v2153
  %2233 = vmatpush.msra.mxu0 %v2152
  %2234 = vmatpush.msra.mxu0 %v2151
  %2235 = vmatpush.msra.mxu0 %v2150
  %2236 = vmatpush.msra.mxu0 %v2149
  %2237 = vmatpush.msra.mxu0 %v2148
  %2238 = vmatpush.msra.mxu0 %v2147
  %2239 = vmatmul.f32.gmra.mxu0 %v1959
  %v2240 = vpop.f32.mrf.mxu0
  %v2241 = vadd.f32 %v2221, %v2240
  %2242 = vdwg.mxu0
  %2243 = vadd.xlane.f32.xlu0 %v2241
  %v2244 = vpop.xlane.xlu0 %2243
  %v2245 = vmul.f32 %v2244, 0.0078125
  %v2246 = vsub.f32 %v2241, %v2245
  %v2247 = vmul.f32 %v2246, %v2246
  %2248 = vadd.xlane.f32.xlu0 %v2247
  %v2249 = vpop.xlane.xlu0 %2248
  %v2250 = vmul.f32 %v2249, 0.0078125
  %v2251 = vadd.f32 %v2250, 1e-05
  %v2252 = vrsqrt.pop %v2251
  %v2253 = vmul.f32 %v2252, %v2251
  %v2254 = vmul.f32 %v2253, %v2252
  %v2255 = vmul.f32 0.5, %v2254
  %v2256 = vsub.f32 1.5, %v2255
  %v2257 = vmul.f32 %v2252, %v2256
  %vm2258 = vweird.f32 %v2251
  %vm2259 = vweird.f32 %v2252
  %vm2260 = vmor %vm2258, %vm2259
  %v2261 = vsel %vm2260, %v2252, %v2257
  %v2262 = vmul.f32 %v2261, %v993
  %2264 = vset.pattern.permute.xlu0 0
  %2265 = vperm.xlu0 %2264, %v2262
  %v2266 = vpop.permute.xlu0 %2265
  %v2268 = vmul.f32 %v2246, %v2266
  %2270 = vset.pattern.permute.xlu0 0
  %2271 = vperm.xlu0 %2270, %v994
  %v2272 = vpop.permute.xlu0 %2271
  %v2274 = vadd.f32 %v2268, %v2272
  %v2275 = vsub.f32 0.0, %v2274
  %v2276 = vmul.f32 %v2275, 1.442695
  %v2277 = vpow.pop %v2276
  %v2278 = vadd.f32 %v2277, 1.0
  %v2279 = vrcp.pop %v2278
  %v2280 = vmul.f32 %v2278, %v2279
  %v2281 = vsub.f32 1.0, %v2280
  %v2282 = vmul.f32 %v2279, %v2281
  %v2283 = vadd.f32 %v2279, %v2282
  %vm2284 = vweird.f32 %v2278
  %vm2285 = vweird.f32 %v2279
  %vm2286 = vmor %vm2284, %vm2285
  %v2287 = vsel %vm2286, %v2279, %v2283
  %v2288 = vand.u32 2147483647, %v2278
  %vm2289 = vcmp.eq.f32.partialorder %v2288, 8.507059e+37
  %v2290 = vand.u32 %v2278, 2147483648
  %v2291 = vor.u32 1.1754944e-38, %v2290
  %v2292 = vsel %vm2289, %v2291, %v2287
  %v2293 = vmul.f32 1.0, %v2292
  %v2294 = vmul.f32 %v2274, %v2293
  %v2295 = vld [vmem:[%s7] sm:$0xff]
  %v2296 = vld [vmem:[%s8] sm:$0xff]
  %v2297 = vld [vmem:[%s9] sm:$0xff]
  %v2298 = vld [vmem:[%s10] sm:$0xff]
  %v2299 = vld [vmem:[%s11] sm:$0xff]
  %v2300 = vld [vmem:[%s12] sm:$0xff]
  %2302 = vrot.lane.b32.xlu0 %v2294, 18
  %v2303 = vpop.permute.xlu0 %2302
  %vm2305 = vcmask 1047696
  %2306 = vst.msk [vmem:[#allocation2] sm:$0xff] %vm2305, %v2303
  %2307 = vst.msk [vmem:[#allocation2 + $0x8] sm:$0xff] %vm233, %v2303
  %v2308 = vld [vmem:[#allocation2] sm:$0xff]
  %v2309 = vld [vmem:[#allocation2 + $0x8] sm:$0xff]
  %vm2310 = vcmp.ge.s32.totalorder %v2028, 1
  %vm2311 = vcmp.ge.s32.totalorder %v2026, 1
  %vm2312 = vmand %vm2310, %vm2311
  %v2313 = vsel %vm2312, 1.0, 0.0
  %2315 = vrot.lane.b32.xlu0 %v2313, 9
  %v2316 = vpop.permute.xlu0 %2315
  %v2318 = vmul.f32 %v2308, %v2316
  %v2319 = vmul.f32 %v2309, %v2316
  %2322 = vrot.lane.b32.xlu0 %v2318, 119
  %v2323 = vpop.permute.xlu0 %2322
  %2324 = vrot.lane.b32.xlu0 %v2319, 119
  %v2325 = vpop.permute.xlu0 %2324
  %vm2326 = vcmask 973824
  %v2327 = vsel %vm2326, %v2323, %v2325
  %2329 = vst [vmem:[#allocation3] sm:$0xff] %v2327
  %v2330 = vld [vmem:[#allocation2] sm:$0xff]
  %v2331 = vld [vmem:[#allocation2 + $0x8] sm:$0xff]
  %v2332 = vsel %vm2310, 1.0, 0.0
  %2334 = vrot.lane.b32.xlu0 %v2332, 10
  %v2335 = vpop.permute.xlu0 %2334
  %v2337 = vmul.f32 %v2330, %v2335
  %v2338 = vmul.f32 %v2331, %v2335
  %2341 = vrot.lane.b32.xlu0 %v2337, 118
  %v2342 = vpop.permute.xlu0 %2341
  %2343 = vrot.lane.b32.xlu0 %v2338, 118
  %v2344 = vpop.permute.xlu0 %2343
  %vm2345 = vcmask 965632
  %v2346 = vsel %vm2345, %v2342, %v2344
  %2348 = vst [vmem:[#allocation3 + $0x20] sm:$0xff] %v2346
  %v2349 = vld [vmem:[#allocation2] sm:$0xff]
  %v2350 = vld [vmem:[#allocation2 + $0x8] sm:$0xff]
  %vm2351 = vcmp.lt.s32.totalorder %v2026, 7
  %vm2352 = vmand %vm2310, %vm2351
  %v2353 = vsel %vm2352, 1.0, 0.0
  %2355 = vrot.lane.b32.xlu0 %v2353, 11
  %v2356 = vpop.permute.xlu0 %2355
  %v2358 = vmul.f32 %v2349, %v2356
  %v2359 = vmul.f32 %v2350, %v2356
  %2362 = vrot.lane.b32.xlu0 %v2358, 117
  %v2363 = vpop.permute.xlu0 %2362
  %2364 = vrot.lane.b32.xlu0 %v2359, 117
  %v2365 = vpop.permute.xlu0 %2364
  %vm2366 = vcmask 957440
  %v2367 = vsel %vm2366, %v2363, %v2365
  %2369 = vst [vmem:[#allocation3 + $0x40] sm:$0xff] %v2367
  %v2370 = vld [vmem:[#allocation2] sm:$0xff]
  %v2371 = vld [vmem:[#allocation2 + $0x8] sm:$0xff]
  %v2372 = vsel %vm2311, 1.0, 0.0
  %2374 = vrot.lane.b32.xlu0 %v2372, 17
  %v2375 = vpop.permute.xlu0 %2374
  %v2377 = vmul.f32 %v2370, %v2375
  %v2378 = vmul.f32 %v2371, %v2375
  %2381 = vrot.lane.b32.xlu0 %v2377, 111
  %v2382 = vpop.permute.xlu0 %2381
  %2383 = vrot.lane.b32.xlu0 %v2378, 111
  %v2384 = vpop.permute.xlu0 %2383
  %v2385 = vsel %vm199, %v2382, %v2384
  %2387 = vst [vmem:[#allocation3 + $0x60] sm:$0xff] %v2385
  %v2388 = vld [vmem:[#allocation2] sm:$0xff]
  %v2389 = vld [vmem:[#allocation2 + $0x8] sm:$0xff]
  %2392 = vrot.lane.b32.xlu0 %v2388, 110
  %v2393 = vpop.permute.xlu0 %2392
  %2394 = vrot.lane.b32.xlu0 %v2389, 110
  %v2395 = vpop.permute.xlu0 %2394
  %v2396 = vsel %vm267, %v2393, %v2395
  %2398 = vst [vmem:[#allocation3 + $0x80] sm:$0xff] %v2396
  %v2399 = vld [vmem:[#allocation2] sm:$0xff]
  %v2400 = vld [vmem:[#allocation2 + $0x8] sm:$0xff]
  %v2401 = vsel %vm2351, 1.0, 0.0
  %2403 = vrot.lane.b32.xlu0 %v2401, 19
  %v2404 = vpop.permute.xlu0 %2403
  %v2406 = vmul.f32 %v2399, %v2404
  %v2407 = vmul.f32 %v2400, %v2404
  %2410 = vrot.lane.b32.xlu0 %v2406, 109
  %v2411 = vpop.permute.xlu0 %2410
  %2412 = vrot.lane.b32.xlu0 %v2407, 109
  %v2413 = vpop.permute.xlu0 %2412
  %v2414 = vsel %vm343, %v2411, %v2413
  %2416 = vst [vmem:[#allocation3 + $0xa0] sm:$0xff] %v2414
  %v2417 = vld [vmem:[#allocation2] sm:$0xff]
  %v2418 = vld [vmem:[#allocation2 + $0x8] sm:$0xff]
  %vm2419 = vcmp.lt.s32.totalorder %v2028, 7
  %vm2420 = vmand %vm2419, %vm2311
  %v2421 = vsel %vm2420, 1.0, 0.0
  %2423 = vrot.lane.b32.xlu0 %v2421, 25
  %v2424 = vpop.permute.xlu0 %2423
  %v2426 = vmul.f32 %v2417, %v2424
  %v2427 = vmul.f32 %v2418, %v2424
  %2430 = vrot.lane.b32.xlu0 %v2426, 103
  %v2431 = vpop.permute.xlu0 %2430
  %2432 = vrot.lane.b32.xlu0 %v2427, 103
  %v2433 = vpop.permute.xlu0 %2432
  %vm2434 = vcmask 842752
  %v2435 = vsel %vm2434, %v2431, %v2433
  %2437 = vst [vmem:[#allocation3 + $0xc0] sm:$0xff] %v2435
  %v2438 = vld [vmem:[#allocation2] sm:$0xff]
  %v2439 = vld [vmem:[#allocation2 + $0x8] sm:$0xff]
  %v2440 = vsel %vm2419, 1.0, 0.0
  %2442 = vrot.lane.b32.xlu0 %v2440, 26
  %v2443 = vpop.permute.xlu0 %2442
  %v2445 = vmul.f32 %v2438, %v2443
  %v2446 = vmul.f32 %v2439, %v2443
  %2449 = vrot.lane.b32.xlu0 %v2445, 102
  %v2450 = vpop.permute.xlu0 %2449
  %2451 = vrot.lane.b32.xlu0 %v2446, 102
  %v2452 = vpop.permute.xlu0 %2451
  %vm2453 = vcmask 834560
  %v2454 = vsel %vm2453, %v2450, %v2452
  %2456 = vst [vmem:[#allocation3 + $0xe0] sm:$0xff] %v2454
  %v2457 = vld [vmem:[#allocation2] sm:$0xff]
  %v2458 = vld [vmem:[#allocation2 + $0x8] sm:$0xff]
  %vm2459 = vmand %vm2419, %vm2351
  %v2460 = vsel %vm2459, 1.0, 0.0
  %2462 = vrot.lane.b32.xlu0 %v2460, 27
  %v2463 = vpop.permute.xlu0 %2462
  %v2465 = vmul.f32 %v2457, %v2463
  %v2466 = vmul.f32 %v2458, %v2463
  %2469 = vrot.lane.b32.xlu0 %v2465, 101
  %v2470 = vpop.permute.xlu0 %2469
  %2471 = vrot.lane.b32.xlu0 %v2466, 101
  %v2472 = vpop.permute.xlu0 %2471
  %vm2473 = vcmask 826368
  %v2474 = vsel %vm2473, %v2470, %v2472
  %2476 = vst [vmem:[#allocation3 + $0x100] sm:$0xff] %v2474
  %v2477 = vld [vmem:[#allocation3] sm:$0xff]
  %v2478 = vld [vmem:[#allocation3 + $0x20] sm:$0xff]
  %v2479 = vld [vmem:[#allocation3 + $0x40] sm:$0xff]
  %v2480 = vld [vmem:[#allocation3 + $0x60] sm:$0xff]
  %v2481 = vld [vmem:[#allocation3 + $0x80] sm:$0xff]
  %v2482 = vld [vmem:[#allocation3 + $0xa0] sm:$0xff]
  %v2483 = vld [vmem:[#allocation3 + $0xc0] sm:$0xff]
  %v2484 = vld [vmem:[#allocation3 + $0xe0] sm:$0xff]
  %v2485 = vld [vmem:[#allocation3 + $0x100] sm:$0xff]
  %vm2486 = vcmask 588800
  %v2488 = vsel %vm2486, %v2295, 0
  %2490 = vmatpush.msra.mxu0 0.0
  %2491 = vmatpush.msra.mxu0 0.0
  %2492 = vmatpush.msra.mxu0 0.0
  %2493 = vmatpush.msra.mxu0 0.0
  %2494 = vmatpush.msra.mxu0 0.0
  %2495 = vmatpush.msra.mxu0 0.0
  %2496 = vmatpush.msra.mxu0 0.0
  %2497 = vmatpush.msra.mxu0 %v2485
  %2498 = vmatpush.msra.mxu0 %v2484
  %2499 = vmatpush.msra.mxu0 %v2483
  %2500 = vmatpush.msra.mxu0 %v2482
  %2501 = vmatpush.msra.mxu0 %v2481
  %2502 = vmatpush.msra.mxu0 %v2480
  %2503 = vmatpush.msra.mxu0 %v2479
  %2504 = vmatpush.msra.mxu0 %v2478
  %2505 = vmatpush.msra.mxu0 %v2477
  %2506 = vmatmul.f32.gmra.mxu0 %v2488
  %v2507 = vpop.f32.mrf.mxu0
  %v2508 = vadd.f32 0.0, %v2507
  %2509 = vdwg.mxu0
  %2510 = vadd.xlane.f32.xlu0 %v2508
  %v2511 = vpop.xlane.xlu0 %2510
  %v2512 = vmul.f32 %v2511, 0.0078125
  %v2513 = vsub.f32 %v2508, %v2512
  %v2514 = vmul.f32 %v2513, %v2513
  %2515 = vadd.xlane.f32.xlu0 %v2514
  %v2516 = vpop.xlane.xlu0 %2515
  %v2517 = vmul.f32 %v2516, 0.0078125
  %v2518 = vadd.f32 %v2517, 1e-05
  %v2519 = vrsqrt.pop %v2518
  %v2520 = vmul.f32 %v2519, %v2518
  %v2521 = vmul.f32 %v2520, %v2519
  %v2522 = vmul.f32 0.5, %v2521
  %v2523 = vsub.f32 1.5, %v2522
  %v2524 = vmul.f32 %v2519, %v2523
  %vm2525 = vweird.f32 %v2518
  %vm2526 = vweird.f32 %v2519
  %vm2527 = vmor %vm2525, %vm2526
  %v2528 = vsel %vm2527, %v2519, %v2524
  %v2529 = vmul.f32 %v2528, %v2296
  %2531 = vset.pattern.permute.xlu0 0
  %2532 = vperm.xlu0 %2531, %v2529
  %v2533 = vpop.permute.xlu0 %2532
  %v2535 = vmul.f32 %v2513, %v2533
  %2537 = vset.pattern.permute.xlu0 0
  %2538 = vperm.xlu0 %2537, %v2297
  %v2539 = vpop.permute.xlu0 %2538
  %v2541 = vadd.f32 %v2535, %v2539
  %v2542 = vsub.f32 0.0, %v2541
  %v2543 = vmul.f32 %v2542, 1.442695
  %v2544 = vpow.pop %v2543
  %v2545 = vadd.f32 %v2544, 1.0
  %v2546 = vrcp.pop %v2545
  %v2547 = vmul.f32 %v2545, %v2546
  %v2548 = vsub.f32 1.0, %v2547
  %v2549 = vmul.f32 %v2546, %v2548
  %v2550 = vadd.f32 %v2546, %v2549
  %vm2551 = vweird.f32 %v2545
  %vm2552 = vweird.f32 %v2546
  %vm2553 = vmor %vm2551, %vm2552
  %v2554 = vsel %vm2553, %v2546, %v2550
  %v2555 = vand.u32 2147483647, %v2545
  %vm2556 = vcmp.eq.f32.partialorder %v2555, 8.507059e+37
  %v2557 = vand.u32 %v2545, 2147483648
  %v2558 = vor.u32 1.1754944e-38, %v2557
  %v2559 = vsel %vm2556, %v2558, %v2554
  %v2560 = vmul.f32 1.0, %v2559
  %v2561 = vmul.f32 %v2541, %v2560
  %2563 = vrot.lane.b32.xlu0 %v2561, 18
  %v2564 = vpop.permute.xlu0 %2563
  %2566 = vst.msk [vmem:[#allocation2] sm:$0xff] %vm2305, %v2564
  %2567 = vst.msk [vmem:[#allocation2 + $0x8] sm:$0xff] %vm233, %v2564
  %v2568 = vld [vmem:[#allocation2] sm:$0xff]
  %v2569 = vld [vmem:[#allocation2 + $0x8] sm:$0xff]
  %v2570 = vmul.f32 %v2568, %v2316
  %v2571 = vmul.f32 %v2569, %v2316
  %2574 = vrot.lane.b32.xlu0 %v2570, 119
  %v2575 = vpop.permute.xlu0 %2574
  %2576 = vrot.lane.b32.xlu0 %v2571, 119
  %v2577 = vpop.permute.xlu0 %2576
  %v2578 = vsel %vm2326, %v2575, %v2577
  %2580 = vst [vmem:[#allocation3] sm:$0xff] %v2578
  %v2581 = vld [vmem:[#allocation2] sm:$0xff]
  %v2582 = vld [vmem:[#allocation2 + $0x8] sm:$0xff]
  %v2583 = vmul.f32 %v2581, %v2335
  %v2584 = vmul.f32 %v2582, %v2335
  %2587 = vrot.lane.b32.xlu0 %v2583, 118
  %v2588 = vpop.permute.xlu0 %2587
  %2589 = vrot.lane.b32.xlu0 %v2584, 118
  %v2590 = vpop.permute.xlu0 %2589
  %v2591 = vsel %vm2345, %v2588, %v2590
  %2593 = vst [vmem:[#allocation3 + $0x20] sm:$0xff] %v2591
  %v2594 = vld [vmem:[#allocation2] sm:$0xff]
  %v2595 = vld [vmem:[#allocation2 + $0x8] sm:$0xff]
  %v2596 = vmul.f32 %v2594, %v2356
  %v2597 = vmul.f32 %v2595, %v2356
  %2600 = vrot.lane.b32.xlu0 %v2596, 117
  %v2601 = vpop.permute.xlu0 %2600
  %2602 = vrot.lane.b32.xlu0 %v2597, 117
  %v2603 = vpop.permute.xlu0 %2602
  %v2604 = vsel %vm2366, %v2601, %v2603
  %2606 = vst [vmem:[#allocation3 + $0x40] sm:$0xff] %v2604
  %v2607 = vld [vmem:[#allocation2] sm:$0xff]
  %v2608 = vld [vmem:[#allocation2 + $0x8] sm:$0xff]
  %v2609 = vmul.f32 %v2607, %v2375
  %v2610 = vmul.f32 %v2608, %v2375
  %2613 = vrot.lane.b32.xlu0 %v2609, 111
  %v2614 = vpop.permute.xlu0 %2613
  %2615 = vrot.lane.b32.xlu0 %v2610, 111
  %v2616 = vpop.permute.xlu0 %2615
  %v2617 = vsel %vm199, %v2614, %v2616
  %2619 = vst [vmem:[#allocation3 + $0x60] sm:$0xff] %v2617
  %v2620 = vld [vmem:[#allocation2] sm:$0xff]
  %v2621 = vld [vmem:[#allocation2 + $0x8] sm:$0xff]
  %2624 = vrot.lane.b32.xlu0 %v2620, 110
  %v2625 = vpop.permute.xlu0 %2624
  %2626 = vrot.lane.b32.xlu0 %v2621, 110
  %v2627 = vpop.permute.xlu0 %2626
  %v2628 = vsel %vm267, %v2625, %v2627
  %2630 = vst [vmem:[#allocation3 + $0x80] sm:$0xff] %v2628
  %v2631 = vld [vmem:[#allocation2] sm:$0xff]
  %v2632 = vld [vmem:[#allocation2 + $0x8] sm:$0xff]
  %v2633 = vmul.f32 %v2631, %v2404
  %v2634 = vmul.f32 %v2632, %v2404
  %2637 = vrot.lane.b32.xlu0 %v2633, 109
  %v2638 = vpop.permute.xlu0 %2637
  %2639 = vrot.lane.b32.xlu0 %v2634, 109
  %v2640 = vpop.permute.xlu0 %2639
  %v2641 = vsel %vm343, %v2638, %v2640
  %2643 = vst [vmem:[#allocation3 + $0xa0] sm:$0xff] %v2641
  %v2644 = vld [vmem:[#allocation2] sm:$0xff]
  %v2645 = vld [vmem:[#allocation2 + $0x8] sm:$0xff]
  %v2646 = vmul.f32 %v2644, %v2424
  %v2647 = vmul.f32 %v2645, %v2424
  %2650 = vrot.lane.b32.xlu0 %v2646, 103
  %v2651 = vpop.permute.xlu0 %2650
  %2652 = vrot.lane.b32.xlu0 %v2647, 103
  %v2653 = vpop.permute.xlu0 %2652
  %v2654 = vsel %vm2434, %v2651, %v2653
  %2656 = vst [vmem:[#allocation3 + $0xc0] sm:$0xff] %v2654
  %v2657 = vld [vmem:[#allocation2] sm:$0xff]
  %v2658 = vld [vmem:[#allocation2 + $0x8] sm:$0xff]
  %v2659 = vmul.f32 %v2657, %v2443
  %v2660 = vmul.f32 %v2658, %v2443
  %2663 = vrot.lane.b32.xlu0 %v2659, 102
  %v2664 = vpop.permute.xlu0 %2663
  %2665 = vrot.lane.b32.xlu0 %v2660, 102
  %v2666 = vpop.permute.xlu0 %2665
  %v2667 = vsel %vm2453, %v2664, %v2666
  %2669 = vst [vmem:[#allocation3 + $0xe0] sm:$0xff] %v2667
  %v2670 = vld [vmem:[#allocation2] sm:$0xff]
  %v2671 = vld [vmem:[#allocation2 + $0x8] sm:$0xff]
  %v2672 = vmul.f32 %v2670, %v2463
  %v2673 = vmul.f32 %v2671, %v2463
  %2676 = vrot.lane.b32.xlu0 %v2672, 101
  %v2677 = vpop.permute.xlu0 %2676
  %2678 = vrot.lane.b32.xlu0 %v2673, 101
  %v2679 = vpop.permute.xlu0 %2678
  %v2680 = vsel %vm2473, %v2677, %v2679
  %2682 = vst [vmem:[#allocation3 + $0x100] sm:$0xff] %v2680
  %v2683 = vld [vmem:[#allocation3] sm:$0xff]
  %v2684 = vld [vmem:[#allocation3 + $0x20] sm:$0xff]
  %v2685 = vld [vmem:[#allocation3 + $0x40] sm:$0xff]
  %v2686 = vld [vmem:[#allocation3 + $0x60] sm:$0xff]
  %v2687 = vld [vmem:[#allocation3 + $0x80] sm:$0xff]
  %v2688 = vld [vmem:[#allocation3 + $0xa0] sm:$0xff]
  %v2689 = vld [vmem:[#allocation3 + $0xc0] sm:$0xff]
  %v2690 = vld [vmem:[#allocation3 + $0xe0] sm:$0xff]
  %v2691 = vld [vmem:[#allocation3 + $0x100] sm:$0xff]
  %v2693 = vsel %vm2486, %v2298, 0
  %2695 = vmatpush.msra.mxu0 0.0
  %2696 = vmatpush.msra.mxu0 0.0
  %2697 = vmatpush.msra.mxu0 0.0
  %2698 = vmatpush.msra.mxu0 0.0
  %2699 = vmatpush.msra.mxu0 0.0
  %2700 = vmatpush.msra.mxu0 0.0
  %2701 = vmatpush.msra.mxu0 0.0
  %2702 = vmatpush.msra.mxu0 %v2691
  %2703 = vmatpush.msra.mxu0 %v2690
  %2704 = vmatpush.msra.mxu0 %v2689
  %2705 = vmatpush.msra.mxu0 %v2688
  %2706 = vmatpush.msra.mxu0 %v2687
  %2707 = vmatpush.msra.mxu0 %v2686
  %2708 = vmatpush.msra.mxu0 %v2685
  %2709 = vmatpush.msra.mxu0 %v2684
  %2710 = vmatpush.msra.mxu0 %v2683
  %2711 = vmatmul.f32.gmra.mxu0 %v2693
  %v2712 = vpop.f32.mrf.mxu0
  %v2713 = vadd.f32 0.0, %v2712
  %2714 = vdwg.mxu0
  %2715 = vadd.xlane.f32.xlu0 %v2713
  %v2716 = vpop.xlane.xlu0 %2715
  %v2717 = vmul.f32 %v2716, 0.0078125
  %v2718 = vsub.f32 %v2713, %v2717
  %v2719 = vmul.f32 %v2718, %v2718
  %2720 = vadd.xlane.f32.xlu0 %v2719
  %v2721 = vpop.xlane.xlu0 %2720
  %v2722 = vmul.f32 %v2721, 0.0078125
  %v2723 = vadd.f32 %v2722, 1e-05
  %v2724 = vrsqrt.pop %v2723
  %v2725 = vmul.f32 %v2724, %v2723
  %v2726 = vmul.f32 %v2725, %v2724
  %v2727 = vmul.f32 0.5, %v2726
  %v2728 = vsub.f32 1.5, %v2727
  %v2729 = vmul.f32 %v2724, %v2728
  %vm2730 = vweird.f32 %v2723
  %vm2731 = vweird.f32 %v2724
  %vm2732 = vmor %vm2730, %vm2731
  %v2733 = vsel %vm2732, %v2724, %v2729
  %v2734 = vmul.f32 %v2733, %v2299
  %2736 = vset.pattern.permute.xlu0 0
  %2737 = vperm.xlu0 %2736, %v2734
  %v2738 = vpop.permute.xlu0 %2737
  %v2740 = vmul.f32 %v2718, %v2738
  %2742 = vset.pattern.permute.xlu0 0
  %2743 = vperm.xlu0 %2742, %v2300
  %v2744 = vpop.permute.xlu0 %2743
  %v2746 = vadd.f32 %v2740, %v2744
  %v2747 = vadd.f32 %v2746, %v2294
  %v2748 = vsub.f32 0.0, %v2747
  %v2749 = vmul.f32 %v2748, 1.442695
  %v2750 = vpow.pop %v2749
  %v2751 = vadd.f32 %v2750, 1.0
  %v2752 = vrcp.pop %v2751
  %v2753 = vmul.f32 %v2751, %v2752
  %v2754 = vsub.f32 1.0, %v2753
  %v2755 = vmul.f32 %v2752, %v2754
  %v2756 = vadd.f32 %v2752, %v2755
  %vm2757 = vweird.f32 %v2751
  %vm2758 = vweird.f32 %v2752
  %vm2759 = vmor %vm2757, %vm2758
  %v2760 = vsel %vm2759, %v2752, %v2756
  %v2761 = vand.u32 2147483647, %v2751
  %vm2762 = vcmp.eq.f32.partialorder %v2761, 8.507059e+37
  %v2763 = vand.u32 %v2751, 2147483648
  %v2764 = vor.u32 1.1754944e-38, %v2763
  %v2765 = vsel %vm2762, %v2764, %v2760
  %v2766 = vmul.f32 1.0, %v2765
  %v2767 = vmul.f32 %v2747, %v2766
  %v2768 = vld [vmem:[%s13] sm:$0xff]
  %v2769 = vld [vmem:[%s13 + $0x8] sm:$0xff]
  %v2770 = vld [vmem:[%s14] sm:$0xff]
  %v2771 = vld [vmem:[%s14 + $0x8] sm:$0xff]
  %v2772 = vld [vmem:[%s15] sm:$0xff]
  %v2773 = vld [vmem:[%s15 + $0x8] sm:$0xff]
  %2775 = vrot.lane.b32.xlu0 %v2767, 18
  %v2776 = vpop.permute.xlu0 %2775
  %2778 = vst.msk [vmem:[#allocation2] sm:$0xff] %vm2305, %v2776
  %2779 = vst.msk [vmem:[#allocation2 + $0x8] sm:$0xff] %vm233, %v2776
  %v2780 = vld [vmem:[#allocation2] sm:$0xff]
  %v2781 = vld [vmem:[#allocation2 + $0x8] sm:$0xff]
  %v2782 = vmul.f32 %v2780, %v2316
  %v2783 = vmul.f32 %v2781, %v2316
  %2786 = vrot.lane.b32.xlu0 %v2782, 119
  %v2787 = vpop.permute.xlu0 %2786
  %2788 = vrot.lane.b32.xlu0 %v2783, 119
  %v2789 = vpop.permute.xlu0 %2788
  %v2790 = vsel %vm2326, %v2787, %v2789
  %2792 = vst [vmem:[#allocation3] sm:$0xff] %v2790
  %v2793 = vld [vmem:[#allocation2] sm:$0xff]
  %v2794 = vld [vmem:[#allocation2 + $0x8] sm:$0xff]
  %v2795 = vmul.f32 %v2793, %v2335
  %v2796 = vmul.f32 %v2794, %v2335
  %2799 = vrot.lane.b32.xlu0 %v2795, 118
  %v2800 = vpop.permute.xlu0 %2799
  %2801 = vrot.lane.b32.xlu0 %v2796, 118
  %v2802 = vpop.permute.xlu0 %2801
  %v2803 = vsel %vm2345, %v2800, %v2802
  %2805 = vst [vmem:[#allocation3 + $0x20] sm:$0xff] %v2803
  %v2806 = vld [vmem:[#allocation2] sm:$0xff]
  %v2807 = vld [vmem:[#allocation2 + $0x8] sm:$0xff]
  %v2808 = vmul.f32 %v2806, %v2356
  %v2809 = vmul.f32 %v2807, %v2356
  %2812 = vrot.lane.b32.xlu0 %v2808, 117
  %v2813 = vpop.permute.xlu0 %2812
  %2814 = vrot.lane.b32.xlu0 %v2809, 117
  %v2815 = vpop.permute.xlu0 %2814
  %v2816 = vsel %vm2366, %v2813, %v2815
  %2818 = vst [vmem:[#allocation3 + $0x40] sm:$0xff] %v2816
  %v2819 = vld [vmem:[#allocation2] sm:$0xff]
  %v2820 = vld [vmem:[#allocation2 + $0x8] sm:$0xff]
  %vm2821 = vcmp.lt.s32.totalorder %v2026, 6
  %vm2822 = vmand %vm2310, %vm2821
  %v2823 = vsel %vm2822, 1.0, 0.0
  %2825 = vrot.lane.b32.xlu0 %v2823, 12
  %v2826 = vpop.permute.xlu0 %2825
  %v2828 = vmul.f32 %v2819, %v2826
  %v2829 = vmul.f32 %v2820, %v2826
  %2832 = vrot.lane.b32.xlu0 %v2828, 116
  %v2833 = vpop.permute.xlu0 %2832
  %2834 = vrot.lane.b32.xlu0 %v2829, 116
  %v2835 = vpop.permute.xlu0 %2834
  %vm2836 = vcmask 949248
  %v2837 = vsel %vm2836, %v2833, %v2835
  %2839 = vst [vmem:[#allocation3 + $0x60] sm:$0xff] %v2837
  %v2840 = vld [vmem:[#allocation2] sm:$0xff]
  %v2841 = vld [vmem:[#allocation2 + $0x8] sm:$0xff]
  %v2842 = vmul.f32 %v2840, %v2375
  %v2843 = vmul.f32 %v2841, %v2375
  %2846 = vrot.lane.b32.xlu0 %v2842, 111
  %v2847 = vpop.permute.xlu0 %2846
  %2848 = vrot.lane.b32.xlu0 %v2843, 111
  %v2849 = vpop.permute.xlu0 %2848
  %v2850 = vsel %vm199, %v2847, %v2849
  %2852 = vst [vmem:[#allocation3 + $0x80] sm:$0xff] %v2850
  %v2853 = vld [vmem:[#allocation2] sm:$0xff]
  %v2854 = vld [vmem:[#allocation2 + $0x8] sm:$0xff]
  %2857 = vrot.lane.b32.xlu0 %v2853, 110
  %v2858 = vpop.permute.xlu0 %2857
  %2859 = vrot.lane.b32.xlu0 %v2854, 110
  %v2860 = vpop.permute.xlu0 %2859
  %v2861 = vsel %vm267, %v2858, %v2860
  %2863 = vst [vmem:[#allocation3 + $0xa0] sm:$0xff] %v2861
  %v2864 = vld [vmem:[#allocation2] sm:$0xff]
  %v2865 = vld [vmem:[#allocation2 + $0x8] sm:$0xff]
  %v2866 = vmul.f32 %v2864, %v2404
  %v2867 = vmul.f32 %v2865, %v2404
  %2870 = vrot.lane.b32.xlu0 %v2866, 109
  %v2871 = vpop.permute.xlu0 %2870
  %2872 = vrot.lane.b32.xlu0 %v2867, 109
  %v2873 = vpop.permute.xlu0 %2872
  %v2874 = vsel %vm343, %v2871, %v2873
  %2876 = vst [vmem:[#allocation3 + $0xc0] sm:$0xff] %v2874
  %v2877 = vld [vmem:[#allocation2] sm:$0xff]
  %v2878 = vld [vmem:[#allocation2 + $0x8] sm:$0xff]
  %v2879 = vsel %vm2821, 1.0, 0.0
  %2881 = vrot.lane.b32.xlu0 %v2879, 20
  %v2882 = vpop.permute.xlu0 %2881
  %v2884 = vmul.f32 %v2877, %v2882
  %v2885 = vmul.f32 %v2878, %v2882
  %2888 = vrot.lane.b32.xlu0 %v2884, 108
  %v2889 = vpop.permute.xlu0 %2888
  %2890 = vrot.lane.b32.xlu0 %v2885, 108
  %v2891 = vpop.permute.xlu0 %2890
  %v2892 = vsel %vm1190, %v2889, %v2891
  %2894 = vst [vmem:[#allocation3 + $0xe0] sm:$0xff] %v2892
  %v2895 = vld [vmem:[#allocation2] sm:$0xff]
  %v2896 = vld [vmem:[#allocation2 + $0x8] sm:$0xff]
  %v2897 = vmul.f32 %v2895, %v2424
  %v2898 = vmul.f32 %v2896, %v2424
  %2901 = vrot.lane.b32.xlu0 %v2897, 103
  %v2902 = vpop.permute.xlu0 %2901
  %2903 = vrot.lane.b32.xlu0 %v2898, 103
  %v2904 = vpop.permute.xlu0 %2903
  %v2905 = vsel %vm2434, %v2902, %v2904
  %2907 = vst [vmem:[#allocation3 + $0x100] sm:$0xff] %v2905
  %v2908 = vld [vmem:[#allocation2] sm:$0xff]
  %v2909 = vld [vmem:[#allocation2 + $0x8] sm:$0xff]
  %v2910 = vmul.f32 %v2908, %v2443
  %v2911 = vmul.f32 %v2909, %v2443
  %2914 = vrot.lane.b32.xlu0 %v2910, 102
  %v2915 = vpop.permute.xlu0 %2914
  %2916 = vrot.lane.b32.xlu0 %v2911, 102
  %v2917 = vpop.permute.xlu0 %2916
  %v2918 = vsel %vm2453, %v2915, %v2917
  %2920 = vst [vmem:[#allocation3 + $0x120] sm:$0xff] %v2918
  %v2921 = vld [vmem:[#allocation2] sm:$0xff]
  %v2922 = vld [vmem:[#allocation2 + $0x8] sm:$0xff]
  %v2923 = vmul.f32 %v2921, %v2463
  %v2924 = vmul.f32 %v2922, %v2463
  %2927 = vrot.lane.b32.xlu0 %v2923, 101
  %v2928 = vpop.permute.xlu0 %2927
  %2929 = vrot.lane.b32.xlu0 %v2924, 101
  %v2930 = vpop.permute.xlu0 %2929
  %v2931 = vsel %vm2473, %v2928, %v2930
  %2933 = vst [vmem:[#allocation3 + $0x140] sm:$0xff] %v2931
  %v2934 = vld [vmem:[#allocation2] sm:$0xff]
  %v2935 = vld [vmem:[#allocation2 + $0x8] sm:$0xff]
  %vm2936 = vmand %vm2419, %vm2821
  %v2937 = vsel %vm2936, 1.0, 0.0
  %2939 = vrot.lane.b32.xlu0 %v2937, 28
  %v2940 = vpop.permute.xlu0 %2939
  %v2942 = vmul.f32 %v2934, %v2940
  %v2943 = vmul.f32 %v2935, %v2940
  %2946 = vrot.lane.b32.xlu0 %v2942, 100
  %v2947 = vpop.permute.xlu0 %2946
  %2948 = vrot.lane.b32.xlu0 %v2943, 100
  %v2949 = vpop.permute.xlu0 %2948
  %vm2950 = vcmask 818176
  %v2951 = vsel %vm2950, %v2947, %v2949
  %2953 = vst [vmem:[#allocation3 + $0x160] sm:$0xff] %v2951
  %v2954 = vld [vmem:[#allocation2] sm:$0xff]
  %v2955 = vld [vmem:[#allocation2 + $0x8] sm:$0xff]
  %vm2956 = vcmp.lt.s32.totalorder %v2028, 6
  %vm2957 = vmand %vm2956, %vm2311
  %v2958 = vsel %vm2957, 1.0, 0.0
  %2960 = vrot.lane.b32.xlu0 %v2958, 33
  %v2961 = vpop.permute.xlu0 %2960
  %v2963 = vmul.f32 %v2954, %v2961
  %v2964 = vmul.f32 %v2955, %v2961
  %2967 = vrot.lane.b32.xlu0 %v2963, 95
  %v2968 = vpop.permute.xlu0 %2967
  %2969 = vrot.lane.b32.xlu0 %v2964, 95
  %v2970 = vpop.permute.xlu0 %2969
  %v2971 = vsel %vm415, %v2968, %v2970
  %2973 = vst [vmem:[#allocation3 + $0x180] sm:$0xff] %v2971
  %v2974 = vld [vmem:[#allocation2] sm:$0xff]
  %v2975 = vld [vmem:[#allocation2 + $0x8] sm:$0xff]
  %v2976 = vsel %vm2956, 1.0, 0.0
  %2978 = vrot.lane.b32.xlu0 %v2976, 34
  %v2979 = vpop.permute.xlu0 %2978
  %v2981 = vmul.f32 %v2974, %v2979
  %v2982 = vmul.f32 %v2975, %v2979
  %2985 = vrot.lane.b32.xlu0 %v2981, 94
  %v2986 = vpop.permute.xlu0 %2985
  %2987 = vrot.lane.b32.xlu0 %v2982, 94
  %v2988 = vpop.permute.xlu0 %2987
  %v2989 = vsel %vm453, %v2986, %v2988
  %2991 = vst [vmem:[#allocation3 + $0x1a0] sm:$0xff] %v2989
  %v2992 = vld [vmem:[#allocation2] sm:$0xff]
  %v2993 = vld [vmem:[#allocation2 + $0x8] sm:$0xff]
  %vm2994 = vmand %vm2956, %vm2351
  %v2995 = vsel %vm2994, 1.0, 0.0
  %2997 = vrot.lane.b32.xlu0 %v2995, 35
  %v2998 = vpop.permute.xlu0 %2997
  %v3000 = vmul.f32 %v2992, %v2998
  %v3001 = vmul.f32 %v2993, %v2998
  %3004 = vrot.lane.b32.xlu0 %v3000, 93
  %v3005 = vpop.permute.xlu0 %3004
  %3006 = vrot.lane.b32.xlu0 %v3001, 93
  %v3007 = vpop.permute.xlu0 %3006
  %v3008 = vsel %vm521, %v3005, %v3007
  %3010 = vst [vmem:[#allocation3 + $0x1c0] sm:$0xff] %v3008
  %v3011 = vld [vmem:[#allocation2] sm:$0xff]
  %v3012 = vld [vmem:[#allocation2 + $0x8] sm:$0xff]
  %vm3013 = vmand %vm2956, %vm2821
  %v3014 = vsel %vm3013, 1.0, 0.0
  %3016 = vrot.lane.b32.xlu0 %v3014, 36
  %v3017 = vpop.permute.xlu0 %3016
  %v3019 = vmul.f32 %v3011, %v3017
  %v3020 = vmul.f32 %v3012, %v3017
  %3023 = vrot.lane.b32.xlu0 %v3019, 92
  %v3024 = vpop.permute.xlu0 %3023
  %3025 = vrot.lane.b32.xlu0 %v3020, 92
  %v3026 = vpop.permute.xlu0 %3025
  %v3027 = vsel %vm1359, %v3024, %v3026
  %3029 = vst [vmem:[#allocation3 + $0x1e0] sm:$0xff] %v3027
  %v3030 = vld [vmem:[#allocation3] sm:$0xff]
  %v3031 = vld [vmem:[#allocation3 + $0x20] sm:$0xff]
  %v3032 = vld [vmem:[#allocation3 + $0x40] sm:$0xff]
  %v3033 = vld [vmem:[#allocation3 + $0x60] sm:$0xff]
  %v3034 = vld [vmem:[#allocation3 + $0x80] sm:$0xff]
  %v3035 = vld [vmem:[#allocation3 + $0xa0] sm:$0xff]
  %v3036 = vld [vmem:[#allocation3 + $0xc0] sm:$0xff]
  %v3037 = vld [vmem:[#allocation3 + $0xe0] sm:$0xff]
  %v3038 = vld [vmem:[#allocation3 + $0x100] sm:$0xff]
  %v3039 = vld [vmem:[#allocation3 + $0x120] sm:$0xff]
  %v3040 = vld [vmem:[#allocation3 + $0x140] sm:$0xff]
  %v3041 = vld [vmem:[#allocation3 + $0x160] sm:$0xff]
  %v3042 = vld [vmem:[#allocation3 + $0x180] sm:$0xff]
  %v3043 = vld [vmem:[#allocation3 + $0x1a0] sm:$0xff]
  %v3044 = vld [vmem:[#allocation3 + $0x1c0] sm:$0xff]
  %v3045 = vld [vmem:[#allocation3 + $0x1e0] sm:$0xff]
  %3046 = vmatpush.msra.mxu0 %v3045
  %3047 = vmatpush.msra.mxu0 %v3044
  %3048 = vmatpush.msra.mxu0 %v3043
  %3049 = vmatpush.msra.mxu0 %v3042
  %3050 = vmatpush.msra.mxu0 %v3041
  %3051 = vmatpush.msra.mxu0 %v3040
  %3052 = vmatpush.msra.mxu0 %v3039
  %3053 = vmatpush.msra.mxu0 %v3038
  %3054 = vmatpush.msra.mxu0 %v3037
  %3055 = vmatpush.msra.mxu0 %v3036
  %3056 = vmatpush.msra.mxu0 %v3035
  %3057 = vmatpush.msra.mxu0 %v3034
  %3058 = vmatpush.msra.mxu0 %v3033
  %3059 = vmatpush.msra.mxu0 %v3032
  %3060 = vmatpush.msra.mxu0 %v3031
  %3061 = vmatpush.msra.mxu0 %v3030
  %3062 = vmatmul.f32.gmra.mxu0 %v2768
  %v3063 = vpop.f32.mrf.mxu0
  %v3064 = vadd.f32 0.0, %v3063
  %3065 = vmatmul.f32.gmra.mxu0 %v2769
  %v3066 = vpop.f32.mrf.mxu0
  %v3067 = vadd.f32 0.0, %v3066
  %3068 = vdwg.mxu0
  %v3069 = vand.u32 %v126, 3
  %v3070 = vshra.s32 %v126, 2
  %v3071 = vand.u32 %v3070, 3
  %v3072 = vmul.u32 %v134, 64
  %v3073 = vmul.u32 %v3071, 16
  %v3074 = vadd.s32 %v3072, %v3073
  %v3075 = vmul.u32 %v3069, 2
  %v3076 = vadd.s32 %v3074, %v3075
  %vm3077 = vcmp.eq.s32.totalorder %v1962, %v3076
  %vm3078 = vcmp.eq.s32.totalorder %v1963, %v3076
  %vm3079 = vcmp.eq.s32.totalorder %v1964, %v3076
  %vm3080 = vcmp.eq.s32.totalorder %v1965, %v3076
  %vm3081 = vcmp.eq.s32.totalorder %v1966, %v3076
  %vm3082 = vcmp.eq.s32.totalorder %v1967, %v3076
  %vm3083 = vcmp.eq.s32.totalorder %v1968, %v3076
  %vm3084 = vcmp.eq.s32.totalorder %v1969, %v3076
  %vm3085 = vcmp.eq.s32.totalorder %v1970, %v3076
  %vm3086 = vcmp.eq.s32.totalorder %v1971, %v3076
  %vm3087 = vcmp.eq.s32.totalorder %v1972, %v3076
  %vm3088 = vcmp.eq.s32.totalorder %v1973, %v3076
  %vm3089 = vcmp.eq.s32.totalorder %v1974, %v3076
  %vm3090 = vcmp.eq.s32.totalorder %v1975, %v3076
  %vm3091 = vcmp.eq.s32.totalorder %v1976, %v3076
  %vm3092 = vcmp.eq.s32.totalorder %v1977, %v3076
  %v3093 = vsel %vm3077, 1.0, 0.0
  %v3094 = vsel %vm3078, 1.0, 0.0
  %v3095 = vsel %vm3079, 1.0, 0.0
  %v3096 = vsel %vm3080, 1.0, 0.0
  %v3097 = vsel %vm3081, 1.0, 0.0
  %v3098 = vsel %vm3082, 1.0, 0.0
  %v3099 = vsel %vm3083, 1.0, 0.0
  %v3100 = vsel %vm3084, 1.0, 0.0
  %v3101 = vsel %vm3085, 1.0, 0.0
  %v3102 = vsel %vm3086, 1.0, 0.0
  %v3103 = vsel %vm3087, 1.0, 0.0
  %v3104 = vsel %vm3088, 1.0, 0.0
  %v3105 = vsel %vm3089, 1.0, 0.0
  %v3106 = vsel %vm3090, 1.0, 0.0
  %v3107 = vsel %vm3091, 1.0, 0.0
  %v3108 = vsel %vm3092, 1.0, 0.0
  %3109 = vmatpush.msra.mxu0 %v3108
  %3110 = vmatpush.msra.mxu0 %v3107
  %3111 = vmatpush.msra.mxu0 %v3106
  %3112 = vmatpush.msra.mxu0 %v3105
  %3113 = vmatpush.msra.mxu0 %v3104
  %3114 = vmatpush.msra.mxu0 %v3103
  %3115 = vmatpush.msra.mxu0 %v3102
  %3116 = vmatpush.msra.mxu0 %v3101
  %3117 = vmatpush.msra.mxu0 %v3100
  %3118 = vmatpush.msra.mxu0 %v3099
  %3119 = vmatpush.msra.mxu0 %v3098
  %3120 = vmatpush.msra.mxu0 %v3097
  %3121 = vmatpush.msra.mxu0 %v3096
  %3122 = vmatpush.msra.mxu0 %v3095
  %3123 = vmatpush.msra.mxu0 %v3094
  %3124 = vmatpush.msra.mxu0 %v3093
  %3125 = vmatmul.f32.gmra.mxu0 %v3064
  %v3126 = vpop.f32.mrf.mxu0
  %v3127 = vadd.f32 0.0, %v3126
  %3128 = vmatmul.f32.gmra.mxu0 %v3067
  %v3129 = vpop.f32.mrf.mxu0
  %v3130 = vadd.f32 0.0, %v3129
  %3131 = vdwg.mxu0
  %vm3132 = vcmask 261120
  %v3133 = vsel %vm3132, %v3127, 0.0
  %3134 = vadd.xlane.f32.xlu0 %v3133
  %v3135 = vpop.xlane.xlu0 %3134
  %v3136 = vsel %vm3132, %v3130, 0.0
  %3137 = vadd.xlane.f32.xlu0 %v3136
  %v3138 = vpop.xlane.xlu0 %3137
  %v3139 = vmul.f32 %v3135, 0.03125
  %v3140 = vmul.f32 %v3138, 0.03125
  %v3141 = vsub.f32 %v3127, %v3139
  %v3142 = vsub.f32 %v3130, %v3140
  %v3143 = vmul.f32 %v3141, %v3141
  %v3144 = vmul.f32 %v3142, %v3142
  %v3145 = vsel %vm3132, %v3143, 0.0
  %3146 = vadd.xlane.f32.xlu0 %v3145
  %v3147 = vpop.xlane.xlu0 %3146
  %v3148 = vsel %vm3132, %v3144, 0.0
  %3149 = vadd.xlane.f32.xlu0 %v3148
  %v3150 = vpop.xlane.xlu0 %3149
  %v3151 = vmul.f32 %v3147, 0.03125
  %v3152 = vmul.f32 %v3150, 0.03125
  %v3153 = vadd.f32 %v3151, 1e-05
  %v3154 = vadd.f32 %v3152, 1e-05
  %v3155 = vrsqrt.pop %v3153
  %v3156 = vmul.f32 %v3155, %v3153
  %v3157 = vmul.f32 %v3156, %v3155
  %v3158 = vmul.f32 0.5, %v3157
  %v3159 = vsub.f32 1.5, %v3158
  %v3160 = vmul.f32 %v3155, %v3159
  %vm3161 = vweird.f32 %v3153
  %vm3162 = vweird.f32 %v3155
  %vm3163 = vmor %vm3161, %vm3162
  %v3164 = vsel %vm3163, %v3155, %v3160
  %v3165 = vrsqrt.pop %v3154
  %v3166 = vmul.f32 %v3165, %v3154
  %v3167 = vmul.f32 %v3166, %v3165
  %v3168 = vmul.f32 0.5, %v3167
  %v3169 = vsub.f32 1.5, %v3168
  %v3170 = vmul.f32 %v3165, %v3169
  %vm3171 = vweird.f32 %v3154
  %vm3172 = vweird.f32 %v3165
  %vm3173 = vmor %vm3171, %vm3172
  %v3174 = vsel %vm3173, %v3165, %v3170
  %v3175 = vmul.f32 %v3164, %v2770
  %v3176 = vmul.f32 %v3174, %v2771
  %3178 = vset.pattern.permute.xlu0 0
  %3179 = vperm.xlu0 %3178, %v3175
  %v3180 = vpop.permute.xlu0 %3179
  %3183 = vset.pattern.permute.xlu0 0
  %3184 = vperm.xlu0 %3183, %v3176
  %v3185 = vpop.permute.xlu0 %3184
  %v3187 = vmul.f32 %v3141, %v3180
  %v3188 = vmul.f32 %v3142, %v3185
  %3190 = vset.pattern.permute.xlu0 0
  %3191 = vperm.xlu0 %3190, %v2772
  %v3192 = vpop.permute.xlu0 %3191
  %3195 = vset.pattern.permute.xlu0 0
  %3196 = vperm.xlu0 %3195, %v2773
  %v3197 = vpop.permute.xlu0 %3196
  %v3199 = vadd.f32 %v3187, %v3192
  %v3200 = vadd.f32 %v3188, %v3197
  %v3201 = vsub.f32 0.0, %v3199
  %v3202 = vsub.f32 0.0, %v3200
  %v3203 = vmul.f32 %v3201, 1.442695
  %v3204 = vpow.pop %v3203
  %v3205 = vmul.f32 %v3202, 1.442695
  %v3206 = vpow.pop %v3205
  %v3207 = vadd.f32 %v3204, 1.0
  %v3208 = vadd.f32 %v3206, 1.0
  %v3209 = vrcp.pop %v3207
  %v3210 = vmul.f32 %v3207, %v3209
  %v3211 = vsub.f32 1.0, %v3210
  %v3212 = vmul.f32 %v3209, %v3211
  %v3213 = vadd.f32 %v3209, %v3212
  %vm3214 = vweird.f32 %v3207
  %vm3215 = vweird.f32 %v3209
  %vm3216 = vmor %vm3214, %vm3215
  %v3217 = vsel %vm3216, %v3209, %v3213
  %v3218 = vand.u32 2147483647, %v3207
  %vm3219 = vcmp.eq.f32.partialorder %v3218, 8.507059e+37
  %v3220 = vand.u32 %v3207, 2147483648
  %v3221 = vor.u32 1.1754944e-38, %v3220
  %v3222 = vsel %vm3219, %v3221, %v3217
  %v3223 = vmul.f32 1.0, %v3222
  %v3224 = vrcp.pop %v3208
  %v3225 = vmul.f32 %v3208, %v3224
  %v3226 = vsub.f32 1.0, %v3225
  %v3227 = vmul.f32 %v3224, %v3226
  %v3228 = vadd.f32 %v3224, %v3227
  %vm3229 = vweird.f32 %v3208
  %vm3230 = vweird.f32 %v3224
  %vm3231 = vmor %vm3229, %vm3230
  %v3232 = vsel %vm3231, %v3224, %v3228
  %v3233 = vand.u32 2147483647, %v3208
  %vm3234 = vcmp.eq.f32.partialorder %v3233, 8.507059e+37
  %v3235 = vand.u32 %v3208, 2147483648
  %v3236 = vor.u32 1.1754944e-38, %v3235
  %v3237 = vsel %vm3234, %v3236, %v3232
  %v3238 = vmul.f32 1.0, %v3237
  %v3239 = vmul.f32 %v3199, %v3223
  %v3240 = vmul.f32 %v3200, %v3238
  %v3241 = vld [vmem:[%s16] sm:$0xff]
  %v3242 = vld [vmem:[%s16 + $0x8] sm:$0xff]
  %v3243 = vld [vmem:[%s16 + $0x10] sm:$0xff]
  %v3244 = vld [vmem:[%s16 + $0x18] sm:$0xff]
  %v3245 = vld [vmem:[%s17] sm:$0xff]
  %v3246 = vld [vmem:[%s17 + $0x8] sm:$0xff]
  %v3247 = vld [vmem:[%s18] sm:$0xff]
  %v3248 = vld [vmem:[%s18 + $0x8] sm:$0xff]
  %v3249 = vld [vmem:[%s19] sm:$0xff]
  %v3250 = vld [vmem:[%s19 + $0x8] sm:$0xff]
  %v3251 = vld [vmem:[%s19 + $0x10] sm:$0xff]
  %v3252 = vld [vmem:[%s19 + $0x18] sm:$0xff]
  %v3253 = vld [vmem:[%s20] sm:$0xff]
  %v3254 = vld [vmem:[%s20 + $0x8] sm:$0xff]
  %v3255 = vld [vmem:[%s21] sm:$0xff]
  %v3256 = vld [vmem:[%s21 + $0x8] sm:$0xff]
  %3259 = vrot.lane.b32.xlu0 %v3239, 10
  %v3260 = vpop.permute.xlu0 %3259
  %3261 = vrot.lane.b32.xlu0 %v3240, 10
  %v3262 = vpop.permute.xlu0 %3261
  %vm3265 = vcmask 343120
  %3266 = vst.msk [vmem:[#allocation2] sm:$0xff] %vm3265, %v3260
  %3267 = vst.msk [vmem:[#allocation2 + $0x28] sm:$0xff] %vm3265, %v3262
  %v3268 = vld [vmem:[#allocation2] sm:$0xff]
  %v3269 = vld [vmem:[#allocation2 + $0x28] sm:$0xff]
  %vm3270 = vcmp.ge.s32.totalorder %v3071, 1
  %vm3271 = vcmp.ge.s32.totalorder %v3069, 1
  %vm3272 = vmand %vm3270, %vm3271
  %v3273 = vsel %vm3272, 1.0, 0.0
  %3275 = vrot.lane.b32.xlu0 %v3273, 5
  %v3276 = vpop.permute.xlu0 %3275
  %v3278 = vmul.f32 %v3268, %v3276
  %v3279 = vmul.f32 %v3269, %v3276
  %3282 = vrot.lane.b32.xlu0 %v3278, 123
  %v3283 = vpop.permute.xlu0 %3282
  %3284 = vrot.lane.b32.xlu0 %v3279, 123
  %v3285 = vpop.permute.xlu0 %3284
  %3288 = vst.msk [vmem:[#allocation3] sm:$0xff] %vm3132, %v3283
  %3289 = vst.msk [vmem:[#allocation3 + $0x20] sm:$0xff] %vm3132, %v3285
  %v3290 = vld [vmem:[#allocation2] sm:$0xff]
  %v3291 = vld [vmem:[#allocation2 + $0x28] sm:$0xff]
  %v3292 = vsel %vm3270, 1.0, 0.0
  %3294 = vrot.lane.b32.xlu0 %v3292, 6
  %v3295 = vpop.permute.xlu0 %3294
  %v3297 = vmul.f32 %v3290, %v3295
  %v3298 = vmul.f32 %v3291, %v3295
  %3301 = vrot.lane.b32.xlu0 %v3297, 122
  %v3302 = vpop.permute.xlu0 %3301
  %3303 = vrot.lane.b32.xlu0 %v3298, 122
  %v3304 = vpop.permute.xlu0 %3303
  %3307 = vst.msk [vmem:[#allocation3 + $0x40] sm:$0xff] %vm3132, %v3302
  %3308 = vst.msk [vmem:[#allocation3 + $0x60] sm:$0xff] %vm3132, %v3304
  %v3309 = vld [vmem:[#allocation2] sm:$0xff]
  %v3310 = vld [vmem:[#allocation2 + $0x28] sm:$0xff]
  %vm3311 = vcmp.lt.s32.totalorder %v3069, 3
  %vm3312 = vmand %vm3270, %vm3311
  %v3313 = vsel %vm3312, 1.0, 0.0
  %3315 = vrot.lane.b32.xlu0 %v3313, 7
  %v3316 = vpop.permute.xlu0 %3315
  %v3318 = vmul.f32 %v3309, %v3316
  %v3319 = vmul.f32 %v3310, %v3316
  %3322 = vrot.lane.b32.xlu0 %v3318, 121
  %v3323 = vpop.permute.xlu0 %3322
  %3324 = vrot.lane.b32.xlu0 %v3319, 121
  %v3325 = vpop.permute.xlu0 %3324
  %3328 = vst.msk [vmem:[#allocation3 + $0x80] sm:$0xff] %vm3132, %v3323
  %3329 = vst.msk [vmem:[#allocation3 + $0xa0] sm:$0xff] %vm3132, %v3325
  %v3330 = vld [vmem:[#allocation2] sm:$0xff]
  %v3331 = vld [vmem:[#allocation2 + $0x28] sm:$0xff]
  %v3332 = vsel %vm3271, 1.0, 0.0
  %3334 = vrot.lane.b32.xlu0 %v3332, 9
  %v3335 = vpop.permute.xlu0 %3334
  %v3337 = vmul.f32 %v3330, %v3335
  %v3338 = vmul.f32 %v3331, %v3335
  %3341 = vrot.lane.b32.xlu0 %v3337, 119
  %v3342 = vpop.permute.xlu0 %3341
  %3343 = vrot.lane.b32.xlu0 %v3338, 119
  %v3344 = vpop.permute.xlu0 %3343
  %3347 = vst.msk [vmem:[#allocation3 + $0xc0] sm:$0xff] %vm3132, %v3342
  %3348 = vst.msk [vmem:[#allocation3 + $0xe0] sm:$0xff] %vm3132, %v3344
  %v3349 = vld [vmem:[#allocation2] sm:$0xff]
  %v3350 = vld [vmem:[#allocation2 + $0x28] sm:$0xff]
  %3353 = vrot.lane.b32.xlu0 %v3349, 118
  %v3354 = vpop.permute.xlu0 %3353
  %3355 = vrot.lane.b32.xlu0 %v3350, 118
  %v3356 = vpop.permute.xlu0 %3355
  %3359 = vst.msk [vmem:[#allocation3 + $0x100] sm:$0xff] %vm3132, %v3354
  %3360 = vst.msk [vmem:[#allocation3 + $0x120] sm:$0xff] %vm3132, %v3356
  %v3361 = vld [vmem:[#allocation2] sm:$0xff]
  %v3362 = vld [vmem:[#allocation2 + $0x28] sm:$0xff]
  %v3363 = vsel %vm3311, 1.0, 0.0
  %3365 = vrot.lane.b32.xlu0 %v3363, 11
  %v3366 = vpop.permute.xlu0 %3365
  %v3368 = vmul.f32 %v3361, %v3366
  %v3369 = vmul.f32 %v3362, %v3366
  %3372 = vrot.lane.b32.xlu0 %v3368, 117
  %v3373 = vpop.permute.xlu0 %3372
  %3374 = vrot.lane.b32.xlu0 %v3369, 117
  %v3375 = vpop.permute.xlu0 %3374
  %3378 = vst.msk [vmem:[#allocation3 + $0x140] sm:$0xff] %vm3132, %v3373
  %3379 = vst.msk [vmem:[#allocation3 + $0x160] sm:$0xff] %vm3132, %v3375
  %v3380 = vld [vmem:[#allocation2] sm:$0xff]
  %v3381 = vld [vmem:[#allocation2 + $0x28] sm:$0xff]
  %vm3382 = vcmp.lt.s32.totalorder %v3071, 3
  %vm3383 = vmand %vm3382, %vm3271
  %v3384 = vsel %vm3383, 1.0, 0.0
  %3386 = vrot.lane.b32.xlu0 %v3384, 13
  %v3387 = vpop.permute.xlu0 %3386
  %v3389 = vmul.f32 %v3380, %v3387
  %v3390 = vmul.f32 %v3381, %v3387
  %3393 = vrot.lane.b32.xlu0 %v3389, 115
  %v3394 = vpop.permute.xlu0 %3393
  %3395 = vrot.lane.b32.xlu0 %v3390, 115
  %v3396 = vpop.permute.xlu0 %3395
  %3399 = vst.msk [vmem:[#allocation3 + $0x180] sm:$0xff] %vm3132, %v3394
  %3400 = vst.msk [vmem:[#allocation3 + $0x1a0] sm:$0xff] %vm3132, %v3396
  %v3401 = vld [vmem:[#allocation2] sm:$0xff]
  %v3402 = vld [vmem:[#allocation2 + $0x28] sm:$0xff]
  %v3403 = vsel %vm3382, 1.0, 0.0
  %3405 = vrot.lane.b32.xlu0 %v3403, 14
  %v3406 = vpop.permute.xlu0 %3405
  %v3408 = vmul.f32 %v3401, %v3406
  %v3409 = vmul.f32 %v3402, %v3406
  %3412 = vrot.lane.b32.xlu0 %v3408, 114
  %v3413 = vpop.permute.xlu0 %3412
  %3414 = vrot.lane.b32.xlu0 %v3409, 114
  %v3415 = vpop.permute.xlu0 %3414
  %3418 = vst.msk [vmem:[#allocation3 + $0x1c0] sm:$0xff] %vm3132, %v3413
  %3419 = vst.msk [vmem:[#allocation3 + $0x1e0] sm:$0xff] %vm3132, %v3415
  %v3420 = vld [vmem:[#allocation2] sm:$0xff]
  %v3421 = vld [vmem:[#allocation2 + $0x28] sm:$0xff]
  %vm3422 = vmand %vm3382, %vm3311
  %v3423 = vsel %vm3422, 1.0, 0.0
  %3425 = vrot.lane.b32.xlu0 %v3423, 15
  %v3426 = vpop.permute.xlu0 %3425
  %v3428 = vmul.f32 %v3420, %v3426
  %v3429 = vmul.f32 %v3421, %v3426
  %3432 = vrot.lane.b32.xlu0 %v3428, 113
  %v3433 = vpop.permute.xlu0 %3432
  %3434 = vrot.lane.b32.xlu0 %v3429, 113
  %v3435 = vpop.permute.xlu0 %3434
  %3438 = vst.msk [vmem:[#allocation3 + $0x200] sm:$0xff] %vm3132, %v3433
  %3439 = vst.msk [vmem:[#allocation3 + $0x220] sm:$0xff] %vm3132, %v3435
  %v3440 = vld [vmem:[#allocation3] sm:$0xff]
  %v3441 = vld [vmem:[#allocation3 + $0x20] sm:$0xff]
  %v3442 = vld [vmem:[#allocation3 + $0x40] sm:$0xff]
  %v3443 = vld [vmem:[#allocation3 + $0x60] sm:$0xff]
  %v3444 = vld [vmem:[#allocation3 + $0x80] sm:$0xff]
  %v3445 = vld [vmem:[#allocation3 + $0xa0] sm:$0xff]
  %v3446 = vld [vmem:[#allocation3 + $0xc0] sm:$0xff]
  %v3447 = vld [vmem:[#allocation3 + $0xe0] sm:$0xff]
  %v3448 = vld [vmem:[#allocation3 + $0x100] sm:$0xff]
  %v3449 = vld [vmem:[#allocation3 + $0x120] sm:$0xff]
  %v3450 = vld [vmem:[#allocation3 + $0x140] sm:$0xff]
  %v3451 = vld [vmem:[#allocation3 + $0x160] sm:$0xff]
  %v3452 = vld [vmem:[#allocation3 + $0x180] sm:$0xff]
  %v3453 = vld [vmem:[#allocation3 + $0x1a0] sm:$0xff]
  %v3454 = vld [vmem:[#allocation3 + $0x1c0] sm:$0xff]
  %v3455 = vld [vmem:[#allocation3 + $0x1e0] sm:$0xff]
  %v3456 = vld [vmem:[#allocation3 + $0x200] sm:$0xff]
  %v3457 = vld [vmem:[#allocation3 + $0x220] sm:$0xff]
  %vm3458 = vcmask 130048
  %v3460 = vsel %vm3458, %v3242, 0
  %v3463 = vsel %vm3458, %v3244, 0
  %3465 = vmatpush.msra.mxu0 %v3455
  %3466 = vmatpush.msra.mxu0 %v3454
  %3467 = vmatpush.msra.mxu0 %v3453
  %3468 = vmatpush.msra.mxu0 %v3452
  %3469 = vmatpush.msra.mxu0 %v3451
  %3470 = vmatpush.msra.mxu0 %v3450
  %3471 = vmatpush.msra.mxu0 %v3449
  %3472 = vmatpush.msra.mxu0 %v3448
  %3473 = vmatpush.msra.mxu0 %v3447
  %3474 = vmatpush.msra.mxu0 %v3446
  %3475 = vmatpush.msra.mxu0 %v3445
  %3476 = vmatpush.msra.mxu0 %v3444
  %3477 = vmatpush.msra.mxu0 %v3443
  %3478 = vmatpush.msra.mxu0 %v3442
  %3479 = vmatpush.msra.mxu0 %v3441
  %3480 = vmatpush.msra.mxu0 %v3440
  %3481 = vmatmul.f32.gmra.mxu0 %v3241
  %v3482 = vpop.f32.mrf.mxu0
  %v3483 = vadd.f32 0.0, %v3482
  %3484 = vmatmul.f32.gmra.mxu0 %v3243
  %v3485 = vpop.f32.mrf.mxu0
  %v3486 = vadd.f32 0.0, %v3485
  %3487 = vdwg.mxu0
  %3488 = vmatpush.msra.mxu0 0.0
  %3489 = vmatpush.msra.mxu0 0.0
  %3490 = vmatpush.msra.mxu0 0.0
  %3491 = vmatpush.msra.mxu0 0.0
  %3492 = vmatpush.msra.mxu0 0.0
  %3493 = vmatpush.msra.mxu0 0.0
  %3494 = vmatpush.msra.mxu0 0.0
  %3495 = vmatpush.msra.mxu0 0.0
  %3496 = vmatpush.msra.mxu0 0.0
  %3497 = vmatpush.msra.mxu0 0.0
  %3498 = vmatpush.msra.mxu0 0.0
  %3499 = vmatpush.msra.mxu0 0.0
  %3500 = vmatpush.msra.mxu0 0.0
  %3501 = vmatpush.msra.mxu0 0.0
  %3502 = vmatpush.msra.mxu0 %v3457
  %3503 = vmatpush.msra.mxu0 %v3456
  %3504 = vmatmul.f32.gmra.mxu0 %v3460
  %v3505 = vpop.f32.mrf.mxu0
  %v3506 = vadd.f32 %v3483, %v3505
  %3507 = vmatmul.f32.gmra.mxu0 %v3463
  %v3508 = vpop.f32.mrf.mxu0
  %v3509 = vadd.f32 %v3486, %v3508
  %3510 = vdwg.mxu0
  %v3511 = vsel %vm3132, %v3506, 0.0
  %3512 = vadd.xlane.f32.xlu0 %v3511
  %v3513 = vpop.xlane.xlu0 %3512
  %v3514 = vsel %vm3132, %v3509, 0.0
  %3515 = vadd.xlane.f32.xlu0 %v3514
  %v3516 = vpop.xlane.xlu0 %3515
  %v3517 = vmul.f32 %v3513, 0.03125
  %v3518 = vmul.f32 %v3516, 0.03125
  %v3519 = vsub.f32 %v3506, %v3517
  %v3520 = vsub.f32 %v3509, %v3518
  %v3521 = vmul.f32 %v3519, %v3519
  %v3522 = vmul.f32 %v3520, %v3520
  %v3523 = vsel %vm3132, %v3521, 0.0
  %3524 = vadd.xlane.f32.xlu0 %v3523
  %v3525 = vpop.xlane.xlu0 %3524
  %v3526 = vsel %vm3132, %v3522, 0.0
  %3527 = vadd.xlane.f32.xlu0 %v3526
  %v3528 = vpop.xlane.xlu0 %3527
  %v3529 = vmul.f32 %v3525, 0.03125
  %v3530 = vmul.f32 %v3528, 0.03125
  %v3531 = vadd.f32 %v3529, 1e-05
  %v3532 = vadd.f32 %v3530, 1e-05
  %v3533 = vrsqrt.pop %v3531
  %v3534 = vmul.f32 %v3533, %v3531
  %v3535 = vmul.f32 %v3534, %v3533
  %v3536 = vmul.f32 0.5, %v3535
  %v3537 = vsub.f32 1.5, %v3536
  %v3538 = vmul.f32 %v3533, %v3537
  %vm3539 = vweird.f32 %v3531
  %vm3540 = vweird.f32 %v3533
  %vm3541 = vmor %vm3539, %vm3540
  %v3542 = vsel %vm3541, %v3533, %v3538
  %v3543 = vrsqrt.pop %v3532
  %v3544 = vmul.f32 %v3543, %v3532
  %v3545 = vmul.f32 %v3544, %v3543
  %v3546 = vmul.f32 0.5, %v3545
  %v3547 = vsub.f32 1.5, %v3546
  %v3548 = vmul.f32 %v3543, %v3547
  %vm3549 = vweird.f32 %v3532
  %vm3550 = vweird.f32 %v3543
  %vm3551 = vmor %vm3549, %vm3550
  %v3552 = vsel %vm3551, %v3543, %v3548
  %v3553 = vmul.f32 %v3542, %v3245
  %v3554 = vmul.f32 %v3552, %v3246
  %3556 = vset.pattern.permute.xlu0 0
  %3557 = vperm.xlu0 %3556, %v3553
  %v3558 = vpop.permute.xlu0 %3557
  %3561 = vset.pattern.permute.xlu0 0
  %3562 = vperm.xlu0 %3561, %v3554
  %v3563 = vpop.permute.xlu0 %3562
  %v3565 = vmul.f32 %v3519, %v3558
  %v3566 = vmul.f32 %v3520, %v3563
  %3568 = vset.pattern.permute.xlu0 0
  %3569 = vperm.xlu0 %3568, %v3247
  %v3570 = vpop.permute.xlu0 %3569
  %3573 = vset.pattern.permute.xlu0 0
  %3574 = vperm.xlu0 %3573, %v3248
  %v3575 = vpop.permute.xlu0 %3574
  %v3577 = vadd.f32 %v3565, %v3570
  %v3578 = vadd.f32 %v3566, %v3575
  %v3579 = vsub.f32 0.0, %v3577
  %v3580 = vsub.f32 0.0, %v3578
  %v3581 = vmul.f32 %v3579, 1.442695
  %v3582 = vpow.pop %v3581
  %v3583 = vmul.f32 %v3580, 1.442695
  %v3584 = vpow.pop %v3583
  %v3585 = vadd.f32 %v3582, 1.0
  %v3586 = vadd.f32 %v3584, 1.0
  %v3587 = vrcp.pop %v3585
  %v3588 = vmul.f32 %v3585, %v3587
  %v3589 = vsub.f32 1.0, %v3588
  %v3590 = vmul.f32 %v3587, %v3589
  %v3591 = vadd.f32 %v3587, %v3590
  %vm3592 = vweird.f32 %v3585
  %vm3593 = vweird.f32 %v3587
  %vm3594 = vmor %vm3592, %vm3593
  %v3595 = vsel %vm3594, %v3587, %v3591
  %v3596 = vand.u32 2147483647, %v3585
  %vm3597 = vcmp.eq.f32.partialorder %v3596, 8.507059e+37
  %v3598 = vand.u32 %v3585, 2147483648
  %v3599 = vor.u32 1.1754944e-38, %v3598
  %v3600 = vsel %vm3597, %v3599, %v3595
  %v3601 = vmul.f32 1.0, %v3600
  %v3602 = vrcp.pop %v3586
  %v3603 = vmul.f32 %v3586, %v3602
  %v3604 = vsub.f32 1.0, %v3603
  %v3605 = vmul.f32 %v3602, %v3604
  %v3606 = vadd.f32 %v3602, %v3605
  %vm3607 = vweird.f32 %v3586
  %vm3608 = vweird.f32 %v3602
  %vm3609 = vmor %vm3607, %vm3608
  %v3610 = vsel %vm3609, %v3602, %v3606
  %v3611 = vand.u32 2147483647, %v3586
  %vm3612 = vcmp.eq.f32.partialorder %v3611, 8.507059e+37
  %v3613 = vand.u32 %v3586, 2147483648
  %v3614 = vor.u32 1.1754944e-38, %v3613
  %v3615 = vsel %vm3612, %v3614, %v3610
  %v3616 = vmul.f32 1.0, %v3615
  %v3617 = vmul.f32 %v3577, %v3601
  %v3618 = vmul.f32 %v3578, %v3616
  %3621 = vrot.lane.b32.xlu0 %v3617, 10
  %v3622 = vpop.permute.xlu0 %3621
  %3623 = vrot.lane.b32.xlu0 %v3618, 10
  %v3624 = vpop.permute.xlu0 %3623
  %3627 = vst.msk [vmem:[#allocation2] sm:$0xff] %vm3265, %v3622
  %3628 = vst.msk [vmem:[#allocation2 + $0x28] sm:$0xff] %vm3265, %v3624
  %v3629 = vld [vmem:[#allocation2] sm:$0xff]
  %v3630 = vld [vmem:[#allocation2 + $0x28] sm:$0xff]
  %v3631 = vmul.f32 %v3629, %v3276
  %v3632 = vmul.f32 %v3630, %v3276
  %3635 = vrot.lane.b32.xlu0 %v3631, 123
  %v3636 = vpop.permute.xlu0 %3635
  %3637 = vrot.lane.b32.xlu0 %v3632, 123
  %v3638 = vpop.permute.xlu0 %3637
  %3641 = vst.msk [vmem:[#allocation3] sm:$0xff] %vm3132, %v3636
  %3642 = vst.msk [vmem:[#allocation3 + $0x20] sm:$0xff] %vm3132, %v3638
  %v3643 = vld [vmem:[#allocation2] sm:$0xff]
  %v3644 = vld [vmem:[#allocation2 + $0x28] sm:$0xff]
  %v3645 = vmul.f32 %v3643, %v3295
  %v3646 = vmul.f32 %v3644, %v3295
  %3649 = vrot.lane.b32.xlu0 %v3645, 122
  %v3650 = vpop.permute.xlu0 %3649
  %3651 = vrot.lane.b32.xlu0 %v3646, 122
  %v3652 = vpop.permute.xlu0 %3651
  %3655 = vst.msk [vmem:[#allocation3 + $0x40] sm:$0xff] %vm3132, %v3650
  %3656 = vst.msk [vmem:[#allocation3 + $0x60] sm:$0xff] %vm3132, %v3652
  %v3657 = vld [vmem:[#allocation2] sm:$0xff]
  %v3658 = vld [vmem:[#allocation2 + $0x28] sm:$0xff]
  %v3659 = vmul.f32 %v3657, %v3316
  %v3660 = vmul.f32 %v3658, %v3316
  %3663 = vrot.lane.b32.xlu0 %v3659, 121
  %v3664 = vpop.permute.xlu0 %3663
  %3665 = vrot.lane.b32.xlu0 %v3660, 121
  %v3666 = vpop.permute.xlu0 %3665
  %3669 = vst.msk [vmem:[#allocation3 + $0x80] sm:$0xff] %vm3132, %v3664
  %3670 = vst.msk [vmem:[#allocation3 + $0xa0] sm:$0xff] %vm3132, %v3666
  %v3671 = vld [vmem:[#allocation2] sm:$0xff]
  %v3672 = vld [vmem:[#allocation2 + $0x28] sm:$0xff]
  %v3673 = vmul.f32 %v3671, %v3335
  %v3674 = vmul.f32 %v3672, %v3335
  %3677 = vrot.lane.b32.xlu0 %v3673, 119
  %v3678 = vpop.permute.xlu0 %3677
  %3679 = vrot.lane.b32.xlu0 %v3674, 119
  %v3680 = vpop.permute.xlu0 %3679
  %3683 = vst.msk [vmem:[#allocation3 + $0xc0] sm:$0xff] %vm3132, %v3678
  %3684 = vst.msk [vmem:[#allocation3 + $0xe0] sm:$0xff] %vm3132, %v3680
  %v3685 = vld [vmem:[#allocation2] sm:$0xff]
  %v3686 = vld [vmem:[#allocation2 + $0x28] sm:$0xff]
  %3689 = vrot.lane.b32.xlu0 %v3685, 118
  %v3690 = vpop.permute.xlu0 %3689
  %3691 = vrot.lane.b32.xlu0 %v3686, 118
  %v3692 = vpop.permute.xlu0 %3691
  %3695 = vst.msk [vmem:[#allocation3 + $0x100] sm:$0xff] %vm3132, %v3690
  %3696 = vst.msk [vmem:[#allocation3 + $0x120] sm:$0xff] %vm3132, %v3692
  %v3697 = vld [vmem:[#allocation2] sm:$0xff]
  %v3698 = vld [vmem:[#allocation2 + $0x28] sm:$0xff]
  %v3699 = vmul.f32 %v3697, %v3366
  %v3700 = vmul.f32 %v3698, %v3366
  %3703 = vrot.lane.b32.xlu0 %v3699, 117
  %v3704 = vpop.permute.xlu0 %3703
  %3705 = vrot.lane.b32.xlu0 %v3700, 117
  %v3706 = vpop.permute.xlu0 %3705
  %3709 = vst.msk [vmem:[#allocation3 + $0x140] sm:$0xff] %vm3132, %v3704
  %3710 = vst.msk [vmem:[#allocation3 + $0x160] sm:$0xff] %vm3132, %v3706
  %v3711 = vld [vmem:[#allocation2] sm:$0xff]
  %v3712 = vld [vmem:[#allocation2 + $0x28] sm:$0xff]
  %v3713 = vmul.f32 %v3711, %v3387
  %v3714 = vmul.f32 %v3712, %v3387
  %3717 = vrot.lane.b32.xlu0 %v3713, 115
  %v3718 = vpop.permute.xlu0 %3717
  %3719 = vrot.lane.b32.xlu0 %v3714, 115
  %v3720 = vpop.permute.xlu0 %3719
  %3723 = vst.msk [vmem:[#allocation3 + $0x180] sm:$0xff] %vm3132, %v3718
  %3724 = vst.msk [vmem:[#allocation3 + $0x1a0] sm:$0xff] %vm3132, %v3720
  %v3725 = vld [vmem:[#allocation2] sm:$0xff]
  %v3726 = vld [vmem:[#allocation2 + $0x28] sm:$0xff]
  %v3727 = vmul.f32 %v3725, %v3406
  %v3728 = vmul.f32 %v3726, %v3406
  %3731 = vrot.lane.b32.xlu0 %v3727, 114
  %v3732 = vpop.permute.xlu0 %3731
  %3733 = vrot.lane.b32.xlu0 %v3728, 114
  %v3734 = vpop.permute.xlu0 %3733
  %3737 = vst.msk [vmem:[#allocation3 + $0x1c0] sm:$0xff] %vm3132, %v3732
  %3738 = vst.msk [vmem:[#allocation3 + $0x1e0] sm:$0xff] %vm3132, %v3734
  %v3739 = vld [vmem:[#allocation2] sm:$0xff]
  %v3740 = vld [vmem:[#allocation2 + $0x28] sm:$0xff]
  %v3741 = vmul.f32 %v3739, %v3426
  %v3742 = vmul.f32 %v3740, %v3426
  %3745 = vrot.lane.b32.xlu0 %v3741, 113
  %v3746 = vpop.permute.xlu0 %3745
  %3747 = vrot.lane.b32.xlu0 %v3742, 113
  %v3748 = vpop.permute.xlu0 %3747
  %3751 = vst.msk [vmem:[#allocation3 + $0x200] sm:$0xff] %vm3132, %v3746
  %3752 = vst.msk [vmem:[#allocation3 + $0x220] sm:$0xff] %vm3132, %v3748
  %v3753 = vld [vmem:[#allocation3] sm:$0xff]
  %v3754 = vld [vmem:[#allocation3 + $0x20] sm:$0xff]
  %v3755 = vld [vmem:[#allocation3 + $0x40] sm:$0xff]
  %v3756 = vld [vmem:[#allocation3 + $0x60] sm:$0xff]
  %v3757 = vld [vmem:[#allocation3 + $0x80] sm:$0xff]
  %v3758 = vld [vmem:[#allocation3 + $0xa0] sm:$0xff]
  %v3759 = vld [vmem:[#allocation3 + $0xc0] sm:$0xff]
  %v3760 = vld [vmem:[#allocation3 + $0xe0] sm:$0xff]
  %v3761 = vld [vmem:[#allocation3 + $0x100] sm:$0xff]
  %v3762 = vld [vmem:[#allocation3 + $0x120] sm:$0xff]
  %v3763 = vld [vmem:[#allocation3 + $0x140] sm:$0xff]
  %v3764 = vld [vmem:[#allocation3 + $0x160] sm:$0xff]
  %v3765 = vld [vmem:[#allocation3 + $0x180] sm:$0xff]
  %v3766 = vld [vmem:[#allocation3 + $0x1a0] sm:$0xff]
  %v3767 = vld [vmem:[#allocation3 + $0x1c0] sm:$0xff]
  %v3768 = vld [vmem:[#allocation3 + $0x1e0] sm:$0xff]
  %v3769 = vld [vmem:[#allocation3 + $0x200] sm:$0xff]
  %v3770 = vld [vmem:[#allocation3 + $0x220] sm:$0xff]
  %v3772 = vsel %vm3458, %v3250, 0
  %v3775 = vsel %vm3458, %v3252, 0
  %3777 = vmatpush.msra.mxu0 %v3768
  %3778 = vmatpush.msra.mxu0 %v3767
  %3779 = vmatpush.msra.mxu0 %v3766
  %3780 = vmatpush.msra.mxu0 %v3765
  %3781 = vmatpush.msra.mxu0 %v3764
  %3782 = vmatpush.msra.mxu0 %v3763
  %3783 = vmatpush.msra.mxu0 %v3762
  %3784 = vmatpush.msra.mxu0 %v3761
  %3785 = vmatpush.msra.mxu0 %v3760
  %3786 = vmatpush.msra.mxu0 %v3759
  %3787 = vmatpush.msra.mxu0 %v3758
  %3788 = vmatpush.msra.mxu0 %v3757
  %3789 = vmatpush.msra.mxu0 %v3756
  %3790 = vmatpush.msra.mxu0 %v3755
  %3791 = vmatpush.msra.mxu0 %v3754
  %3792 = vmatpush.msra.mxu0 %v3753
  %3793 = vmatmul.f32.gmra.mxu0 %v3249
  %v3794 = vpop.f32.mrf.mxu0
  %v3795 = vadd.f32 0.0, %v3794
  %3796 = vmatmul.f32.gmra.mxu0 %v3251
  %v3797 = vpop.f32.mrf.mxu0
  %v3798 = vadd.f32 0.0, %v3797
  %3799 = vdwg.mxu0
  %3800 = vmatpush.msra.mxu0 0.0
  %3801 = vmatpush.msra.mxu0 0.0
  %3802 = vmatpush.msra.mxu0 0.0
  %3803 = vmatpush.msra.mxu0 0.0
  %3804 = vmatpush.msra.mxu0 0.0
  %3805 = vmatpush.msra.mxu0 0.0
  %3806 = vmatpush.msra.mxu0 0.0
  %3807 = vmatpush.msra.mxu0 0.0
  %3808 = vmatpush.msra.mxu0 0.0
  %3809 = vmatpush.msra.mxu0 0.0
  %3810 = vmatpush.msra.mxu0 0.0
  %3811 = vmatpush.msra.mxu0 0.0
  %3812 = vmatpush.msra.mxu0 0.0
  %3813 = vmatpush.msra.mxu0 0.0
  %3814 = vmatpush.msra.mxu0 %v3770
  %3815 = vmatpush.msra.mxu0 %v3769
  %3816 = vmatmul.f32.gmra.mxu0 %v3772
  %v3817 = vpop.f32.mrf.mxu0
  %v3818 = vadd.f32 %v3795, %v3817
  %3819 = vmatmul.f32.gmra.mxu0 %v3775
  %v3820 = vpop.f32.mrf.mxu0
  %v3821 = vadd.f32 %v3798, %v3820
  %3822 = vdwg.mxu0
  %v3823 = vsel %vm3132, %v3818, 0.0
  %3824 = vadd.xlane.f32.xlu0 %v3823
  %v3825 = vpop.xlane.xlu0 %3824
  %v3826 = vsel %vm3132, %v3821, 0.0
  %3827 = vadd.xlane.f32.xlu0 %v3826
  %v3828 = vpop.xlane.xlu0 %3827
  %v3829 = vmul.f32 %v3825, 0.03125
  %v3830 = vmul.f32 %v3828, 0.03125
  %v3831 = vsub.f32 %v3818, %v3829
  %v3832 = vsub.f32 %v3821, %v3830
  %v3833 = vmul.f32 %v3831, %v3831
  %v3834 = vmul.f32 %v3832, %v3832
  %v3835 = vsel %vm3132, %v3833, 0.0
  %3836 = vadd.xlane.f32.xlu0 %v3835
  %v3837 = vpop.xlane.xlu0 %3836
  %v3838 = vsel %vm3132, %v3834, 0.0
  %3839 = vadd.xlane.f32.xlu0 %v3838
  %v3840 = vpop.xlane.xlu0 %3839
  %v3841 = vmul.f32 %v3837, 0.03125
  %v3842 = vmul.f32 %v3840, 0.03125
  %v3843 = vadd.f32 %v3841, 1e-05
  %v3844 = vadd.f32 %v3842, 1e-05
  %v3845 = vrsqrt.pop %v3843
  %v3846 = vmul.f32 %v3845, %v3843
  %v3847 = vmul.f32 %v3846, %v3845
  %v3848 = vmul.f32 0.5, %v3847
  %v3849 = vsub.f32 1.5, %v3848
  %v3850 = vmul.f32 %v3845, %v3849
  %vm3851 = vweird.f32 %v3843
  %vm3852 = vweird.f32 %v3845
  %vm3853 = vmor %vm3851, %vm3852
  %v3854 = vsel %vm3853, %v3845, %v3850
  %v3855 = vrsqrt.pop %v3844
  %v3856 = vmul.f32 %v3855, %v3844
  %v3857 = vmul.f32 %v3856, %v3855
  %v3858 = vmul.f32 0.5, %v3857
  %v3859 = vsub.f32 1.5, %v3858
  %v3860 = vmul.f32 %v3855, %v3859
  %vm3861 = vweird.f32 %v3844
  %vm3862 = vweird.f32 %v3855
  %vm3863 = vmor %vm3861, %vm3862
  %v3864 = vsel %vm3863, %v3855, %v3860
  %v3865 = vmul.f32 %v3854, %v3253
  %v3866 = vmul.f32 %v3864, %v3254
  %3868 = vset.pattern.permute.xlu0 0
  %3869 = vperm.xlu0 %3868, %v3865
  %v3870 = vpop.permute.xlu0 %3869
  %3873 = vset.pattern.permute.xlu0 0
  %3874 = vperm.xlu0 %3873, %v3866
  %v3875 = vpop.permute.xlu0 %3874
  %v3877 = vmul.f32 %v3831, %v3870
  %v3878 = vmul.f32 %v3832, %v3875
  %3880 = vset.pattern.permute.xlu0 0
  %3881 = vperm.xlu0 %3880, %v3255
  %v3882 = vpop.permute.xlu0 %3881
  %3885 = vset.pattern.permute.xlu0 0
  %3886 = vperm.xlu0 %3885, %v3256
  %v3887 = vpop.permute.xlu0 %3886
  %v3889 = vadd.f32 %v3877, %v3882
  %v3890 = vadd.f32 %v3878, %v3887
  %v3891 = vadd.f32 %v3889, %v3239
  %v3892 = vadd.f32 %v3890, %v3240
  %v3893 = vsub.f32 0.0, %v3891
  %v3894 = vsub.f32 0.0, %v3892
  %v3895 = vmul.f32 %v3893, 1.442695
  %v3896 = vpow.pop %v3895
  %v3897 = vmul.f32 %v3894, 1.442695
  %v3898 = vpow.pop %v3897
  %v3899 = vadd.f32 %v3896, 1.0
  %v3900 = vadd.f32 %v3898, 1.0
  %v3901 = vrcp.pop %v3899
  %v3902 = vmul.f32 %v3899, %v3901
  %v3903 = vsub.f32 1.0, %v3902
  %v3904 = vmul.f32 %v3901, %v3903
  %v3905 = vadd.f32 %v3901, %v3904
  %vm3906 = vweird.f32 %v3899
  %vm3907 = vweird.f32 %v3901
  %vm3908 = vmor %vm3906, %vm3907
  %v3909 = vsel %vm3908, %v3901, %v3905
  %v3910 = vand.u32 2147483647, %v3899
  %vm3911 = vcmp.eq.f32.partialorder %v3910, 8.507059e+37
  %v3912 = vand.u32 %v3899, 2147483648
  %v3913 = vor.u32 1.1754944e-38, %v3912
  %v3914 = vsel %vm3911, %v3913, %v3909
  %v3915 = vmul.f32 1.0, %v3914
  %v3916 = vrcp.pop %v3900
  %v3917 = vmul.f32 %v3900, %v3916
  %v3918 = vsub.f32 1.0, %v3917
  %v3919 = vmul.f32 %v3916, %v3918
  %v3920 = vadd.f32 %v3916, %v3919
  %vm3921 = vweird.f32 %v3900
  %vm3922 = vweird.f32 %v3916
  %vm3923 = vmor %vm3921, %vm3922
  %v3924 = vsel %vm3923, %v3916, %v3920
  %v3925 = vand.u32 2147483647, %v3900
  %vm3926 = vcmp.eq.f32.partialorder %v3925, 8.507059e+37
  %v3927 = vand.u32 %v3900, 2147483648
  %v3928 = vor.u32 1.1754944e-38, %v3927
  %v3929 = vsel %vm3926, %v3928, %v3924
  %v3930 = vmul.f32 1.0, %v3929
  %v3931 = vmul.f32 %v3891, %v3915
  %v3932 = vmul.f32 %v3892, %v3930
  %3933 = vst.msk [vmem:[%s22] sm:$0xff] %vm3132, %v3931
  %3934 = vst.msk [vmem:[%s22 + $0x8] sm:$0xff] %vm3132, %v3932
  // Predicated region
  $region90: #{_lambda_.1} parent=0 // pred_check
    _
  $region91: #{_lambda_.1} parent=0 // pred_check_branch
    %3936 = sbr.rel (0) target = $region93
  $region92: #{_lambda_.1} parent=0 // pred_region
    _
  $region93: #{_lambda_.1} parent=0 // pred_fallthru
    _
  // Predicated region
  $region94: #{_lambda_.1} parent=0 // pred_check
    _
  $region95: #{_lambda_.1} parent=0 // pred_check_branch
    %3938 = sbr.rel (0) target = $region97
  $region96: #{_lambda_.1} parent=0 // pred_region
    _
  $region97: #{_lambda_.1} parent=0 // pred_fallthru
    _

</llo_original>
